<compile_context>
chip_gen: v7x
topology: tpu7x:2x2x1
jax: 0.10.0
libtpu: 0.0.40
codegen_flags: <defaults>
</compile_context>

<pallas_src>
from functools import partial

import jax
import jax.numpy as jnp
import numpy as np
from jax import lax
from jax.experimental import pallas as pl
from jax.experimental.pallas import tpu as pltpu


def _ghu_kernel(x_ref, z_ref, wx_ref, wz_ref, mask_ref, out_ref,
                *, hidden, H, W, K, eps):
    """Fused GHU forward for one batch-block.

    x_ref    : (Bb, Cin,    H*W)  raw input, channel-major, lane-dense
    z_ref    : (Bb, hidden, H*W)  previous highway state
    wx_ref   : (K*K, 2*hidden, Cin)    conv_x weight, one (O, I) slab per tap
    wz_ref   : (K*K, 2*hidden, hidden) conv_z weight, one (O, I) slab per tap
    mask_ref : (K*K, 1, H*W)  0/1 validity masks for "SAME" zero padding
    out_ref  : (Bb, hidden, H*W)  new highway state (f32)
    """
    Bb = x_ref.shape[0]
    HW = H * W
    pad = K // 2
    c2 = 2 * hidden
    inv_n = np.float32(1.0 / (c2 * HW))          # LayerNorm 1/N, precomputed

    # Static per-tap lane shifts (tap order matches the weight/mask layout).
    shifts = [(kh - pad) * W + (kw - pad) for kh in range(K) for kw in range(K)]

    def layer_norm(v):
        # torch.layer_norm(v, v.shape[1:]): biased variance, eps inside rsqrt,
        # no affine.  Safe mean((v-m)^2) form; rsqrt lands on the EUP.
        m = jnp.sum(v) * inv_n
        d = v - m
        var = jnp.sum(d * d) * inv_n
        return d * lax.rsqrt(var + eps)

    def per_sample(b, carry):
        x_s = x_ref[b].astype(jnp.float32)        # (Cin,    HW)
        z_s = z_ref[b].astype(jnp.float32)        # (hidden, HW)

        acc_x = jnp.zeros((c2, HW), jnp.float32)
        acc_z = jnp.zeros((c2, HW), jnp.float32)
        # K*K taps, fully unrolled at trace time.  For tap (dh, dw):
        #   tap[i] = input[i + dh*W + dw]   (zero at the spatial borders)
        for t, shift in enumerate(shifts):
            if shift == 0:                        # centre tap: no roll, no mask
                x_t, z_t = x_s, z_s
            else:
                msk = mask_ref[t]                 # (1, HW) 0/1 border mask
                x_t = jnp.roll(x_s, -shift, axis=1) * msk
                z_t = jnp.roll(z_s, -shift, axis=1) * msk
            acc_x = acc_x + jnp.dot(wx_ref[t], x_t,
                                    preferred_element_type=jnp.float32)
            acc_z = acc_z + jnp.dot(wz_ref[t], z_t,
                                    preferred_element_type=jnp.float32)

        xn = layer_norm(acc_x)                    # conv_x path, per-sample LN
        zn = layer_norm(acc_z)                    # conv_z path, per-sample LN

        # torch.split(..., hidden, dim=1) == sublane-aligned row slices here.
        p = jnp.tanh(xn[:hidden, :] + zn[:hidden, :])
        s = jax.nn.sigmoid(xn[hidden:, :] + zn[hidden:, :])

        # s*p + (1-s)*z  ==  z + s*(p - z)
        out_ref[b] = z_s + s * (p - z_s)
        return carry

    lax.fori_loop(0, Bb, per_sample, 0, unroll=True)


def prepare_ghu_weights(wx, wz):
    """OIHW conv weights -> per-tap (K*K, 2*hidden, C_in) f32 slabs.

    Hoisted out of the per-timestep forward so a time-unrolled PredRNN++ pays
    the transpose/reshape exactly once.
    """
    c2, cin, K, _ = wx.shape
    chid = wz.shape[1]
    wx_taps = jnp.transpose(wx, (2, 3, 0, 1)).reshape(K * K, c2, cin)
    wz_taps = jnp.transpose(wz, (2, 3, 0, 1)).reshape(K * K, c2, chid)
    return wx_taps.astype(jnp.float32), wz_taps.astype(jnp.float32)


def _tap_masks(H, W, K):
    """0/1 masks (K*K, 1, H*W): valid positions of each shifted tap (SAME pad)."""
    pad = K // 2
    hh, ww = np.meshgrid(np.arange(H), np.arange(W), indexing="ij")
    hh, ww = hh.reshape(-1), ww.reshape(-1)
    masks = np.zeros((K * K, 1, H * W), np.float32)
    t = 0
    for kh in range(K):
        for kw in range(K):
            dh, dw = kh - pad, kw - pad
            masks[t, 0, :] = ((hh + dh >= 0) & (hh + dh < H) &
                              (ww + dw >= 0) & (ww + dw < W))
            t += 1
    return masks


def _pick_batch_block(B, max_block=8):
    """Largest divisor of B that is <= max_block (amortizes per-step overhead)."""
    for d in range(min(B, max_block), 0, -1):
        if B % d == 0:
            return d
    return 1


def ghu_forward(x, z, wx_taps, wz_taps, hidden, *, batch_block=None, eps=1e-5):
    """GradientHighwayUnit forward (PyTorch NCHW layout, prebuilt per-tap weights).

    x : (B, Cin, H, W), z : (B, hidden, H, W)  ->  z_new : (B, hidden, H, W) f32
    """
    B, cin, H, W = x.shape
    chid = z.shape[1]
    HW = H * W
    KK, c2, cin_w = wx_taps.shape
    K = int(round(KK ** 0.5))
    assert chid == hidden and c2 == 2 * hidden and cin_w == cin
    assert wz_taps.shape == (KK, c2, hidden)

    if batch_block is None:
        batch_block = _pick_batch_block(B)
    Bb = batch_block
    assert B % Bb == 0, "batch_block must divide batch"
    nb = B // Bb

    # Pure metadata reshapes — no im2col / concat / pad materialization in HBM.
    x_flat = x.reshape(B, cin, HW)
    z_flat = z.reshape(B, chid, HW)
    masks = jnp.asarray(_tap_masks(H, W, K))      # trace-time constant, ~K*K*HW*4 B

    kernel = partial(_ghu_kernel, hidden=hidden, H=H, W=W, K=K, eps=eps)

    flops = 2 * B * KK * c2 * (cin + chid) * HW
    bytes_accessed = 4 * (x_flat.size + 2 * z_flat.size
                          + wx_taps.size + wz_taps.size + masks.size)

    out = pl.pallas_call(
        kernel,
        out_shape=jax.ShapeDtypeStruct((B, hidden, HW), jnp.float32),
        grid_spec=pltpu.PrefetchScalarGridSpec(
            num_scalar_prefetch=0,
            grid=(nb,),                                        # one batch-block / step
            in_specs=[
                pl.BlockSpec((Bb, cin, HW), lambda i: (i, 0, 0)),    # x
                pl.BlockSpec((Bb, chid, HW), lambda i: (i, 0, 0)),   # z state
                pl.BlockSpec((KK, c2, cin), lambda i: (0, 0, 0)),    # Wx taps (resident)
                pl.BlockSpec((KK, c2, chid), lambda i: (0, 0, 0)),   # Wz taps (resident)
                pl.BlockSpec((KK, 1, HW), lambda i: (0, 0, 0)),      # border masks (resident)
            ],
            out_specs=pl.BlockSpec((Bb, hidden, HW), lambda i: (i, 0, 0)),
        ),
        compiler_params=pltpu.CompilerParams(
            dimension_semantics=("parallel",),     # v7x megacore splits batch blocks
            vmem_limit_bytes=16 * 1024 * 1024,     # actual footprint ~0.1 MiB; safe on v5e/v6e/v7x
        ),
        cost_estimate=pl.CostEstimate(
            flops=flops,
            transcendentals=2 * B * hidden * HW,
            bytes_accessed=bytes_accessed),
    )(x_flat, z_flat, wx_taps, wz_taps, masks)

    return out.reshape(B, hidden, H, W)


def ghu_reference(x, z, wx, wz, hidden, eps=1e-5):
    """Pure-JAX reference matching the PyTorch module (NCHW / OIHW, f32)."""
    dn = ("NCHW", "OIHW", "NCHW")

    def conv(a, w):
        return lax.conv_general_dilated(
            a, w, (1, 1), "SAME", dimension_numbers=dn,
            precision=lax.Precision.HIGHEST,
            preferred_element_type=jnp.float32)

    def ln(v):
        mean = jnp.mean(v, axis=(1, 2, 3), keepdims=True)
        var = jnp.mean((v - mean) ** 2, axis=(1, 2, 3), keepdims=True)
        return (v - mean) * lax.rsqrt(var + eps)

    x_c = ln(conv(x, wx))
    z_c = ln(conv(z, wz))
    p = jnp.tanh(x_c[:, :hidden] + z_c[:, :hidden])
    s = jax.nn.sigmoid(x_c[:, hidden:] + z_c[:, hidden:])
    return s * p + (1.0 - s) * z


if __name__ == "__main__":
    B, Cin, hidden, H, W, K = 2, 4, 8, 16, 16, 3

    key = jax.random.PRNGKey(0)
    kx, kz, kwx, kwz = jax.random.split(key, 4)

    # nn.Conv2d weights, OIHW, Cout = 2*hidden, bias=False.
    wx = jax.random.normal(kwx, (2 * hidden, Cin, K, K), jnp.float32) * 0.1
    wz = jax.random.normal(kwz, (2 * hidden, hidden, K, K), jnp.float32) * 0.1

    # Inputs in PyTorch NCHW layout: x (2,4,16,16), z (2,8,16,16).
    x = jax.random.normal(kx, (B, Cin, H, W), jnp.float32)
    z = jax.random.normal(kz, (B, hidden, H, W), jnp.float32)

    # Hoisted weight preprocessing: once per model, not per timestep.
    wx_taps, wz_taps = prepare_ghu_weights(wx, wz)

    ghu = jax.jit(ghu_forward, static_argnames=("hidden", "batch_block", "eps"))
    out = jax.block_until_ready(ghu(x, z, wx_taps, wz_taps, hidden=hidden))

    ref = jax.block_until_ready(ghu_reference(x, z, wx, wz, hidden))
    np.testing.assert_allclose(np.asarray(out), np.asarray(ref),
                               rtol=1e-3, atol=1e-3)

    print("KERNEL_OK")
</pallas_src>

<mosaic_0001>
module attributes {stable_mosaic.version = 11 : i64} {
  func.func @_ghu_kernel(%arg0: i32, %arg1: memref<2x4x256xf32, #tpu.memory_space<vmem>>, %arg2: memref<2x8x256xf32, #tpu.memory_space<vmem>>, %arg3: memref<9x16x4xf32, #tpu.memory_space<vmem>>, %arg4: memref<9x16x8xf32, #tpu.memory_space<vmem>>, %arg5: memref<9x1x256xf32, #tpu.memory_space<vmem>>, %arg6: memref<2x8x256xf32, #tpu.memory_space<vmem>>) attributes {dimension_semantics = [#tpu.dimension_semantics<parallel>], iteration_bounds = array<i64: 1>, scalar_prefetch = 0 : i64, scratch_operands = 0 : i64, tpu.core_type = #tpu.core_type<tc>, window_params = [{transform_indices = @transform_0, window_bounds = array<i64: 2, 4, 256>}, {transform_indices = @transform_1, window_bounds = array<i64: 2, 8, 256>}, {pipeline_mode = #tpu.pipeline_mode<synchronous>, transform_indices = @transform_2, window_bounds = array<i64: 9, 16, 4>}, {pipeline_mode = #tpu.pipeline_mode<synchronous>, transform_indices = @transform_3, window_bounds = array<i64: 9, 16, 8>}, {pipeline_mode = #tpu.pipeline_mode<synchronous>, transform_indices = @transform_4, window_bounds = array<i64: 9, 1, 256>}, {transform_indices = @transform_5, window_bounds = array<i64: 2, 8, 256>}]} {
    %c0_i32 = arith.constant 0 : i32
    %0 = arith.index_cast %c0_i32 : i32 to index
    %c0 = arith.constant 0 : index
    %c0_0 = arith.constant 0 : index
    %1 = vector.load %arg1[%0, %c0, %c0_0] : memref<2x4x256xf32, #tpu.memory_space<vmem>>, vector<1x4x256xf32>
    %2 = vector.shape_cast %1 : vector<1x4x256xf32> to vector<4x256xf32>
    %3 = arith.index_cast %c0_i32 : i32 to index
    %c0_1 = arith.constant 0 : index
    %c0_2 = arith.constant 0 : index
    %4 = vector.load %arg2[%3, %c0_1, %c0_2] : memref<2x8x256xf32, #tpu.memory_space<vmem>>, vector<1x8x256xf32>
    %5 = vector.shape_cast %4 : vector<1x8x256xf32> to vector<8x256xf32>
    %cst = arith.constant 0.000000e+00 : f32
    %6 = vector.broadcast %cst : f32 to vector<16x256xf32>
    %cst_3 = arith.constant 0.000000e+00 : f32
    %7 = vector.broadcast %cst_3 : f32 to vector<16x256xf32>
    %c0_4 = arith.constant 0 : index
    %c0_5 = arith.constant 0 : index
    %c0_6 = arith.constant 0 : index
    %8 = vector.load %arg5[%c0_4, %c0_5, %c0_6] : memref<9x1x256xf32, #tpu.memory_space<vmem>>, vector<1x1x256xf32>
    %9 = vector.shape_cast %8 : vector<1x1x256xf32> to vector<1x256xf32>
    %10 = vector.extract_strided_slice %2 {offsets = [0, 239], sizes = [4, 17], strides = [1, 1]} : vector<4x256xf32> to vector<4x17xf32>
    %11 = vector.extract_strided_slice %2 {offsets = [0, 0], sizes = [4, 239], strides = [1, 1]} : vector<4x256xf32> to vector<4x239xf32>
    %12 = tpu.concatenate %10, %11 in 1 : vector<4x17xf32>, vector<4x239xf32> -> vector<4x256xf32>
    %13 = vector.broadcast %9 : vector<1x256xf32> to vector<4x256xf32>
    %14 = arith.mulf %12, %13 : vector<4x256xf32>
    %15 = vector.extract_strided_slice %5 {offsets = [0, 239], sizes = [8, 17], strides = [1, 1]} : vector<8x256xf32> to vector<8x17xf32>
    %16 = vector.extract_strided_slice %5 {offsets = [0, 0], sizes = [8, 239], strides = [1, 1]} : vector<8x256xf32> to vector<8x239xf32>
    %17 = tpu.concatenate %15, %16 in 1 : vector<8x17xf32>, vector<8x239xf32> -> vector<8x256xf32>
    %18 = vector.broadcast %9 : vector<1x256xf32> to vector<8x256xf32>
    %19 = arith.mulf %17, %18 : vector<8x256xf32>
    %c0_7 = arith.constant 0 : index
    %c0_8 = arith.constant 0 : index
    %c0_9 = arith.constant 0 : index
    %20 = vector.load %arg3[%c0_7, %c0_8, %c0_9] : memref<9x16x4xf32, #tpu.memory_space<vmem>>, vector<1x16x4xf32>
    %21 = vector.shape_cast %20 : vector<1x16x4xf32> to vector<16x4xf32>
    %cst_10 = arith.constant dense<0.000000e+00> : vector<16x256xf32>
    %22 = tpu.matmul %21, %14, %cst_10 {dimension_numbers = #tpu.dot_dimension_numbers<[1], [0], [0], [1], [0, 0, 1, 1], [], []>} : vector<16x4xf32>, vector<4x256xf32>, vector<16x256xf32> -> vector<16x256xf32>
    %23 = arith.addf %6, %22 : vector<16x256xf32>
    %c0_11 = arith.constant 0 : index
    %c0_12 = arith.constant 0 : index
    %c0_13 = arith.constant 0 : index
    %24 = vector.load %arg4[%c0_11, %c0_12, %c0_13] : memref<9x16x8xf32, #tpu.memory_space<vmem>>, vector<1x16x8xf32>
    %25 = vector.shape_cast %24 : vector<1x16x8xf32> to vector<16x8xf32>
    %cst_14 = arith.constant dense<0.000000e+00> : vector<16x256xf32>
    %26 = tpu.matmul %25, %19, %cst_14 {dimension_numbers = #tpu.dot_dimension_numbers<[1], [0], [0], [1], [0, 0, 1, 1], [], []>} : vector<16x8xf32>, vector<8x256xf32>, vector<16x256xf32> -> vector<16x256xf32>
    %27 = arith.addf %7, %26 : vector<16x256xf32>
    %c1 = arith.constant 1 : index
    %c0_15 = arith.constant 0 : index
    %c0_16 = arith.constant 0 : index
    %28 = vector.load %arg5[%c1, %c0_15, %c0_16] : memref<9x1x256xf32, #tpu.memory_space<vmem>>, vector<1x1x256xf32>
    %29 = vector.shape_cast %28 : vector<1x1x256xf32> to vector<1x256xf32>
    %30 = vector.extract_strided_slice %2 {offsets = [0, 240], sizes = [4, 16], strides = [1, 1]} : vector<4x256xf32> to vector<4x16xf32>
    %31 = vector.extract_strided_slice %2 {offsets = [0, 0], sizes = [4, 240], strides = [1, 1]} : vector<4x256xf32> to vector<4x240xf32>
    %32 = tpu.concatenate %30, %31 in 1 : vector<4x16xf32>, vector<4x240xf32> -> vector<4x256xf32>
    %33 = vector.broadcast %29 : vector<1x256xf32> to vector<4x256xf32>
    %34 = arith.mulf %32, %33 : vector<4x256xf32>
    %35 = vector.extract_strided_slice %5 {offsets = [0, 240], sizes = [8, 16], strides = [1, 1]} : vector<8x256xf32> to vector<8x16xf32>
    %36 = vector.extract_strided_slice %5 {offsets = [0, 0], sizes = [8, 240], strides = [1, 1]} : vector<8x256xf32> to vector<8x240xf32>
    %37 = tpu.concatenate %35, %36 in 1 : vector<8x16xf32>, vector<8x240xf32> -> vector<8x256xf32>
    %38 = vector.broadcast %29 : vector<1x256xf32> to vector<8x256xf32>
    %39 = arith.mulf %37, %38 : vector<8x256xf32>
    %c1_17 = arith.constant 1 : index
    %c0_18 = arith.constant 0 : index
    %c0_19 = arith.constant 0 : index
    %40 = vector.load %arg3[%c1_17, %c0_18, %c0_19] : memref<9x16x4xf32, #tpu.memory_space<vmem>>, vector<1x16x4xf32>
    %41 = vector.shape_cast %40 : vector<1x16x4xf32> to vector<16x4xf32>
    %cst_20 = arith.constant dense<0.000000e+00> : vector<16x256xf32>
    %42 = tpu.matmul %41, %34, %cst_20 {dimension_numbers = #tpu.dot_dimension_numbers<[1], [0], [0], [1], [0, 0, 1, 1], [], []>} : vector<16x4xf32>, vector<4x256xf32>, vector<16x256xf32> -> vector<16x256xf32>
    %43 = arith.addf %23, %42 : vector<16x256xf32>
    %c1_21 = arith.constant 1 : index
    %c0_22 = arith.constant 0 : index
    %c0_23 = arith.constant 0 : index
    %44 = vector.load %arg4[%c1_21, %c0_22, %c0_23] : memref<9x16x8xf32, #tpu.memory_space<vmem>>, vector<1x16x8xf32>
    %45 = vector.shape_cast %44 : vector<1x16x8xf32> to vector<16x8xf32>
    %cst_24 = arith.constant dense<0.000000e+00> : vector<16x256xf32>
    %46 = tpu.matmul %45, %39, %cst_24 {dimension_numbers = #tpu.dot_dimension_numbers<[1], [0], [0], [1], [0, 0, 1, 1], [], []>} : vector<16x8xf32>, vector<8x256xf32>, vector<16x256xf32> -> vector<16x256xf32>
    %47 = arith.addf %27, %46 : vector<16x256xf32>
    %c2 = arith.constant 2 : index
    %c0_25 = arith.constant 0 : index
    %c0_26 = arith.constant 0 : index
    %48 = vector.load %arg5[%c2, %c0_25, %c0_26] : memref<9x1x256xf32, #tpu.memory_space<vmem>>, vector<1x1x256xf32>
    %49 = vector.shape_cast %48 : vector<1x1x256xf32> to vector<1x256xf32>
    %50 = vector.extract_strided_slice %2 {offsets = [0, 241], sizes = [4, 15], strides = [1, 1]} : vector<4x256xf32> to vector<4x15xf32>
    %51 = vector.extract_strided_slice %2 {offsets = [0, 0], sizes = [4, 241], strides = [1, 1]} : vector<4x256xf32> to vector<4x241xf32>
    %52 = tpu.concatenate %50, %51 in 1 : vector<4x15xf32>, vector<4x241xf32> -> vector<4x256xf32>
    %53 = vector.broadcast %49 : vector<1x256xf32> to vector<4x256xf32>
    %54 = arith.mulf %52, %53 : vector<4x256xf32>
    %55 = vector.extract_strided_slice %5 {offsets = [0, 241], sizes = [8, 15], strides = [1, 1]} : vector<8x256xf32> to vector<8x15xf32>
    %56 = vector.extract_strided_slice %5 {offsets = [0, 0], sizes = [8, 241], strides = [1, 1]} : vector<8x256xf32> to vector<8x241xf32>
    %57 = tpu.concatenate %55, %56 in 1 : vector<8x15xf32>, vector<8x241xf32> -> vector<8x256xf32>
    %58 = vector.broadcast %49 : vector<1x256xf32> to vector<8x256xf32>
    %59 = arith.mulf %57, %58 : vector<8x256xf32>
    %c2_27 = arith.constant 2 : index
    %c0_28 = arith.constant 0 : index
    %c0_29 = arith.constant 0 : index
    %60 = vector.load %arg3[%c2_27, %c0_28, %c0_29] : memref<9x16x4xf32, #tpu.memory_space<vmem>>, vector<1x16x4xf32>
    %61 = vector.shape_cast %60 : vector<1x16x4xf32> to vector<16x4xf32>
    %cst_30 = arith.constant dense<0.000000e+00> : vector<16x256xf32>
    %62 = tpu.matmul %61, %54, %cst_30 {dimension_numbers = #tpu.dot_dimension_numbers<[1], [0], [0], [1], [0, 0, 1, 1], [], []>} : vector<16x4xf32>, vector<4x256xf32>, vector<16x256xf32> -> vector<16x256xf32>
    %63 = arith.addf %43, %62 : vector<16x256xf32>
    %c2_31 = arith.constant 2 : index
    %c0_32 = arith.constant 0 : index
    %c0_33 = arith.constant 0 : index
    %64 = vector.load %arg4[%c2_31, %c0_32, %c0_33] : memref<9x16x8xf32, #tpu.memory_space<vmem>>, vector<1x16x8xf32>
    %65 = vector.shape_cast %64 : vector<1x16x8xf32> to vector<16x8xf32>
    %cst_34 = arith.constant dense<0.000000e+00> : vector<16x256xf32>
    %66 = tpu.matmul %65, %59, %cst_34 {dimension_numbers = #tpu.dot_dimension_numbers<[1], [0], [0], [1], [0, 0, 1, 1], [], []>} : vector<16x8xf32>, vector<8x256xf32>, vector<16x256xf32> -> vector<16x256xf32>
    %67 = arith.addf %47, %66 : vector<16x256xf32>
    %c3 = arith.constant 3 : index
    %c0_35 = arith.constant 0 : index
    %c0_36 = arith.constant 0 : index
    %68 = vector.load %arg5[%c3, %c0_35, %c0_36] : memref<9x1x256xf32, #tpu.memory_space<vmem>>, vector<1x1x256xf32>
    %69 = vector.shape_cast %68 : vector<1x1x256xf32> to vector<1x256xf32>
    %70 = vector.extract_strided_slice %2 {offsets = [0, 255], sizes = [4, 1], strides = [1, 1]} : vector<4x256xf32> to vector<4x1xf32>
    %71 = vector.extract_strided_slice %2 {offsets = [0, 0], sizes = [4, 255], strides = [1, 1]} : vector<4x256xf32> to vector<4x255xf32>
    %72 = tpu.concatenate %70, %71 in 1 : vector<4x1xf32>, vector<4x255xf32> -> vector<4x256xf32>
    %73 = vector.broadcast %69 : vector<1x256xf32> to vector<4x256xf32>
    %74 = arith.mulf %72, %73 : vector<4x256xf32>
    %75 = vector.extract_strided_slice %5 {offsets = [0, 255], sizes = [8, 1], strides = [1, 1]} : vector<8x256xf32> to vector<8x1xf32>
    %76 = vector.extract_strided_slice %5 {offsets = [0, 0], sizes = [8, 255], strides = [1, 1]} : vector<8x256xf32> to vector<8x255xf32>
    %77 = tpu.concatenate %75, %76 in 1 : vector<8x1xf32>, vector<8x255xf32> -> vector<8x256xf32>
    %78 = vector.broadcast %69 : vector<1x256xf32> to vector<8x256xf32>
    %79 = arith.mulf %77, %78 : vector<8x256xf32>
    %c3_37 = arith.constant 3 : index
    %c0_38 = arith.constant 0 : index
    %c0_39 = arith.constant 0 : index
    %80 = vector.load %arg3[%c3_37, %c0_38, %c0_39] : memref<9x16x4xf32, #tpu.memory_space<vmem>>, vector<1x16x4xf32>
    %81 = vector.shape_cast %80 : vector<1x16x4xf32> to vector<16x4xf32>
    %cst_40 = arith.constant dense<0.000000e+00> : vector<16x256xf32>
    %82 = tpu.matmul %81, %74, %cst_40 {dimension_numbers = #tpu.dot_dimension_numbers<[1], [0], [0], [1], [0, 0, 1, 1], [], []>} : vector<16x4xf32>, vector<4x256xf32>, vector<16x256xf32> -> vector<16x256xf32>
    %83 = arith.addf %63, %82 : vector<16x256xf32>
    %c3_41 = arith.constant 3 : index
    %c0_42 = arith.constant 0 : index
    %c0_43 = arith.constant 0 : index
    %84 = vector.load %arg4[%c3_41, %c0_42, %c0_43] : memref<9x16x8xf32, #tpu.memory_space<vmem>>, vector<1x16x8xf32>
    %85 = vector.shape_cast %84 : vector<1x16x8xf32> to vector<16x8xf32>
    %cst_44 = arith.constant dense<0.000000e+00> : vector<16x256xf32>
    %86 = tpu.matmul %85, %79, %cst_44 {dimension_numbers = #tpu.dot_dimension_numbers<[1], [0], [0], [1], [0, 0, 1, 1], [], []>} : vector<16x8xf32>, vector<8x256xf32>, vector<16x256xf32> -> vector<16x256xf32>
    %87 = arith.addf %67, %86 : vector<16x256xf32>
    %c4 = arith.constant 4 : index
    %c0_45 = arith.constant 0 : index
    %c0_46 = arith.constant 0 : index
    %88 = vector.load %arg3[%c4, %c0_45, %c0_46] : memref<9x16x4xf32, #tpu.memory_space<vmem>>, vector<1x16x4xf32>
    %89 = vector.shape_cast %88 : vector<1x16x4xf32> to vector<16x4xf32>
    %cst_47 = arith.constant dense<0.000000e+00> : vector<16x256xf32>
    %90 = tpu.matmul %89, %2, %cst_47 {dimension_numbers = #tpu.dot_dimension_numbers<[1], [0], [0], [1], [0, 0, 1, 1], [], []>} : vector<16x4xf32>, vector<4x256xf32>, vector<16x256xf32> -> vector<16x256xf32>
    %91 = arith.addf %83, %90 : vector<16x256xf32>
    %c4_48 = arith.constant 4 : index
    %c0_49 = arith.constant 0 : index
    %c0_50 = arith.constant 0 : index
    %92 = vector.load %arg4[%c4_48, %c0_49, %c0_50] : memref<9x16x8xf32, #tpu.memory_space<vmem>>, vector<1x16x8xf32>
    %93 = vector.shape_cast %92 : vector<1x16x8xf32> to vector<16x8xf32>
    %cst_51 = arith.constant dense<0.000000e+00> : vector<16x256xf32>
    %94 = tpu.matmul %93, %5, %cst_51 {dimension_numbers = #tpu.dot_dimension_numbers<[1], [0], [0], [1], [0, 0, 1, 1], [], []>} : vector<16x8xf32>, vector<8x256xf32>, vector<16x256xf32> -> vector<16x256xf32>
    %95 = arith.addf %87, %94 : vector<16x256xf32>
    %c5 = arith.constant 5 : index
    %c0_52 = arith.constant 0 : index
    %c0_53 = arith.constant 0 : index
    %96 = vector.load %arg5[%c5, %c0_52, %c0_53] : memref<9x1x256xf32, #tpu.memory_space<vmem>>, vector<1x1x256xf32>
    %97 = vector.shape_cast %96 : vector<1x1x256xf32> to vector<1x256xf32>
    %98 = vector.extract_strided_slice %2 {offsets = [0, 1], sizes = [4, 255], strides = [1, 1]} : vector<4x256xf32> to vector<4x255xf32>
    %99 = vector.extract_strided_slice %2 {offsets = [0, 0], sizes = [4, 1], strides = [1, 1]} : vector<4x256xf32> to vector<4x1xf32>
    %100 = tpu.concatenate %98, %99 in 1 : vector<4x255xf32>, vector<4x1xf32> -> vector<4x256xf32>
    %101 = vector.broadcast %97 : vector<1x256xf32> to vector<4x256xf32>
    %102 = arith.mulf %100, %101 : vector<4x256xf32>
    %103 = vector.extract_strided_slice %5 {offsets = [0, 1], sizes = [8, 255], strides = [1, 1]} : vector<8x256xf32> to vector<8x255xf32>
    %104 = vector.extract_strided_slice %5 {offsets = [0, 0], sizes = [8, 1], strides = [1, 1]} : vector<8x256xf32> to vector<8x1xf32>
    %105 = tpu.concatenate %103, %104 in 1 : vector<8x255xf32>, vector<8x1xf32> -> vector<8x256xf32>
    %106 = vector.broadcast %97 : vector<1x256xf32> to vector<8x256xf32>
    %107 = arith.mulf %105, %106 : vector<8x256xf32>
    %c5_54 = arith.constant 5 : index
    %c0_55 = arith.constant 0 : index
    %c0_56 = arith.constant 0 : index
    %108 = vector.load %arg3[%c5_54, %c0_55, %c0_56] : memref<9x16x4xf32, #tpu.memory_space<vmem>>, vector<1x16x4xf32>
    %109 = vector.shape_cast %108 : vector<1x16x4xf32> to vector<16x4xf32>
    %cst_57 = arith.constant dense<0.000000e+00> : vector<16x256xf32>
    %110 = tpu.matmul %109, %102, %cst_57 {dimension_numbers = #tpu.dot_dimension_numbers<[1], [0], [0], [1], [0, 0, 1, 1], [], []>} : vector<16x4xf32>, vector<4x256xf32>, vector<16x256xf32> -> vector<16x256xf32>
    %111 = arith.addf %91, %110 : vector<16x256xf32>
    %c5_58 = arith.constant 5 : index
    %c0_59 = arith.constant 0 : index
    %c0_60 = arith.constant 0 : index
    %112 = vector.load %arg4[%c5_58, %c0_59, %c0_60] : memref<9x16x8xf32, #tpu.memory_space<vmem>>, vector<1x16x8xf32>
    %113 = vector.shape_cast %112 : vector<1x16x8xf32> to vector<16x8xf32>
    %cst_61 = arith.constant dense<0.000000e+00> : vector<16x256xf32>
    %114 = tpu.matmul %113, %107, %cst_61 {dimension_numbers = #tpu.dot_dimension_numbers<[1], [0], [0], [1], [0, 0, 1, 1], [], []>} : vector<16x8xf32>, vector<8x256xf32>, vector<16x256xf32> -> vector<16x256xf32>
    %115 = arith.addf %95, %114 : vector<16x256xf32>
    %c6 = arith.constant 6 : index
    %c0_62 = arith.constant 0 : index
    %c0_63 = arith.constant 0 : index
    %116 = vector.load %arg5[%c6, %c0_62, %c0_63] : memref<9x1x256xf32, #tpu.memory_space<vmem>>, vector<1x1x256xf32>
    %117 = vector.shape_cast %116 : vector<1x1x256xf32> to vector<1x256xf32>
    %118 = vector.extract_strided_slice %2 {offsets = [0, 15], sizes = [4, 241], strides = [1, 1]} : vector<4x256xf32> to vector<4x241xf32>
    %119 = vector.extract_strided_slice %2 {offsets = [0, 0], sizes = [4, 15], strides = [1, 1]} : vector<4x256xf32> to vector<4x15xf32>
    %120 = tpu.concatenate %118, %119 in 1 : vector<4x241xf32>, vector<4x15xf32> -> vector<4x256xf32>
    %121 = vector.broadcast %117 : vector<1x256xf32> to vector<4x256xf32>
    %122 = arith.mulf %120, %121 : vector<4x256xf32>
    %123 = vector.extract_strided_slice %5 {offsets = [0, 15], sizes = [8, 241], strides = [1, 1]} : vector<8x256xf32> to vector<8x241xf32>
    %124 = vector.extract_strided_slice %5 {offsets = [0, 0], sizes = [8, 15], strides = [1, 1]} : vector<8x256xf32> to vector<8x15xf32>
    %125 = tpu.concatenate %123, %124 in 1 : vector<8x241xf32>, vector<8x15xf32> -> vector<8x256xf32>
    %126 = vector.broadcast %117 : vector<1x256xf32> to vector<8x256xf32>
    %127 = arith.mulf %125, %126 : vector<8x256xf32>
    %c6_64 = arith.constant 6 : index
    %c0_65 = arith.constant 0 : index
    %c0_66 = arith.constant 0 : index
    %128 = vector.load %arg3[%c6_64, %c0_65, %c0_66] : memref<9x16x4xf32, #tpu.memory_space<vmem>>, vector<1x16x4xf32>
    %129 = vector.shape_cast %128 : vector<1x16x4xf32> to vector<16x4xf32>
    %cst_67 = arith.constant dense<0.000000e+00> : vector<16x256xf32>
    %130 = tpu.matmul %129, %122, %cst_67 {dimension_numbers = #tpu.dot_dimension_numbers<[1], [0], [0], [1], [0, 0, 1, 1], [], []>} : vector<16x4xf32>, vector<4x256xf32>, vector<16x256xf32> -> vector<16x256xf32>
    %131 = arith.addf %111, %130 : vector<16x256xf32>
    %c6_68 = arith.constant 6 : index
    %c0_69 = arith.constant 0 : index
    %c0_70 = arith.constant 0 : index
    %132 = vector.load %arg4[%c6_68, %c0_69, %c0_70] : memref<9x16x8xf32, #tpu.memory_space<vmem>>, vector<1x16x8xf32>
    %133 = vector.shape_cast %132 : vector<1x16x8xf32> to vector<16x8xf32>
    %cst_71 = arith.constant dense<0.000000e+00> : vector<16x256xf32>
    %134 = tpu.matmul %133, %127, %cst_71 {dimension_numbers = #tpu.dot_dimension_numbers<[1], [0], [0], [1], [0, 0, 1, 1], [], []>} : vector<16x8xf32>, vector<8x256xf32>, vector<16x256xf32> -> vector<16x256xf32>
    %135 = arith.addf %115, %134 : vector<16x256xf32>
    %c7 = arith.constant 7 : index
    %c0_72 = arith.constant 0 : index
    %c0_73 = arith.constant 0 : index
    %136 = vector.load %arg5[%c7, %c0_72, %c0_73] : memref<9x1x256xf32, #tpu.memory_space<vmem>>, vector<1x1x256xf32>
    %137 = vector.shape_cast %136 : vector<1x1x256xf32> to vector<1x256xf32>
    %138 = vector.extract_strided_slice %2 {offsets = [0, 16], sizes = [4, 240], strides = [1, 1]} : vector<4x256xf32> to vector<4x240xf32>
    %139 = vector.extract_strided_slice %2 {offsets = [0, 0], sizes = [4, 16], strides = [1, 1]} : vector<4x256xf32> to vector<4x16xf32>
    %140 = tpu.concatenate %138, %139 in 1 : vector<4x240xf32>, vector<4x16xf32> -> vector<4x256xf32>
    %141 = vector.broadcast %137 : vector<1x256xf32> to vector<4x256xf32>
    %142 = arith.mulf %140, %141 : vector<4x256xf32>
    %143 = vector.extract_strided_slice %5 {offsets = [0, 16], sizes = [8, 240], strides = [1, 1]} : vector<8x256xf32> to vector<8x240xf32>
    %144 = vector.extract_strided_slice %5 {offsets = [0, 0], sizes = [8, 16], strides = [1, 1]} : vector<8x256xf32> to vector<8x16xf32>
    %145 = tpu.concatenate %143, %144 in 1 : vector<8x240xf32>, vector<8x16xf32> -> vector<8x256xf32>
    %146 = vector.broadcast %137 : vector<1x256xf32> to vector<8x256xf32>
    %147 = arith.mulf %145, %146 : vector<8x256xf32>
    %c7_74 = arith.constant 7 : index
    %c0_75 = arith.constant 0 : index
    %c0_76 = arith.constant 0 : index
    %148 = vector.load %arg3[%c7_74, %c0_75, %c0_76] : memref<9x16x4xf32, #tpu.memory_space<vmem>>, vector<1x16x4xf32>
    %149 = vector.shape_cast %148 : vector<1x16x4xf32> to vector<16x4xf32>
    %cst_77 = arith.constant dense<0.000000e+00> : vector<16x256xf32>
    %150 = tpu.matmul %149, %142, %cst_77 {dimension_numbers = #tpu.dot_dimension_numbers<[1], [0], [0], [1], [0, 0, 1, 1], [], []>} : vector<16x4xf32>, vector<4x256xf32>, vector<16x256xf32> -> vector<16x256xf32>
    %151 = arith.addf %131, %150 : vector<16x256xf32>
    %c7_78 = arith.constant 7 : index
    %c0_79 = arith.constant 0 : index
    %c0_80 = arith.constant 0 : index
    %152 = vector.load %arg4[%c7_78, %c0_79, %c0_80] : memref<9x16x8xf32, #tpu.memory_space<vmem>>, vector<1x16x8xf32>
    %153 = vector.shape_cast %152 : vector<1x16x8xf32> to vector<16x8xf32>
    %cst_81 = arith.constant dense<0.000000e+00> : vector<16x256xf32>
    %154 = tpu.matmul %153, %147, %cst_81 {dimension_numbers = #tpu.dot_dimension_numbers<[1], [0], [0], [1], [0, 0, 1, 1], [], []>} : vector<16x8xf32>, vector<8x256xf32>, vector<16x256xf32> -> vector<16x256xf32>
    %155 = arith.addf %135, %154 : vector<16x256xf32>
    %c8 = arith.constant 8 : index
    %c0_82 = arith.constant 0 : index
    %c0_83 = arith.constant 0 : index
    %156 = vector.load %arg5[%c8, %c0_82, %c0_83] : memref<9x1x256xf32, #tpu.memory_space<vmem>>, vector<1x1x256xf32>
    %157 = vector.shape_cast %156 : vector<1x1x256xf32> to vector<1x256xf32>
    %158 = vector.extract_strided_slice %2 {offsets = [0, 17], sizes = [4, 239], strides = [1, 1]} : vector<4x256xf32> to vector<4x239xf32>
    %159 = vector.extract_strided_slice %2 {offsets = [0, 0], sizes = [4, 17], strides = [1, 1]} : vector<4x256xf32> to vector<4x17xf32>
    %160 = tpu.concatenate %158, %159 in 1 : vector<4x239xf32>, vector<4x17xf32> -> vector<4x256xf32>
    %161 = vector.broadcast %157 : vector<1x256xf32> to vector<4x256xf32>
    %162 = arith.mulf %160, %161 : vector<4x256xf32>
    %163 = vector.extract_strided_slice %5 {offsets = [0, 17], sizes = [8, 239], strides = [1, 1]} : vector<8x256xf32> to vector<8x239xf32>
    %164 = vector.extract_strided_slice %5 {offsets = [0, 0], sizes = [8, 17], strides = [1, 1]} : vector<8x256xf32> to vector<8x17xf32>
    %165 = tpu.concatenate %163, %164 in 1 : vector<8x239xf32>, vector<8x17xf32> -> vector<8x256xf32>
    %166 = vector.broadcast %157 : vector<1x256xf32> to vector<8x256xf32>
    %167 = arith.mulf %165, %166 : vector<8x256xf32>
    %c8_84 = arith.constant 8 : index
    %c0_85 = arith.constant 0 : index
    %c0_86 = arith.constant 0 : index
    %168 = vector.load %arg3[%c8_84, %c0_85, %c0_86] : memref<9x16x4xf32, #tpu.memory_space<vmem>>, vector<1x16x4xf32>
    %169 = vector.shape_cast %168 : vector<1x16x4xf32> to vector<16x4xf32>
    %cst_87 = arith.constant dense<0.000000e+00> : vector<16x256xf32>
    %170 = tpu.matmul %169, %162, %cst_87 {dimension_numbers = #tpu.dot_dimension_numbers<[1], [0], [0], [1], [0, 0, 1, 1], [], []>} : vector<16x4xf32>, vector<4x256xf32>, vector<16x256xf32> -> vector<16x256xf32>
    %171 = arith.addf %151, %170 : vector<16x256xf32>
    %c8_88 = arith.constant 8 : index
    %c0_89 = arith.constant 0 : index
    %c0_90 = arith.constant 0 : index
    %172 = vector.load %arg4[%c8_88, %c0_89, %c0_90] : memref<9x16x8xf32, #tpu.memory_space<vmem>>, vector<1x16x8xf32>
    %173 = vector.shape_cast %172 : vector<1x16x8xf32> to vector<16x8xf32>
    %cst_91 = arith.constant dense<0.000000e+00> : vector<16x256xf32>
    %174 = tpu.matmul %173, %167, %cst_91 {dimension_numbers = #tpu.dot_dimension_numbers<[1], [0], [0], [1], [0, 0, 1, 1], [], []>} : vector<16x8xf32>, vector<8x256xf32>, vector<16x256xf32> -> vector<16x256xf32>
    %175 = arith.addf %155, %174 : vector<16x256xf32>
    %176 = vector.shape_cast %171 : vector<16x256xf32> to vector<1x16x256xf32>
    %cst_92 = arith.constant dense<0.000000e+00> : vector<1xf32>
    %177 = vector.multi_reduction <add>, %176, %cst_92 [1, 2] : vector<1x16x256xf32> to vector<1xf32>
    %178 = vector.shape_cast %177 : vector<1xf32> to vector<1x1x1xf32>
    %179 = vector.extract %178[0, 0, 0] : f32 from vector<1x1x1xf32>
    %cst_93 = arith.constant 2.44140625E-4 : f32
    %180 = arith.mulf %179, %cst_93 : f32
    %181 = vector.broadcast %180 : f32 to vector<16x256xf32>
    %182 = arith.subf %171, %181 : vector<16x256xf32>
    %183 = arith.mulf %182, %182 : vector<16x256xf32>
    %184 = vector.shape_cast %183 : vector<16x256xf32> to vector<1x16x256xf32>
    %cst_94 = arith.constant dense<0.000000e+00> : vector<1xf32>
    %185 = vector.multi_reduction <add>, %184, %cst_94 [1, 2] : vector<1x16x256xf32> to vector<1xf32>
    %186 = vector.shape_cast %185 : vector<1xf32> to vector<1x1x1xf32>
    %187 = vector.extract %186[0, 0, 0] : f32 from vector<1x1x1xf32>
    %cst_95 = arith.constant 2.44140625E-4 : f32
    %188 = arith.mulf %187, %cst_95 : f32
    %cst_96 = arith.constant 9.99999974E-6 : f32
    %189 = arith.addf %188, %cst_96 : f32
    %190 = math.rsqrt %189 : f32
    %191 = vector.broadcast %190 : f32 to vector<16x256xf32>
    %192 = arith.mulf %182, %191 : vector<16x256xf32>
    %193 = vector.shape_cast %175 : vector<16x256xf32> to vector<1x16x256xf32>
    %cst_97 = arith.constant dense<0.000000e+00> : vector<1xf32>
    %194 = vector.multi_reduction <add>, %193, %cst_97 [1, 2] : vector<1x16x256xf32> to vector<1xf32>
    %195 = vector.shape_cast %194 : vector<1xf32> to vector<1x1x1xf32>
    %196 = vector.extract %195[0, 0, 0] : f32 from vector<1x1x1xf32>
    %cst_98 = arith.constant 2.44140625E-4 : f32
    %197 = arith.mulf %196, %cst_98 : f32
    %198 = vector.broadcast %197 : f32 to vector<16x256xf32>
    %199 = arith.subf %175, %198 : vector<16x256xf32>
    %200 = arith.mulf %199, %199 : vector<16x256xf32>
    %201 = vector.shape_cast %200 : vector<16x256xf32> to vector<1x16x256xf32>
    %cst_99 = arith.constant dense<0.000000e+00> : vector<1xf32>
    %202 = vector.multi_reduction <add>, %201, %cst_99 [1, 2] : vector<1x16x256xf32> to vector<1xf32>
    %203 = vector.shape_cast %202 : vector<1xf32> to vector<1x1x1xf32>
    %204 = vector.extract %203[0, 0, 0] : f32 from vector<1x1x1xf32>
    %cst_100 = arith.constant 2.44140625E-4 : f32
    %205 = arith.mulf %204, %cst_100 : f32
    %cst_101 = arith.constant 9.99999974E-6 : f32
    %206 = arith.addf %205, %cst_101 : f32
    %207 = math.rsqrt %206 : f32
    %208 = vector.broadcast %207 : f32 to vector<16x256xf32>
    %209 = arith.mulf %199, %208 : vector<16x256xf32>
    %210 = vector.extract_strided_slice %192 {offsets = [0, 0], sizes = [8, 256], strides = [1, 1]} : vector<16x256xf32> to vector<8x256xf32>
    %211 = vector.extract_strided_slice %209 {offsets = [0, 0], sizes = [8, 256], strides = [1, 1]} : vector<16x256xf32> to vector<8x256xf32>
    %212 = arith.addf %210, %211 : vector<8x256xf32>
    %213 = math.tanh %212 : vector<8x256xf32>
    %214 = vector.extract_strided_slice %192 {offsets = [8, 0], sizes = [8, 256], strides = [1, 1]} : vector<16x256xf32> to vector<8x256xf32>
    %215 = vector.extract_strided_slice %209 {offsets = [8, 0], sizes = [8, 256], strides = [1, 1]} : vector<16x256xf32> to vector<8x256xf32>
    %216 = arith.addf %214, %215 : vector<8x256xf32>
    %217 = arith.negf %216 : vector<8x256xf32>
    %218 = math.exp %217 : vector<8x256xf32>
    %cst_102 = arith.constant 1.000000e+00 : f32
    %219 = vector.broadcast %cst_102 : f32 to vector<8x256xf32>
    %220 = arith.addf %219, %218 : vector<8x256xf32>
    %221 = arith.divf %219, %220 : vector<8x256xf32>
    %222 = arith.subf %213, %5 : vector<8x256xf32>
    %223 = arith.mulf %221, %222 : vector<8x256xf32>
    %224 = arith.addf %5, %223 : vector<8x256xf32>
    %225 = arith.index_cast %c0_i32 : i32 to index
    %c0_103 = arith.constant 0 : index
    %c0_104 = arith.constant 0 : index
    %226 = vector.load %arg6[%225, %c0_103, %c0_104] : memref<2x8x256xf32, #tpu.memory_space<vmem>>, vector<1x8x256xf32>
    %227 = vector.shape_cast %226 : vector<1x8x256xf32> to vector<8x256xf32>
    %228 = vector.shape_cast %224 : vector<8x256xf32> to vector<1x8x256xf32>
    tpu.vector_store %arg6[%225, %c0_103, %c0_104], %228 {strides = array<i32>} : memref<2x8x256xf32, #tpu.memory_space<vmem>>, vector<1x8x256xf32>,
    %c1_i32 = arith.constant 1 : i32
    %229 = arith.index_cast %c1_i32 : i32 to index
    %c0_105 = arith.constant 0 : index
    %c0_106 = arith.constant 0 : index
    %230 = vector.load %arg1[%229, %c0_105, %c0_106] : memref<2x4x256xf32, #tpu.memory_space<vmem>>, vector<1x4x256xf32>
    %231 = vector.shape_cast %230 : vector<1x4x256xf32> to vector<4x256xf32>
    %232 = arith.index_cast %c1_i32 : i32 to index
    %c0_107 = arith.constant 0 : index
    %c0_108 = arith.constant 0 : index
    %233 = vector.load %arg2[%232, %c0_107, %c0_108] : memref<2x8x256xf32, #tpu.memory_space<vmem>>, vector<1x8x256xf32>
    %234 = vector.shape_cast %233 : vector<1x8x256xf32> to vector<8x256xf32>
    %cst_109 = arith.constant 0.000000e+00 : f32
    %235 = vector.broadcast %cst_109 : f32 to vector<16x256xf32>
    %cst_110 = arith.constant 0.000000e+00 : f32
    %236 = vector.broadcast %cst_110 : f32 to vector<16x256xf32>
    %c0_111 = arith.constant 0 : index
    %c0_112 = arith.constant 0 : index
    %c0_113 = arith.constant 0 : index
    %237 = vector.load %arg5[%c0_111, %c0_112, %c0_113] : memref<9x1x256xf32, #tpu.memory_space<vmem>>, vector<1x1x256xf32>
    %238 = vector.shape_cast %237 : vector<1x1x256xf32> to vector<1x256xf32>
    %239 = vector.extract_strided_slice %231 {offsets = [0, 239], sizes = [4, 17], strides = [1, 1]} : vector<4x256xf32> to vector<4x17xf32>
    %240 = vector.extract_strided_slice %231 {offsets = [0, 0], sizes = [4, 239], strides = [1, 1]} : vector<4x256xf32> to vector<4x239xf32>
    %241 = tpu.concatenate %239, %240 in 1 : vector<4x17xf32>, vector<4x239xf32> -> vector<4x256xf32>
    %242 = vector.broadcast %238 : vector<1x256xf32> to vector<4x256xf32>
    %243 = arith.mulf %241, %242 : vector<4x256xf32>
    %244 = vector.extract_strided_slice %234 {offsets = [0, 239], sizes = [8, 17], strides = [1, 1]} : vector<8x256xf32> to vector<8x17xf32>
    %245 = vector.extract_strided_slice %234 {offsets = [0, 0], sizes = [8, 239], strides = [1, 1]} : vector<8x256xf32> to vector<8x239xf32>
    %246 = tpu.concatenate %244, %245 in 1 : vector<8x17xf32>, vector<8x239xf32> -> vector<8x256xf32>
    %247 = vector.broadcast %238 : vector<1x256xf32> to vector<8x256xf32>
    %248 = arith.mulf %246, %247 : vector<8x256xf32>
    %c0_114 = arith.constant 0 : index
    %c0_115 = arith.constant 0 : index
    %c0_116 = arith.constant 0 : index
    %249 = vector.load %arg3[%c0_114, %c0_115, %c0_116] : memref<9x16x4xf32, #tpu.memory_space<vmem>>, vector<1x16x4xf32>
    %250 = vector.shape_cast %249 : vector<1x16x4xf32> to vector<16x4xf32>
    %cst_117 = arith.constant dense<0.000000e+00> : vector<16x256xf32>
    %251 = tpu.matmul %250, %243, %cst_117 {dimension_numbers = #tpu.dot_dimension_numbers<[1], [0], [0], [1], [0, 0, 1, 1], [], []>} : vector<16x4xf32>, vector<4x256xf32>, vector<16x256xf32> -> vector<16x256xf32>
    %252 = arith.addf %235, %251 : vector<16x256xf32>
    %c0_118 = arith.constant 0 : index
    %c0_119 = arith.constant 0 : index
    %c0_120 = arith.constant 0 : index
    %253 = vector.load %arg4[%c0_118, %c0_119, %c0_120] : memref<9x16x8xf32, #tpu.memory_space<vmem>>, vector<1x16x8xf32>
    %254 = vector.shape_cast %253 : vector<1x16x8xf32> to vector<16x8xf32>
    %cst_121 = arith.constant dense<0.000000e+00> : vector<16x256xf32>
    %255 = tpu.matmul %254, %248, %cst_121 {dimension_numbers = #tpu.dot_dimension_numbers<[1], [0], [0], [1], [0, 0, 1, 1], [], []>} : vector<16x8xf32>, vector<8x256xf32>, vector<16x256xf32> -> vector<16x256xf32>
    %256 = arith.addf %236, %255 : vector<16x256xf32>
    %c1_122 = arith.constant 1 : index
    %c0_123 = arith.constant 0 : index
    %c0_124 = arith.constant 0 : index
    %257 = vector.load %arg5[%c1_122, %c0_123, %c0_124] : memref<9x1x256xf32, #tpu.memory_space<vmem>>, vector<1x1x256xf32>
    %258 = vector.shape_cast %257 : vector<1x1x256xf32> to vector<1x256xf32>
    %259 = vector.extract_strided_slice %231 {offsets = [0, 240], sizes = [4, 16], strides = [1, 1]} : vector<4x256xf32> to vector<4x16xf32>
    %260 = vector.extract_strided_slice %231 {offsets = [0, 0], sizes = [4, 240], strides = [1, 1]} : vector<4x256xf32> to vector<4x240xf32>
    %261 = tpu.concatenate %259, %260 in 1 : vector<4x16xf32>, vector<4x240xf32> -> vector<4x256xf32>
    %262 = vector.broadcast %258 : vector<1x256xf32> to vector<4x256xf32>
    %263 = arith.mulf %261, %262 : vector<4x256xf32>
    %264 = vector.extract_strided_slice %234 {offsets = [0, 240], sizes = [8, 16], strides = [1, 1]} : vector<8x256xf32> to vector<8x16xf32>
    %265 = vector.extract_strided_slice %234 {offsets = [0, 0], sizes = [8, 240], strides = [1, 1]} : vector<8x256xf32> to vector<8x240xf32>
    %266 = tpu.concatenate %264, %265 in 1 : vector<8x16xf32>, vector<8x240xf32> -> vector<8x256xf32>
    %267 = vector.broadcast %258 : vector<1x256xf32> to vector<8x256xf32>
    %268 = arith.mulf %266, %267 : vector<8x256xf32>
    %c1_125 = arith.constant 1 : index
    %c0_126 = arith.constant 0 : index
    %c0_127 = arith.constant 0 : index
    %269 = vector.load %arg3[%c1_125, %c0_126, %c0_127] : memref<9x16x4xf32, #tpu.memory_space<vmem>>, vector<1x16x4xf32>
    %270 = vector.shape_cast %269 : vector<1x16x4xf32> to vector<16x4xf32>
    %cst_128 = arith.constant dense<0.000000e+00> : vector<16x256xf32>
    %271 = tpu.matmul %270, %263, %cst_128 {dimension_numbers = #tpu.dot_dimension_numbers<[1], [0], [0], [1], [0, 0, 1, 1], [], []>} : vector<16x4xf32>, vector<4x256xf32>, vector<16x256xf32> -> vector<16x256xf32>
    %272 = arith.addf %252, %271 : vector<16x256xf32>
    %c1_129 = arith.constant 1 : index
    %c0_130 = arith.constant 0 : index
    %c0_131 = arith.constant 0 : index
    %273 = vector.load %arg4[%c1_129, %c0_130, %c0_131] : memref<9x16x8xf32, #tpu.memory_space<vmem>>, vector<1x16x8xf32>
    %274 = vector.shape_cast %273 : vector<1x16x8xf32> to vector<16x8xf32>
    %cst_132 = arith.constant dense<0.000000e+00> : vector<16x256xf32>
    %275 = tpu.matmul %274, %268, %cst_132 {dimension_numbers = #tpu.dot_dimension_numbers<[1], [0], [0], [1], [0, 0, 1, 1], [], []>} : vector<16x8xf32>, vector<8x256xf32>, vector<16x256xf32> -> vector<16x256xf32>
    %276 = arith.addf %256, %275 : vector<16x256xf32>
    %c2_133 = arith.constant 2 : index
    %c0_134 = arith.constant 0 : index
    %c0_135 = arith.constant 0 : index
    %277 = vector.load %arg5[%c2_133, %c0_134, %c0_135] : memref<9x1x256xf32, #tpu.memory_space<vmem>>, vector<1x1x256xf32>
    %278 = vector.shape_cast %277 : vector<1x1x256xf32> to vector<1x256xf32>
    %279 = vector.extract_strided_slice %231 {offsets = [0, 241], sizes = [4, 15], strides = [1, 1]} : vector<4x256xf32> to vector<4x15xf32>
    %280 = vector.extract_strided_slice %231 {offsets = [0, 0], sizes = [4, 241], strides = [1, 1]} : vector<4x256xf32> to vector<4x241xf32>
    %281 = tpu.concatenate %279, %280 in 1 : vector<4x15xf32>, vector<4x241xf32> -> vector<4x256xf32>
    %282 = vector.broadcast %278 : vector<1x256xf32> to vector<4x256xf32>
    %283 = arith.mulf %281, %282 : vector<4x256xf32>
    %284 = vector.extract_strided_slice %234 {offsets = [0, 241], sizes = [8, 15], strides = [1, 1]} : vector<8x256xf32> to vector<8x15xf32>
    %285 = vector.extract_strided_slice %234 {offsets = [0, 0], sizes = [8, 241], strides = [1, 1]} : vector<8x256xf32> to vector<8x241xf32>
    %286 = tpu.concatenate %284, %285 in 1 : vector<8x15xf32>, vector<8x241xf32> -> vector<8x256xf32>
    %287 = vector.broadcast %278 : vector<1x256xf32> to vector<8x256xf32>
    %288 = arith.mulf %286, %287 : vector<8x256xf32>
    %c2_136 = arith.constant 2 : index
    %c0_137 = arith.constant 0 : index
    %c0_138 = arith.constant 0 : index
    %289 = vector.load %arg3[%c2_136, %c0_137, %c0_138] : memref<9x16x4xf32, #tpu.memory_space<vmem>>, vector<1x16x4xf32>
    %290 = vector.shape_cast %289 : vector<1x16x4xf32> to vector<16x4xf32>
    %cst_139 = arith.constant dense<0.000000e+00> : vector<16x256xf32>
    %291 = tpu.matmul %290, %283, %cst_139 {dimension_numbers = #tpu.dot_dimension_numbers<[1], [0], [0], [1], [0, 0, 1, 1], [], []>} : vector<16x4xf32>, vector<4x256xf32>, vector<16x256xf32> -> vector<16x256xf32>
    %292 = arith.addf %272, %291 : vector<16x256xf32>
    %c2_140 = arith.constant 2 : index
    %c0_141 = arith.constant 0 : index
    %c0_142 = arith.constant 0 : index
    %293 = vector.load %arg4[%c2_140, %c0_141, %c0_142] : memref<9x16x8xf32, #tpu.memory_space<vmem>>, vector<1x16x8xf32>
    %294 = vector.shape_cast %293 : vector<1x16x8xf32> to vector<16x8xf32>
    %cst_143 = arith.constant dense<0.000000e+00> : vector<16x256xf32>
    %295 = tpu.matmul %294, %288, %cst_143 {dimension_numbers = #tpu.dot_dimension_numbers<[1], [0], [0], [1], [0, 0, 1, 1], [], []>} : vector<16x8xf32>, vector<8x256xf32>, vector<16x256xf32> -> vector<16x256xf32>
    %296 = arith.addf %276, %295 : vector<16x256xf32>
    %c3_144 = arith.constant 3 : index
    %c0_145 = arith.constant 0 : index
    %c0_146 = arith.constant 0 : index
    %297 = vector.load %arg5[%c3_144, %c0_145, %c0_146] : memref<9x1x256xf32, #tpu.memory_space<vmem>>, vector<1x1x256xf32>
    %298 = vector.shape_cast %297 : vector<1x1x256xf32> to vector<1x256xf32>
    %299 = vector.extract_strided_slice %231 {offsets = [0, 255], sizes = [4, 1], strides = [1, 1]} : vector<4x256xf32> to vector<4x1xf32>
    %300 = vector.extract_strided_slice %231 {offsets = [0, 0], sizes = [4, 255], strides = [1, 1]} : vector<4x256xf32> to vector<4x255xf32>
    %301 = tpu.concatenate %299, %300 in 1 : vector<4x1xf32>, vector<4x255xf32> -> vector<4x256xf32>
    %302 = vector.broadcast %298 : vector<1x256xf32> to vector<4x256xf32>
    %303 = arith.mulf %301, %302 : vector<4x256xf32>
    %304 = vector.extract_strided_slice %234 {offsets = [0, 255], sizes = [8, 1], strides = [1, 1]} : vector<8x256xf32> to vector<8x1xf32>
    %305 = vector.extract_strided_slice %234 {offsets = [0, 0], sizes = [8, 255], strides = [1, 1]} : vector<8x256xf32> to vector<8x255xf32>
    %306 = tpu.concatenate %304, %305 in 1 : vector<8x1xf32>, vector<8x255xf32> -> vector<8x256xf32>
    %307 = vector.broadcast %298 : vector<1x256xf32> to vector<8x256xf32>
    %308 = arith.mulf %306, %307 : vector<8x256xf32>
    %c3_147 = arith.constant 3 : index
    %c0_148 = arith.constant 0 : index
    %c0_149 = arith.constant 0 : index
    %309 = vector.load %arg3[%c3_147, %c0_148, %c0_149] : memref<9x16x4xf32, #tpu.memory_space<vmem>>, vector<1x16x4xf32>
    %310 = vector.shape_cast %309 : vector<1x16x4xf32> to vector<16x4xf32>
    %cst_150 = arith.constant dense<0.000000e+00> : vector<16x256xf32>
    %311 = tpu.matmul %310, %303, %cst_150 {dimension_numbers = #tpu.dot_dimension_numbers<[1], [0], [0], [1], [0, 0, 1, 1], [], []>} : vector<16x4xf32>, vector<4x256xf32>, vector<16x256xf32> -> vector<16x256xf32>
    %312 = arith.addf %292, %311 : vector<16x256xf32>
    %c3_151 = arith.constant 3 : index
    %c0_152 = arith.constant 0 : index
    %c0_153 = arith.constant 0 : index
    %313 = vector.load %arg4[%c3_151, %c0_152, %c0_153] : memref<9x16x8xf32, #tpu.memory_space<vmem>>, vector<1x16x8xf32>
    %314 = vector.shape_cast %313 : vector<1x16x8xf32> to vector<16x8xf32>
    %cst_154 = arith.constant dense<0.000000e+00> : vector<16x256xf32>
    %315 = tpu.matmul %314, %308, %cst_154 {dimension_numbers = #tpu.dot_dimension_numbers<[1], [0], [0], [1], [0, 0, 1, 1], [], []>} : vector<16x8xf32>, vector<8x256xf32>, vector<16x256xf32> -> vector<16x256xf32>
    %316 = arith.addf %296, %315 : vector<16x256xf32>
    %c4_155 = arith.constant 4 : index
    %c0_156 = arith.constant 0 : index
    %c0_157 = arith.constant 0 : index
    %317 = vector.load %arg3[%c4_155, %c0_156, %c0_157] : memref<9x16x4xf32, #tpu.memory_space<vmem>>, vector<1x16x4xf32>
    %318 = vector.shape_cast %317 : vector<1x16x4xf32> to vector<16x4xf32>
    %cst_158 = arith.constant dense<0.000000e+00> : vector<16x256xf32>
    %319 = tpu.matmul %318, %231, %cst_158 {dimension_numbers = #tpu.dot_dimension_numbers<[1], [0], [0], [1], [0, 0, 1, 1], [], []>} : vector<16x4xf32>, vector<4x256xf32>, vector<16x256xf32> -> vector<16x256xf32>
    %320 = arith.addf %312, %319 : vector<16x256xf32>
    %c4_159 = arith.constant 4 : index
    %c0_160 = arith.constant 0 : index
    %c0_161 = arith.constant 0 : index
    %321 = vector.load %arg4[%c4_159, %c0_160, %c0_161] : memref<9x16x8xf32, #tpu.memory_space<vmem>>, vector<1x16x8xf32>
    %322 = vector.shape_cast %321 : vector<1x16x8xf32> to vector<16x8xf32>
    %cst_162 = arith.constant dense<0.000000e+00> : vector<16x256xf32>
    %323 = tpu.matmul %322, %234, %cst_162 {dimension_numbers = #tpu.dot_dimension_numbers<[1], [0], [0], [1], [0, 0, 1, 1], [], []>} : vector<16x8xf32>, vector<8x256xf32>, vector<16x256xf32> -> vector<16x256xf32>
    %324 = arith.addf %316, %323 : vector<16x256xf32>
    %c5_163 = arith.constant 5 : index
    %c0_164 = arith.constant 0 : index
    %c0_165 = arith.constant 0 : index
    %325 = vector.load %arg5[%c5_163, %c0_164, %c0_165] : memref<9x1x256xf32, #tpu.memory_space<vmem>>, vector<1x1x256xf32>
    %326 = vector.shape_cast %325 : vector<1x1x256xf32> to vector<1x256xf32>
    %327 = vector.extract_strided_slice %231 {offsets = [0, 1], sizes = [4, 255], strides = [1, 1]} : vector<4x256xf32> to vector<4x255xf32>
    %328 = vector.extract_strided_slice %231 {offsets = [0, 0], sizes = [4, 1], strides = [1, 1]} : vector<4x256xf32> to vector<4x1xf32>
    %329 = tpu.concatenate %327, %328 in 1 : vector<4x255xf32>, vector<4x1xf32> -> vector<4x256xf32>
    %330 = vector.broadcast %326 : vector<1x256xf32> to vector<4x256xf32>
    %331 = arith.mulf %329, %330 : vector<4x256xf32>
    %332 = vector.extract_strided_slice %234 {offsets = [0, 1], sizes = [8, 255], strides = [1, 1]} : vector<8x256xf32> to vector<8x255xf32>
    %333 = vector.extract_strided_slice %234 {offsets = [0, 0], sizes = [8, 1], strides = [1, 1]} : vector<8x256xf32> to vector<8x1xf32>
    %334 = tpu.concatenate %332, %333 in 1 : vector<8x255xf32>, vector<8x1xf32> -> vector<8x256xf32>
    %335 = vector.broadcast %326 : vector<1x256xf32> to vector<8x256xf32>
    %336 = arith.mulf %334, %335 : vector<8x256xf32>
    %c5_166 = arith.constant 5 : index
    %c0_167 = arith.constant 0 : index
    %c0_168 = arith.constant 0 : index
    %337 = vector.load %arg3[%c5_166, %c0_167, %c0_168] : memref<9x16x4xf32, #tpu.memory_space<vmem>>, vector<1x16x4xf32>
    %338 = vector.shape_cast %337 : vector<1x16x4xf32> to vector<16x4xf32>
    %cst_169 = arith.constant dense<0.000000e+00> : vector<16x256xf32>
    %339 = tpu.matmul %338, %331, %cst_169 {dimension_numbers = #tpu.dot_dimension_numbers<[1], [0], [0], [1], [0, 0, 1, 1], [], []>} : vector<16x4xf32>, vector<4x256xf32>, vector<16x256xf32> -> vector<16x256xf32>
    %340 = arith.addf %320, %339 : vector<16x256xf32>
    %c5_170 = arith.constant 5 : index
    %c0_171 = arith.constant 0 : index
    %c0_172 = arith.constant 0 : index
    %341 = vector.load %arg4[%c5_170, %c0_171, %c0_172] : memref<9x16x8xf32, #tpu.memory_space<vmem>>, vector<1x16x8xf32>
    %342 = vector.shape_cast %341 : vector<1x16x8xf32> to vector<16x8xf32>
    %cst_173 = arith.constant dense<0.000000e+00> : vector<16x256xf32>
    %343 = tpu.matmul %342, %336, %cst_173 {dimension_numbers = #tpu.dot_dimension_numbers<[1], [0], [0], [1], [0, 0, 1, 1], [], []>} : vector<16x8xf32>, vector<8x256xf32>, vector<16x256xf32> -> vector<16x256xf32>
    %344 = arith.addf %324, %343 : vector<16x256xf32>
    %c6_174 = arith.constant 6 : index
    %c0_175 = arith.constant 0 : index
    %c0_176 = arith.constant 0 : index
    %345 = vector.load %arg5[%c6_174, %c0_175, %c0_176] : memref<9x1x256xf32, #tpu.memory_space<vmem>>, vector<1x1x256xf32>
    %346 = vector.shape_cast %345 : vector<1x1x256xf32> to vector<1x256xf32>
    %347 = vector.extract_strided_slice %231 {offsets = [0, 15], sizes = [4, 241], strides = [1, 1]} : vector<4x256xf32> to vector<4x241xf32>
    %348 = vector.extract_strided_slice %231 {offsets = [0, 0], sizes = [4, 15], strides = [1, 1]} : vector<4x256xf32> to vector<4x15xf32>
    %349 = tpu.concatenate %347, %348 in 1 : vector<4x241xf32>, vector<4x15xf32> -> vector<4x256xf32>
    %350 = vector.broadcast %346 : vector<1x256xf32> to vector<4x256xf32>
    %351 = arith.mulf %349, %350 : vector<4x256xf32>
    %352 = vector.extract_strided_slice %234 {offsets = [0, 15], sizes = [8, 241], strides = [1, 1]} : vector<8x256xf32> to vector<8x241xf32>
    %353 = vector.extract_strided_slice %234 {offsets = [0, 0], sizes = [8, 15], strides = [1, 1]} : vector<8x256xf32> to vector<8x15xf32>
    %354 = tpu.concatenate %352, %353 in 1 : vector<8x241xf32>, vector<8x15xf32> -> vector<8x256xf32>
    %355 = vector.broadcast %346 : vector<1x256xf32> to vector<8x256xf32>
    %356 = arith.mulf %354, %355 : vector<8x256xf32>
    %c6_177 = arith.constant 6 : index
    %c0_178 = arith.constant 0 : index
    %c0_179 = arith.constant 0 : index
    %357 = vector.load %arg3[%c6_177, %c0_178, %c0_179] : memref<9x16x4xf32, #tpu.memory_space<vmem>>, vector<1x16x4xf32>
    %358 = vector.shape_cast %357 : vector<1x16x4xf32> to vector<16x4xf32>
    %cst_180 = arith.constant dense<0.000000e+00> : vector<16x256xf32>
    %359 = tpu.matmul %358, %351, %cst_180 {dimension_numbers = #tpu.dot_dimension_numbers<[1], [0], [0], [1], [0, 0, 1, 1], [], []>} : vector<16x4xf32>, vector<4x256xf32>, vector<16x256xf32> -> vector<16x256xf32>
    %360 = arith.addf %340, %359 : vector<16x256xf32>
    %c6_181 = arith.constant 6 : index
    %c0_182 = arith.constant 0 : index
    %c0_183 = arith.constant 0 : index
    %361 = vector.load %arg4[%c6_181, %c0_182, %c0_183] : memref<9x16x8xf32, #tpu.memory_space<vmem>>, vector<1x16x8xf32>
    %362 = vector.shape_cast %361 : vector<1x16x8xf32> to vector<16x8xf32>
    %cst_184 = arith.constant dense<0.000000e+00> : vector<16x256xf32>
    %363 = tpu.matmul %362, %356, %cst_184 {dimension_numbers = #tpu.dot_dimension_numbers<[1], [0], [0], [1], [0, 0, 1, 1], [], []>} : vector<16x8xf32>, vector<8x256xf32>, vector<16x256xf32> -> vector<16x256xf32>
    %364 = arith.addf %344, %363 : vector<16x256xf32>
    %c7_185 = arith.constant 7 : index
    %c0_186 = arith.constant 0 : index
    %c0_187 = arith.constant 0 : index
    %365 = vector.load %arg5[%c7_185, %c0_186, %c0_187] : memref<9x1x256xf32, #tpu.memory_space<vmem>>, vector<1x1x256xf32>
    %366 = vector.shape_cast %365 : vector<1x1x256xf32> to vector<1x256xf32>
    %367 = vector.extract_strided_slice %231 {offsets = [0, 16], sizes = [4, 240], strides = [1, 1]} : vector<4x256xf32> to vector<4x240xf32>
    %368 = vector.extract_strided_slice %231 {offsets = [0, 0], sizes = [4, 16], strides = [1, 1]} : vector<4x256xf32> to vector<4x16xf32>
    %369 = tpu.concatenate %367, %368 in 1 : vector<4x240xf32>, vector<4x16xf32> -> vector<4x256xf32>
    %370 = vector.broadcast %366 : vector<1x256xf32> to vector<4x256xf32>
    %371 = arith.mulf %369, %370 : vector<4x256xf32>
    %372 = vector.extract_strided_slice %234 {offsets = [0, 16], sizes = [8, 240], strides = [1, 1]} : vector<8x256xf32> to vector<8x240xf32>
    %373 = vector.extract_strided_slice %234 {offsets = [0, 0], sizes = [8, 16], strides = [1, 1]} : vector<8x256xf32> to vector<8x16xf32>
    %374 = tpu.concatenate %372, %373 in 1 : vector<8x240xf32>, vector<8x16xf32> -> vector<8x256xf32>
    %375 = vector.broadcast %366 : vector<1x256xf32> to vector<8x256xf32>
    %376 = arith.mulf %374, %375 : vector<8x256xf32>
    %c7_188 = arith.constant 7 : index
    %c0_189 = arith.constant 0 : index
    %c0_190 = arith.constant 0 : index
    %377 = vector.load %arg3[%c7_188, %c0_189, %c0_190] : memref<9x16x4xf32, #tpu.memory_space<vmem>>, vector<1x16x4xf32>
    %378 = vector.shape_cast %377 : vector<1x16x4xf32> to vector<16x4xf32>
    %cst_191 = arith.constant dense<0.000000e+00> : vector<16x256xf32>
    %379 = tpu.matmul %378, %371, %cst_191 {dimension_numbers = #tpu.dot_dimension_numbers<[1], [0], [0], [1], [0, 0, 1, 1], [], []>} : vector<16x4xf32>, vector<4x256xf32>, vector<16x256xf32> -> vector<16x256xf32>
    %380 = arith.addf %360, %379 : vector<16x256xf32>
    %c7_192 = arith.constant 7 : index
    %c0_193 = arith.constant 0 : index
    %c0_194 = arith.constant 0 : index
    %381 = vector.load %arg4[%c7_192, %c0_193, %c0_194] : memref<9x16x8xf32, #tpu.memory_space<vmem>>, vector<1x16x8xf32>
    %382 = vector.shape_cast %381 : vector<1x16x8xf32> to vector<16x8xf32>
    %cst_195 = arith.constant dense<0.000000e+00> : vector<16x256xf32>
    %383 = tpu.matmul %382, %376, %cst_195 {dimension_numbers = #tpu.dot_dimension_numbers<[1], [0], [0], [1], [0, 0, 1, 1], [], []>} : vector<16x8xf32>, vector<8x256xf32>, vector<16x256xf32> -> vector<16x256xf32>
    %384 = arith.addf %364, %383 : vector<16x256xf32>
    %c8_196 = arith.constant 8 : index
    %c0_197 = arith.constant 0 : index
    %c0_198 = arith.constant 0 : index
    %385 = vector.load %arg5[%c8_196, %c0_197, %c0_198] : memref<9x1x256xf32, #tpu.memory_space<vmem>>, vector<1x1x256xf32>
    %386 = vector.shape_cast %385 : vector<1x1x256xf32> to vector<1x256xf32>
    %387 = vector.extract_strided_slice %231 {offsets = [0, 17], sizes = [4, 239], strides = [1, 1]} : vector<4x256xf32> to vector<4x239xf32>
    %388 = vector.extract_strided_slice %231 {offsets = [0, 0], sizes = [4, 17], strides = [1, 1]} : vector<4x256xf32> to vector<4x17xf32>
    %389 = tpu.concatenate %387, %388 in 1 : vector<4x239xf32>, vector<4x17xf32> -> vector<4x256xf32>
    %390 = vector.broadcast %386 : vector<1x256xf32> to vector<4x256xf32>
    %391 = arith.mulf %389, %390 : vector<4x256xf32>
    %392 = vector.extract_strided_slice %234 {offsets = [0, 17], sizes = [8, 239], strides = [1, 1]} : vector<8x256xf32> to vector<8x239xf32>
    %393 = vector.extract_strided_slice %234 {offsets = [0, 0], sizes = [8, 17], strides = [1, 1]} : vector<8x256xf32> to vector<8x17xf32>
    %394 = tpu.concatenate %392, %393 in 1 : vector<8x239xf32>, vector<8x17xf32> -> vector<8x256xf32>
    %395 = vector.broadcast %386 : vector<1x256xf32> to vector<8x256xf32>
    %396 = arith.mulf %394, %395 : vector<8x256xf32>
    %c8_199 = arith.constant 8 : index
    %c0_200 = arith.constant 0 : index
    %c0_201 = arith.constant 0 : index
    %397 = vector.load %arg3[%c8_199, %c0_200, %c0_201] : memref<9x16x4xf32, #tpu.memory_space<vmem>>, vector<1x16x4xf32>
    %398 = vector.shape_cast %397 : vector<1x16x4xf32> to vector<16x4xf32>
    %cst_202 = arith.constant dense<0.000000e+00> : vector<16x256xf32>
    %399 = tpu.matmul %398, %391, %cst_202 {dimension_numbers = #tpu.dot_dimension_numbers<[1], [0], [0], [1], [0, 0, 1, 1], [], []>} : vector<16x4xf32>, vector<4x256xf32>, vector<16x256xf32> -> vector<16x256xf32>
    %400 = arith.addf %380, %399 : vector<16x256xf32>
    %c8_203 = arith.constant 8 : index
    %c0_204 = arith.constant 0 : index
    %c0_205 = arith.constant 0 : index
    %401 = vector.load %arg4[%c8_203, %c0_204, %c0_205] : memref<9x16x8xf32, #tpu.memory_space<vmem>>, vector<1x16x8xf32>
    %402 = vector.shape_cast %401 : vector<1x16x8xf32> to vector<16x8xf32>
    %cst_206 = arith.constant dense<0.000000e+00> : vector<16x256xf32>
    %403 = tpu.matmul %402, %396, %cst_206 {dimension_numbers = #tpu.dot_dimension_numbers<[1], [0], [0], [1], [0, 0, 1, 1], [], []>} : vector<16x8xf32>, vector<8x256xf32>, vector<16x256xf32> -> vector<16x256xf32>
    %404 = arith.addf %384, %403 : vector<16x256xf32>
    %405 = vector.shape_cast %400 : vector<16x256xf32> to vector<1x16x256xf32>
    %cst_207 = arith.constant dense<0.000000e+00> : vector<1xf32>
    %406 = vector.multi_reduction <add>, %405, %cst_207 [1, 2] : vector<1x16x256xf32> to vector<1xf32>
    %407 = vector.shape_cast %406 : vector<1xf32> to vector<1x1x1xf32>
    %408 = vector.extract %407[0, 0, 0] : f32 from vector<1x1x1xf32>
    %cst_208 = arith.constant 2.44140625E-4 : f32
    %409 = arith.mulf %408, %cst_208 : f32
    %410 = vector.broadcast %409 : f32 to vector<16x256xf32>
    %411 = arith.subf %400, %410 : vector<16x256xf32>
    %412 = arith.mulf %411, %411 : vector<16x256xf32>
    %413 = vector.shape_cast %412 : vector<16x256xf32> to vector<1x16x256xf32>
    %cst_209 = arith.constant dense<0.000000e+00> : vector<1xf32>
    %414 = vector.multi_reduction <add>, %413, %cst_209 [1, 2] : vector<1x16x256xf32> to vector<1xf32>
    %415 = vector.shape_cast %414 : vector<1xf32> to vector<1x1x1xf32>
    %416 = vector.extract %415[0, 0, 0] : f32 from vector<1x1x1xf32>
    %cst_210 = arith.constant 2.44140625E-4 : f32
    %417 = arith.mulf %416, %cst_210 : f32
    %cst_211 = arith.constant 9.99999974E-6 : f32
    %418 = arith.addf %417, %cst_211 : f32
    %419 = math.rsqrt %418 : f32
    %420 = vector.broadcast %419 : f32 to vector<16x256xf32>
    %421 = arith.mulf %411, %420 : vector<16x256xf32>
    %422 = vector.shape_cast %404 : vector<16x256xf32> to vector<1x16x256xf32>
    %cst_212 = arith.constant dense<0.000000e+00> : vector<1xf32>
    %423 = vector.multi_reduction <add>, %422, %cst_212 [1, 2] : vector<1x16x256xf32> to vector<1xf32>
    %424 = vector.shape_cast %423 : vector<1xf32> to vector<1x1x1xf32>
    %425 = vector.extract %424[0, 0, 0] : f32 from vector<1x1x1xf32>
    %cst_213 = arith.constant 2.44140625E-4 : f32
    %426 = arith.mulf %425, %cst_213 : f32
    %427 = vector.broadcast %426 : f32 to vector<16x256xf32>
    %428 = arith.subf %404, %427 : vector<16x256xf32>
    %429 = arith.mulf %428, %428 : vector<16x256xf32>
    %430 = vector.shape_cast %429 : vector<16x256xf32> to vector<1x16x256xf32>
    %cst_214 = arith.constant dense<0.000000e+00> : vector<1xf32>
    %431 = vector.multi_reduction <add>, %430, %cst_214 [1, 2] : vector<1x16x256xf32> to vector<1xf32>
    %432 = vector.shape_cast %431 : vector<1xf32> to vector<1x1x1xf32>
    %433 = vector.extract %432[0, 0, 0] : f32 from vector<1x1x1xf32>
    %cst_215 = arith.constant 2.44140625E-4 : f32
    %434 = arith.mulf %433, %cst_215 : f32
    %cst_216 = arith.constant 9.99999974E-6 : f32
    %435 = arith.addf %434, %cst_216 : f32
    %436 = math.rsqrt %435 : f32
    %437 = vector.broadcast %436 : f32 to vector<16x256xf32>
    %438 = arith.mulf %428, %437 : vector<16x256xf32>
    %439 = vector.extract_strided_slice %421 {offsets = [0, 0], sizes = [8, 256], strides = [1, 1]} : vector<16x256xf32> to vector<8x256xf32>
    %440 = vector.extract_strided_slice %438 {offsets = [0, 0], sizes = [8, 256], strides = [1, 1]} : vector<16x256xf32> to vector<8x256xf32>
    %441 = arith.addf %439, %440 : vector<8x256xf32>
    %442 = math.tanh %441 : vector<8x256xf32>
    %443 = vector.extract_strided_slice %421 {offsets = [8, 0], sizes = [8, 256], strides = [1, 1]} : vector<16x256xf32> to vector<8x256xf32>
    %444 = vector.extract_strided_slice %438 {offsets = [8, 0], sizes = [8, 256], strides = [1, 1]} : vector<16x256xf32> to vector<8x256xf32>
    %445 = arith.addf %443, %444 : vector<8x256xf32>
    %446 = arith.negf %445 : vector<8x256xf32>
    %447 = math.exp %446 : vector<8x256xf32>
    %cst_217 = arith.constant 1.000000e+00 : f32
    %448 = vector.broadcast %cst_217 : f32 to vector<8x256xf32>
    %449 = arith.addf %448, %447 : vector<8x256xf32>
    %450 = arith.divf %448, %449 : vector<8x256xf32>
    %451 = arith.subf %442, %234 : vector<8x256xf32>
    %452 = arith.mulf %450, %451 : vector<8x256xf32>
    %453 = arith.addf %234, %452 : vector<8x256xf32>
    %454 = arith.index_cast %c1_i32 : i32 to index
    %c0_218 = arith.constant 0 : index
    %c0_219 = arith.constant 0 : index
    %455 = vector.load %arg6[%454, %c0_218, %c0_219] : memref<2x8x256xf32, #tpu.memory_space<vmem>>, vector<1x8x256xf32>
    %456 = vector.shape_cast %455 : vector<1x8x256xf32> to vector<8x256xf32>
    %457 = vector.shape_cast %453 : vector<8x256xf32> to vector<1x8x256xf32>
    tpu.vector_store %arg6[%454, %c0_218, %c0_219], %457 {strides = array<i32>} : memref<2x8x256xf32, #tpu.memory_space<vmem>>, vector<1x8x256xf32>,
    %c2_i32 = arith.constant 2 : i32
    return
  }
  func.func @transform_0(%arg0: i32) -> (i32, i32, i32) {
    %c0_i32 = arith.constant 0 : i32
    %c0_i32_0 = arith.constant 0 : i32
    %c0_i32_1 = arith.constant 0 : i32
    return %arg0, %c0_i32, %c0_i32_0 : i32, i32, i32
  }
  func.func @transform_1(%arg0: i32) -> (i32, i32, i32) {
    %c0_i32 = arith.constant 0 : i32
    %c0_i32_0 = arith.constant 0 : i32
    %c0_i32_1 = arith.constant 0 : i32
    return %arg0, %c0_i32, %c0_i32_0 : i32, i32, i32
  }
  func.func @transform_2(%arg0: i32) -> (i32, i32, i32) {
    %c0_i32 = arith.constant 0 : i32
    %c0_i32_0 = arith.constant 0 : i32
    %c0_i32_1 = arith.constant 0 : i32
    %c0_i32_2 = arith.constant 0 : i32
    return %c0_i32, %c0_i32_0, %c0_i32_1 : i32, i32, i32
  }
  func.func @transform_3(%arg0: i32) -> (i32, i32, i32) {
    %c0_i32 = arith.constant 0 : i32
    %c0_i32_0 = arith.constant 0 : i32
    %c0_i32_1 = arith.constant 0 : i32
    %c0_i32_2 = arith.constant 0 : i32
    return %c0_i32, %c0_i32_0, %c0_i32_1 : i32, i32, i32
  }
  func.func @transform_4(%arg0: i32) -> (i32, i32, i32) {
    %c0_i32 = arith.constant 0 : i32
    %c0_i32_0 = arith.constant 0 : i32
    %c0_i32_1 = arith.constant 0 : i32
    %c0_i32_2 = arith.constant 0 : i32
    return %c0_i32, %c0_i32_0, %c0_i32_1 : i32, i32, i32
  }
  func.func @transform_5(%arg0: i32) -> (i32, i32, i32) {
    %c0_i32 = arith.constant 0 : i32
    %c0_i32_0 = arith.constant 0 : i32
    %c0_i32_1 = arith.constant 0 : i32
    return %arg0, %c0_i32, %c0_i32_0 : i32, i32, i32
  }
}

</mosaic_0001>

<llo_original>
// kernel: ghu_forward.1
$region0: #{ghu_forward.1}
  #allocation0 [shape = 'u32[]', space=smem, size = 0x4, offset = 0x4, fixed_abs, tag = 'smem constant byte address 0x4 - core index']
  #allocation1 [shape = 'u32[144,128]{1,0:T(1,128)}', space=vmem, size = 0x12000, scoped, tag = 'internal scratch']
  %s0 = inlined_call_operand.vmem [shape: f32[2,4,256], index: 0, kind: input, shape index: {}]
  %s1 = inlined_call_operand.vmem [shape: f32[2,8,256], index: 1, kind: input, shape index: {}]
  %s2 = inlined_call_operand.vmem [shape: f32[9,16,4], index: 2, kind: input, shape index: {}]
  %s3 = inlined_call_operand.vmem [shape: f32[9,16,8], index: 3, kind: input, shape index: {}]
  %s4 = inlined_call_operand.vmem [shape: f32[9,1,256], index: 4, kind: input, shape index: {}]
  %s5 = inlined_call_operand.vmem [shape: f32[2,8,256], index: 5, kind: output, shape index: {}]
  %s6 = sld [smem:[#allocation0]]
  $region30: #{ghu_forward.1} parent=0
    _
  %s8 = ssub.s32 1, %s6
  %s9 = scalar_select 0, %s8, %s6
  // Predicated region
  $region2: #{ghu_forward.1} parent=0 // pred_check
    _
  $region3: #{ghu_forward.1} parent=0 // pred_check_branch
    %11 = sbr.rel (0) target = $region5
  $region4: #{ghu_forward.1} parent=0 // pred_region
    _
  $region5: #{ghu_forward.1} parent=0 // pred_fallthru
    _
  // Predicated region
  $region6: #{ghu_forward.1} parent=0 // pred_check
    _
  $region7: #{ghu_forward.1} parent=0 // pred_check_branch
    %13 = sbr.rel (0) target = $region9
  $region8: #{ghu_forward.1} parent=0 // pred_region
    _
  $region9: #{ghu_forward.1} parent=0 // pred_fallthru
    _
  // Predicated region
  $region10: #{ghu_forward.1} parent=0 // pred_check
    _
  $region11: #{ghu_forward.1} parent=0 // pred_check_branch
    %15 = sbr.rel (0) target = $region13
  $region12: #{ghu_forward.1} parent=0 // pred_region
    _
  $region13: #{ghu_forward.1} parent=0 // pred_fallthru
    _
  // Predicated region
  $region14: #{ghu_forward.1} parent=0 // pred_check
    _
  $region15: #{ghu_forward.1} parent=0 // pred_check_branch
    %17 = sbr.rel (0) target = $region17
  $region16: #{ghu_forward.1} parent=0 // pred_region
    _
  $region17: #{ghu_forward.1} parent=0 // pred_fallthru
    _
  // Predicated region
  $region18: #{ghu_forward.1} parent=0 // pred_check
    _
  $region19: #{ghu_forward.1} parent=0 // pred_check_branch
    %19 = sbr.rel (0) target = $region21
  $region20: #{ghu_forward.1} parent=0 // pred_region
    _
  $region21: #{ghu_forward.1} parent=0 // pred_fallthru
    _
  %v20 = vld [vmem:[%s0] sm:$0xff]
  %v21 = vld [vmem:[%s1] sm:$0xff]
  %v22 = vld [vmem:[%s1 + $0x8] sm:$0xff]
  %v23 = vld [vmem:[%s4] sm:$0x3]
  %v25 = vcombine.high %v20, %v20
  %26 = vrot.lane.b32.xlu0 %v25, 17
  %v27 = vpop.permute.xlu0 %26
  %29 = vrot.lane.b32.xlu0 %v20, 17
  %v30 = vpop.permute.xlu0 %29
  %vm31 = vcmask 138240
  %v32 = vsel %vm31, %v30, %v27
  %v35 = vsel %vm31, %v27, %v30
  %v37 = vlaneseq
  %v38 = vshrl.u32 %v37, 7
  %v39 = vsub.s32 0, %v38
  %v40 = vrot.slane %v23, %v39
  %v41 = vlaneseq
  %v42 = vshrl.u32 %v41, 7
  %v43 = vsub.s32 1, %v42
  %v44 = vrot.slane %v23, %v43
  %v47 = vmul.f32 %v35, %v40
  %v48 = vmul.f32 %v32, %v44
  %50 = vrot.lane.b32.xlu0 %v22, 17
  %v51 = vpop.permute.xlu0 %50
  %54 = vrot.lane.b32.xlu0 %v21, 17
  %v55 = vpop.permute.xlu0 %54
  %v56 = vsel %vm31, %v55, %v51
  %v59 = vsel %vm31, %v51, %v55
  %v60 = vmul.f32 %v59, %v40
  %v61 = vmul.f32 %v56, %v44
  %v62 = vld [vmem:[%s2] sm:$0xff]
  %v63 = vld [vmem:[%s2 + $0x8] sm:$0xff]
  %v64 = vld [vmem:[%s3] sm:$0xff]
  %v65 = vld [vmem:[%s3 + $0x8] sm:$0xff]
  %s66 = scalar_lea.vmem %s4, 2
  %v67 = vld [vmem:[%s66] sm:$0x3]
  %68 = vrot.lane.b32.xlu0 %v25, 16
  %v69 = vpop.permute.xlu0 %68
  %71 = vrot.lane.b32.xlu0 %v20, 16
  %v72 = vpop.permute.xlu0 %71
  %vm73 = vcmask 130048
  %v74 = vsel %vm73, %v72, %v69
  %v77 = vsel %vm73, %v69, %v72
  %v79 = vlaneseq
  %v80 = vshrl.u32 %v79, 7
  %v81 = vsub.s32 0, %v80
  %v82 = vrot.slane %v67, %v81
  %v83 = vlaneseq
  %v84 = vshrl.u32 %v83, 7
  %v85 = vsub.s32 1, %v84
  %v86 = vrot.slane %v67, %v85
  %v89 = vmul.f32 %v77, %v82
  %v90 = vmul.f32 %v74, %v86
  %91 = vrot.lane.b32.xlu0 %v22, 16
  %v92 = vpop.permute.xlu0 %91
  %94 = vrot.lane.b32.xlu0 %v21, 16
  %v95 = vpop.permute.xlu0 %94
  %v96 = vsel %vm73, %v95, %v92
  %v99 = vsel %vm73, %v92, %v95
  %v100 = vmul.f32 %v99, %v82
  %v101 = vmul.f32 %v96, %v86
  %s102 = scalar_lea.vmem %s2, 16
  %v103 = vld [vmem:[%s102] sm:$0xff]
  %v104 = vld [vmem:[%s102 + $0x8] sm:$0xff]
  %vm105 = vcmask 31744
  %v107 = vsel %vm105, %v103, 0
  %v110 = vsel %vm105, %v104, 0
  %vm112 = vcmask 1043456
  %v114 = vsel %vm112, %v89, 0
  %v117 = vsel %vm112, %v90, 0
  %119 = vmatprep.subr.mxu0 %v117
  %120 = vmatpush1.msra.mxu0 %v114
  %121 = vmatprep.subr.mxu0 0.0
  %122 = vmatpush1.msra.mxu0 0.0
  %123 = vmatprep.subr.mxu0 0.0
  %124 = vmatpush1.msra.mxu0 0.0
  %125 = vmatprep.subr.mxu0 0.0
  %126 = vmatpush1.msra.mxu0 0.0
  %127 = vmatprep.subr.mxu0 0.0
  %128 = vmatpush1.msra.mxu0 0.0
  %129 = vmatprep.subr.mxu0 0.0
  %130 = vmatpush1.msra.mxu0 0.0
  %131 = vmatprep.subr.mxu0 0.0
  %132 = vmatpush1.msra.mxu0 0.0
  %133 = vmatprep.subr.mxu0 0.0
  %134 = vmatpush1.msra.mxu0 0.0
  %135 = vmatprep.subr.mxu0 0.0
  %136 = vmatpush1.msra.mxu0 0.0
  %137 = vmatprep.subr.mxu0 0.0
  %138 = vmatpush1.msra.mxu0 0.0
  %139 = vmatprep.subr.mxu0 0.0
  %140 = vmatpush1.msra.mxu0 0.0
  %141 = vmatprep.subr.mxu0 0.0
  %142 = vmatpush1.msra.mxu0 0.0
  %143 = vmatprep.subr.mxu0 0.0
  %144 = vmatpush1.msra.mxu0 0.0
  %145 = vmatprep.subr.mxu0 0.0
  %146 = vmatpush1.msra.mxu0 0.0
  %147 = vmatprep.subr.mxu0 0.0
  %148 = vmatpush1.msra.mxu0 0.0
  %149 = vmatprep.subr.mxu0 0.0
  %150 = vmatpush1.msra.mxu0 0.0
  %151 = vmatprep.subr.mxu0 0.0
  %152 = vmatpush1.msra.mxu0 0.0
  %153 = vmatprep.subr.mxu0 0.0
  %154 = vmatpush1.msra.mxu0 0.0
  %155 = vmatprep.subr.mxu0 0.0
  %156 = vmatpush1.msra.mxu0 0.0
  %157 = vmatprep.subr.mxu0 0.0
  %158 = vmatpush1.msra.mxu0 0.0
  %159 = vmatprep.subr.mxu0 0.0
  %160 = vmatpush1.msra.mxu0 0.0
  %161 = vmatprep.subr.mxu0 0.0
  %162 = vmatpush1.msra.mxu0 0.0
  %163 = vmatprep.subr.mxu0 0.0
  %164 = vmatpush1.msra.mxu0 0.0
  %165 = vmatprep.subr.mxu0 0.0
  %166 = vmatpush1.msra.mxu0 0.0
  %167 = vmatprep.subr.mxu0 0.0
  %168 = vmatpush1.msra.mxu0 0.0
  %169 = vmatprep.subr.mxu0 0.0
  %170 = vmatpush1.msra.mxu0 0.0
  %171 = vmatprep.subr.mxu0 0.0
  %172 = vmatpush1.msra.mxu0 0.0
  %173 = vmatprep.subr.mxu0 0.0
  %174 = vmatpush1.msra.mxu0 0.0
  %175 = vmatprep.subr.mxu0 0.0
  %176 = vmatpush1.msra.mxu0 0.0
  %177 = vmatprep.subr.mxu0 0.0
  %178 = vmatpush1.msra.mxu0 0.0
  %179 = vmatprep.subr.mxu0 0.0
  %180 = vmatpush1.msra.mxu0 0.0
  %181 = vmatprep.subr.mxu0 0.0
  %182 = vmatpush1.msra.mxu0 0.0
  %183 = vmatprep.mubr.f32.mxu0 0.0
  %184 = vmatmul.mubr.f32.gmra.mrb[0].mxu0 %v107
  %v185 = vpop.f32.mrb[0].mxu0
  %v186 = vadd.f32 0.0, %v185
  %v187 = vpop.f32.mrb[0].mxu0
  %v188 = vadd.f32 0.0, %v187
  %189 = vmatprep.mubr.f32.mxu0 0.0
  %190 = vmatmul.mubr.f32.gmra.mrb[0].mxu0 %v110
  %v191 = vpop.f32.mrb[0].mxu0
  %v192 = vadd.f32 0.0, %v191
  %v193 = vpop.f32.mrb[0].mxu0
  %v194 = vadd.f32 0.0, %v193
  %195 = vdwg.mxu0
  %v197 = vsel %vm105, %v62, 0
  %v200 = vsel %vm105, %v63, 0
  %v203 = vsel %vm112, %v47, 0
  %v206 = vsel %vm112, %v48, 0
  %208 = vmatprep.subr.mxu0 %v206
  %209 = vmatpush1.msra.mxu0 %v203
  %210 = vmatprep.subr.mxu0 0.0
  %211 = vmatpush1.msra.mxu0 0.0
  %212 = vmatprep.subr.mxu0 0.0
  %213 = vmatpush1.msra.mxu0 0.0
  %214 = vmatprep.subr.mxu0 0.0
  %215 = vmatpush1.msra.mxu0 0.0
  %216 = vmatprep.subr.mxu0 0.0
  %217 = vmatpush1.msra.mxu0 0.0
  %218 = vmatprep.subr.mxu0 0.0
  %219 = vmatpush1.msra.mxu0 0.0
  %220 = vmatprep.subr.mxu0 0.0
  %221 = vmatpush1.msra.mxu0 0.0
  %222 = vmatprep.subr.mxu0 0.0
  %223 = vmatpush1.msra.mxu0 0.0
  %224 = vmatprep.subr.mxu0 0.0
  %225 = vmatpush1.msra.mxu0 0.0
  %226 = vmatprep.subr.mxu0 0.0
  %227 = vmatpush1.msra.mxu0 0.0
  %228 = vmatprep.subr.mxu0 0.0
  %229 = vmatpush1.msra.mxu0 0.0
  %230 = vmatprep.subr.mxu0 0.0
  %231 = vmatpush1.msra.mxu0 0.0
  %232 = vmatprep.subr.mxu0 0.0
  %233 = vmatpush1.msra.mxu0 0.0
  %234 = vmatprep.subr.mxu0 0.0
  %235 = vmatpush1.msra.mxu0 0.0
  %236 = vmatprep.subr.mxu0 0.0
  %237 = vmatpush1.msra.mxu0 0.0
  %238 = vmatprep.subr.mxu0 0.0
  %239 = vmatpush1.msra.mxu0 0.0
  %240 = vmatprep.subr.mxu0 0.0
  %241 = vmatpush1.msra.mxu0 0.0
  %242 = vmatprep.subr.mxu0 0.0
  %243 = vmatpush1.msra.mxu0 0.0
  %244 = vmatprep.subr.mxu0 0.0
  %245 = vmatpush1.msra.mxu0 0.0
  %246 = vmatprep.subr.mxu0 0.0
  %247 = vmatpush1.msra.mxu0 0.0
  %248 = vmatprep.subr.mxu0 0.0
  %249 = vmatpush1.msra.mxu0 0.0
  %250 = vmatprep.subr.mxu0 0.0
  %251 = vmatpush1.msra.mxu0 0.0
  %252 = vmatprep.subr.mxu0 0.0
  %253 = vmatpush1.msra.mxu0 0.0
  %254 = vmatprep.subr.mxu0 0.0
  %255 = vmatpush1.msra.mxu0 0.0
  %256 = vmatprep.subr.mxu0 0.0
  %257 = vmatpush1.msra.mxu0 0.0
  %258 = vmatprep.subr.mxu0 0.0
  %259 = vmatpush1.msra.mxu0 0.0
  %260 = vmatprep.subr.mxu0 0.0
  %261 = vmatpush1.msra.mxu0 0.0
  %262 = vmatprep.subr.mxu0 0.0
  %263 = vmatpush1.msra.mxu0 0.0
  %264 = vmatprep.subr.mxu0 0.0
  %265 = vmatpush1.msra.mxu0 0.0
  %266 = vmatprep.subr.mxu0 0.0
  %267 = vmatpush1.msra.mxu0 0.0
  %268 = vmatprep.subr.mxu0 0.0
  %269 = vmatpush1.msra.mxu0 0.0
  %270 = vmatprep.subr.mxu0 0.0
  %271 = vmatpush1.msra.mxu0 0.0
  %272 = vmatprep.mubr.f32.mxu0 0.0
  %273 = vmatmul.mubr.f32.gmra.mrb[0].mxu0 %v197
  %v274 = vpop.f32.mrb[0].mxu0
  %v275 = vadd.f32 %v186, %v274
  %v276 = vpop.f32.mrb[0].mxu0
  %v277 = vadd.f32 %v188, %v276
  %278 = vmatprep.mubr.f32.mxu0 0.0
  %279 = vmatmul.mubr.f32.gmra.mrb[0].mxu0 %v200
  %v280 = vpop.f32.mrb[0].mxu0
  %v281 = vadd.f32 %v192, %v280
  %v282 = vpop.f32.mrb[0].mxu0
  %v283 = vadd.f32 %v194, %v282
  %284 = vdwg.mxu0
  %s285 = scalar_lea.vmem %s3, 16
  %v286 = vld [vmem:[%s285] sm:$0xff]
  %v287 = vld [vmem:[%s285 + $0x8] sm:$0xff]
  %vm288 = vcmask 64512
  %v290 = vsel %vm288, %v286, 0
  %v293 = vsel %vm288, %v287, 0
  %295 = vmatprep.subr.mxu0 %v101
  %296 = vmatpush1.msra.mxu0 %v100
  %297 = vmatprep.subr.mxu0 0.0
  %298 = vmatpush1.msra.mxu0 0.0
  %299 = vmatprep.subr.mxu0 0.0
  %300 = vmatpush1.msra.mxu0 0.0
  %301 = vmatprep.subr.mxu0 0.0
  %302 = vmatpush1.msra.mxu0 0.0
  %303 = vmatprep.subr.mxu0 0.0
  %304 = vmatpush1.msra.mxu0 0.0
  %305 = vmatprep.subr.mxu0 0.0
  %306 = vmatpush1.msra.mxu0 0.0
  %307 = vmatprep.subr.mxu0 0.0
  %308 = vmatpush1.msra.mxu0 0.0
  %309 = vmatprep.subr.mxu0 0.0
  %310 = vmatpush1.msra.mxu0 0.0
  %311 = vmatprep.subr.mxu0 0.0
  %312 = vmatpush1.msra.mxu0 0.0
  %313 = vmatprep.subr.mxu0 0.0
  %314 = vmatpush1.msra.mxu0 0.0
  %315 = vmatprep.subr.mxu0 0.0
  %316 = vmatpush1.msra.mxu0 0.0
  %317 = vmatprep.subr.mxu0 0.0
  %318 = vmatpush1.msra.mxu0 0.0
  %319 = vmatprep.subr.mxu0 0.0
  %320 = vmatpush1.msra.mxu0 0.0
  %321 = vmatprep.subr.mxu0 0.0
  %322 = vmatpush1.msra.mxu0 0.0
  %323 = vmatprep.subr.mxu0 0.0
  %324 = vmatpush1.msra.mxu0 0.0
  %325 = vmatprep.subr.mxu0 0.0
  %326 = vmatpush1.msra.mxu0 0.0
  %327 = vmatprep.subr.mxu0 0.0
  %328 = vmatpush1.msra.mxu0 0.0
  %329 = vmatprep.subr.mxu0 0.0
  %330 = vmatpush1.msra.mxu0 0.0
  %331 = vmatprep.subr.mxu0 0.0
  %332 = vmatpush1.msra.mxu0 0.0
  %333 = vmatprep.subr.mxu0 0.0
  %334 = vmatpush1.msra.mxu0 0.0
  %335 = vmatprep.subr.mxu0 0.0
  %336 = vmatpush1.msra.mxu0 0.0
  %337 = vmatprep.subr.mxu0 0.0
  %338 = vmatpush1.msra.mxu0 0.0
  %339 = vmatprep.subr.mxu0 0.0
  %340 = vmatpush1.msra.mxu0 0.0
  %341 = vmatprep.subr.mxu0 0.0
  %342 = vmatpush1.msra.mxu0 0.0
  %343 = vmatprep.subr.mxu0 0.0
  %344 = vmatpush1.msra.mxu0 0.0
  %345 = vmatprep.subr.mxu0 0.0
  %346 = vmatpush1.msra.mxu0 0.0
  %347 = vmatprep.subr.mxu0 0.0
  %348 = vmatpush1.msra.mxu0 0.0
  %349 = vmatprep.subr.mxu0 0.0
  %350 = vmatpush1.msra.mxu0 0.0
  %351 = vmatprep.subr.mxu0 0.0
  %352 = vmatpush1.msra.mxu0 0.0
  %353 = vmatprep.subr.mxu0 0.0
  %354 = vmatpush1.msra.mxu0 0.0
  %355 = vmatprep.subr.mxu0 0.0
  %356 = vmatpush1.msra.mxu0 0.0
  %357 = vmatprep.subr.mxu0 0.0
  %358 = vmatpush1.msra.mxu0 0.0
  %359 = vmatprep.mubr.f32.mxu0 0.0
  %360 = vmatmul.mubr.f32.gmra.mrb[0].mxu0 %v290
  %v361 = vpop.f32.mrb[0].mxu0
  %v362 = vadd.f32 0.0, %v361
  %v363 = vpop.f32.mrb[0].mxu0
  %v364 = vadd.f32 0.0, %v363
  %365 = vmatprep.mubr.f32.mxu0 0.0
  %366 = vmatmul.mubr.f32.gmra.mrb[0].mxu0 %v293
  %v367 = vpop.f32.mrb[0].mxu0
  %v368 = vadd.f32 0.0, %v367
  %v369 = vpop.f32.mrb[0].mxu0
  %v370 = vadd.f32 0.0, %v369
  %371 = vdwg.mxu0
  %v373 = vsel %vm288, %v64, 0
  %v376 = vsel %vm288, %v65, 0
  %378 = vmatprep.subr.mxu0 %v61
  %379 = vmatpush1.msra.mxu0 %v60
  %380 = vmatprep.subr.mxu0 0.0
  %381 = vmatpush1.msra.mxu0 0.0
  %382 = vmatprep.subr.mxu0 0.0
  %383 = vmatpush1.msra.mxu0 0.0
  %384 = vmatprep.subr.mxu0 0.0
  %385 = vmatpush1.msra.mxu0 0.0
  %386 = vmatprep.subr.mxu0 0.0
  %387 = vmatpush1.msra.mxu0 0.0
  %388 = vmatprep.subr.mxu0 0.0
  %389 = vmatpush1.msra.mxu0 0.0
  %390 = vmatprep.subr.mxu0 0.0
  %391 = vmatpush1.msra.mxu0 0.0
  %392 = vmatprep.subr.mxu0 0.0
  %393 = vmatpush1.msra.mxu0 0.0
  %394 = vmatprep.subr.mxu0 0.0
  %395 = vmatpush1.msra.mxu0 0.0
  %396 = vmatprep.subr.mxu0 0.0
  %397 = vmatpush1.msra.mxu0 0.0
  %398 = vmatprep.subr.mxu0 0.0
  %399 = vmatpush1.msra.mxu0 0.0
  %400 = vmatprep.subr.mxu0 0.0
  %401 = vmatpush1.msra.mxu0 0.0
  %402 = vmatprep.subr.mxu0 0.0
  %403 = vmatpush1.msra.mxu0 0.0
  %404 = vmatprep.subr.mxu0 0.0
  %405 = vmatpush1.msra.mxu0 0.0
  %406 = vmatprep.subr.mxu0 0.0
  %407 = vmatpush1.msra.mxu0 0.0
  %408 = vmatprep.subr.mxu0 0.0
  %409 = vmatpush1.msra.mxu0 0.0
  %410 = vmatprep.subr.mxu0 0.0
  %411 = vmatpush1.msra.mxu0 0.0
  %412 = vmatprep.subr.mxu0 0.0
  %413 = vmatpush1.msra.mxu0 0.0
  %414 = vmatprep.subr.mxu0 0.0
  %415 = vmatpush1.msra.mxu0 0.0
  %416 = vmatprep.subr.mxu0 0.0
  %417 = vmatpush1.msra.mxu0 0.0
  %418 = vmatprep.subr.mxu0 0.0
  %419 = vmatpush1.msra.mxu0 0.0
  %420 = vmatprep.subr.mxu0 0.0
  %421 = vmatpush1.msra.mxu0 0.0
  %422 = vmatprep.subr.mxu0 0.0
  %423 = vmatpush1.msra.mxu0 0.0
  %424 = vmatprep.subr.mxu0 0.0
  %425 = vmatpush1.msra.mxu0 0.0
  %426 = vmatprep.subr.mxu0 0.0
  %427 = vmatpush1.msra.mxu0 0.0
  %428 = vmatprep.subr.mxu0 0.0
  %429 = vmatpush1.msra.mxu0 0.0
  %430 = vmatprep.subr.mxu0 0.0
  %431 = vmatpush1.msra.mxu0 0.0
  %432 = vmatprep.subr.mxu0 0.0
  %433 = vmatpush1.msra.mxu0 0.0
  %434 = vmatprep.subr.mxu0 0.0
  %435 = vmatpush1.msra.mxu0 0.0
  %436 = vmatprep.subr.mxu0 0.0
  %437 = vmatpush1.msra.mxu0 0.0
  %438 = vmatprep.subr.mxu0 0.0
  %439 = vmatpush1.msra.mxu0 0.0
  %440 = vmatprep.subr.mxu0 0.0
  %441 = vmatpush1.msra.mxu0 0.0
  %442 = vmatprep.mubr.f32.mxu0 0.0
  %443 = vmatmul.mubr.f32.gmra.mrb[0].mxu0 %v373
  %v444 = vpop.f32.mrb[0].mxu0
  %v445 = vadd.f32 %v362, %v444
  %v446 = vpop.f32.mrb[0].mxu0
  %v447 = vadd.f32 %v364, %v446
  %448 = vmatprep.mubr.f32.mxu0 0.0
  %449 = vmatmul.mubr.f32.gmra.mrb[0].mxu0 %v376
  %v450 = vpop.f32.mrb[0].mxu0
  %v451 = vadd.f32 %v368, %v450
  %v452 = vpop.f32.mrb[0].mxu0
  %v453 = vadd.f32 %v370, %v452
  %454 = vdwg.mxu0
  %s455 = scalar_lea.vmem %s4, 4
  %v456 = vld [vmem:[%s455] sm:$0x3]
  %457 = vrot.lane.b32.xlu0 %v25, 15
  %v458 = vpop.permute.xlu0 %457
  %460 = vrot.lane.b32.xlu0 %v20, 15
  %v461 = vpop.permute.xlu0 %460
  %vm462 = vcmask 121856
  %v463 = vsel %vm462, %v461, %v458
  %v466 = vsel %vm462, %v458, %v461
  %v468 = vlaneseq
  %v469 = vshrl.u32 %v468, 7
  %v470 = vsub.s32 0, %v469
  %v471 = vrot.slane %v456, %v470
  %v472 = vlaneseq
  %v473 = vshrl.u32 %v472, 7
  %v474 = vsub.s32 1, %v473
  %v475 = vrot.slane %v456, %v474
  %v478 = vmul.f32 %v466, %v471
  %v479 = vmul.f32 %v463, %v475
  %480 = vrot.lane.b32.xlu0 %v22, 15
  %v481 = vpop.permute.xlu0 %480
  %483 = vrot.lane.b32.xlu0 %v21, 15
  %v484 = vpop.permute.xlu0 %483
  %v485 = vsel %vm462, %v484, %v481
  %v488 = vsel %vm462, %v481, %v484
  %v489 = vmul.f32 %v488, %v471
  %v490 = vmul.f32 %v485, %v475
  %s491 = scalar_lea.vmem %s2, 32
  %v492 = vld [vmem:[%s491] sm:$0xff]
  %v493 = vld [vmem:[%s491 + $0x8] sm:$0xff]
  %v495 = vsel %vm105, %v492, 0
  %v498 = vsel %vm105, %v493, 0
  %v501 = vsel %vm112, %v478, 0
  %v504 = vsel %vm112, %v479, 0
  %506 = vmatprep.subr.mxu0 %v504
  %507 = vmatpush1.msra.mxu0 %v501
  %508 = vmatprep.subr.mxu0 0.0
  %509 = vmatpush1.msra.mxu0 0.0
  %510 = vmatprep.subr.mxu0 0.0
  %511 = vmatpush1.msra.mxu0 0.0
  %512 = vmatprep.subr.mxu0 0.0
  %513 = vmatpush1.msra.mxu0 0.0
  %514 = vmatprep.subr.mxu0 0.0
  %515 = vmatpush1.msra.mxu0 0.0
  %516 = vmatprep.subr.mxu0 0.0
  %517 = vmatpush1.msra.mxu0 0.0
  %518 = vmatprep.subr.mxu0 0.0
  %519 = vmatpush1.msra.mxu0 0.0
  %520 = vmatprep.subr.mxu0 0.0
  %521 = vmatpush1.msra.mxu0 0.0
  %522 = vmatprep.subr.mxu0 0.0
  %523 = vmatpush1.msra.mxu0 0.0
  %524 = vmatprep.subr.mxu0 0.0
  %525 = vmatpush1.msra.mxu0 0.0
  %526 = vmatprep.subr.mxu0 0.0
  %527 = vmatpush1.msra.mxu0 0.0
  %528 = vmatprep.subr.mxu0 0.0
  %529 = vmatpush1.msra.mxu0 0.0
  %530 = vmatprep.subr.mxu0 0.0
  %531 = vmatpush1.msra.mxu0 0.0
  %532 = vmatprep.subr.mxu0 0.0
  %533 = vmatpush1.msra.mxu0 0.0
  %534 = vmatprep.subr.mxu0 0.0
  %535 = vmatpush1.msra.mxu0 0.0
  %536 = vmatprep.subr.mxu0 0.0
  %537 = vmatpush1.msra.mxu0 0.0
  %538 = vmatprep.subr.mxu0 0.0
  %539 = vmatpush1.msra.mxu0 0.0
  %540 = vmatprep.subr.mxu0 0.0
  %541 = vmatpush1.msra.mxu0 0.0
  %542 = vmatprep.subr.mxu0 0.0
  %543 = vmatpush1.msra.mxu0 0.0
  %544 = vmatprep.subr.mxu0 0.0
  %545 = vmatpush1.msra.mxu0 0.0
  %546 = vmatprep.subr.mxu0 0.0
  %547 = vmatpush1.msra.mxu0 0.0
  %548 = vmatprep.subr.mxu0 0.0
  %549 = vmatpush1.msra.mxu0 0.0
  %550 = vmatprep.subr.mxu0 0.0
  %551 = vmatpush1.msra.mxu0 0.0
  %552 = vmatprep.subr.mxu0 0.0
  %553 = vmatpush1.msra.mxu0 0.0
  %554 = vmatprep.subr.mxu0 0.0
  %555 = vmatpush1.msra.mxu0 0.0
  %556 = vmatprep.subr.mxu0 0.0
  %557 = vmatpush1.msra.mxu0 0.0
  %558 = vmatprep.subr.mxu0 0.0
  %559 = vmatpush1.msra.mxu0 0.0
  %560 = vmatprep.subr.mxu0 0.0
  %561 = vmatpush1.msra.mxu0 0.0
  %562 = vmatprep.subr.mxu0 0.0
  %563 = vmatpush1.msra.mxu0 0.0
  %564 = vmatprep.subr.mxu0 0.0
  %565 = vmatpush1.msra.mxu0 0.0
  %566 = vmatprep.subr.mxu0 0.0
  %567 = vmatpush1.msra.mxu0 0.0
  %568 = vmatprep.subr.mxu0 0.0
  %569 = vmatpush1.msra.mxu0 0.0
  %570 = vmatprep.mubr.f32.mxu0 0.0
  %571 = vmatmul.mubr.f32.gmra.mrb[0].mxu0 %v495
  %v572 = vpop.f32.mrb[0].mxu0
  %v573 = vadd.f32 0.0, %v572
  %v574 = vpop.f32.mrb[0].mxu0
  %v575 = vadd.f32 0.0, %v574
  %576 = vmatprep.mubr.f32.mxu0 0.0
  %577 = vmatmul.mubr.f32.gmra.mrb[0].mxu0 %v498
  %v578 = vpop.f32.mrb[0].mxu0
  %v579 = vadd.f32 0.0, %v578
  %v580 = vpop.f32.mrb[0].mxu0
  %v581 = vadd.f32 0.0, %v580
  %582 = vdwg.mxu0
  %v583 = vadd.f32 %v275, %v573
  %v584 = vadd.f32 %v277, %v575
  %v585 = vadd.f32 %v281, %v579
  %v586 = vadd.f32 %v283, %v581
  %s587 = scalar_lea.vmem %s3, 32
  %v588 = vld [vmem:[%s587] sm:$0xff]
  %v589 = vld [vmem:[%s587 + $0x8] sm:$0xff]
  %v591 = vsel %vm288, %v588, 0
  %v594 = vsel %vm288, %v589, 0
  %596 = vmatprep.subr.mxu0 %v490
  %597 = vmatpush1.msra.mxu0 %v489
  %598 = vmatprep.subr.mxu0 0.0
  %599 = vmatpush1.msra.mxu0 0.0
  %600 = vmatprep.subr.mxu0 0.0
  %601 = vmatpush1.msra.mxu0 0.0
  %602 = vmatprep.subr.mxu0 0.0
  %603 = vmatpush1.msra.mxu0 0.0
  %604 = vmatprep.subr.mxu0 0.0
  %605 = vmatpush1.msra.mxu0 0.0
  %606 = vmatprep.subr.mxu0 0.0
  %607 = vmatpush1.msra.mxu0 0.0
  %608 = vmatprep.subr.mxu0 0.0
  %609 = vmatpush1.msra.mxu0 0.0
  %610 = vmatprep.subr.mxu0 0.0
  %611 = vmatpush1.msra.mxu0 0.0
  %612 = vmatprep.subr.mxu0 0.0
  %613 = vmatpush1.msra.mxu0 0.0
  %614 = vmatprep.subr.mxu0 0.0
  %615 = vmatpush1.msra.mxu0 0.0
  %616 = vmatprep.subr.mxu0 0.0
  %617 = vmatpush1.msra.mxu0 0.0
  %618 = vmatprep.subr.mxu0 0.0
  %619 = vmatpush1.msra.mxu0 0.0
  %620 = vmatprep.subr.mxu0 0.0
  %621 = vmatpush1.msra.mxu0 0.0
  %622 = vmatprep.subr.mxu0 0.0
  %623 = vmatpush1.msra.mxu0 0.0
  %624 = vmatprep.subr.mxu0 0.0
  %625 = vmatpush1.msra.mxu0 0.0
  %626 = vmatprep.subr.mxu0 0.0
  %627 = vmatpush1.msra.mxu0 0.0
  %628 = vmatprep.subr.mxu0 0.0
  %629 = vmatpush1.msra.mxu0 0.0
  %630 = vmatprep.subr.mxu0 0.0
  %631 = vmatpush1.msra.mxu0 0.0
  %632 = vmatprep.subr.mxu0 0.0
  %633 = vmatpush1.msra.mxu0 0.0
  %634 = vmatprep.subr.mxu0 0.0
  %635 = vmatpush1.msra.mxu0 0.0
  %636 = vmatprep.subr.mxu0 0.0
  %637 = vmatpush1.msra.mxu0 0.0
  %638 = vmatprep.subr.mxu0 0.0
  %639 = vmatpush1.msra.mxu0 0.0
  %640 = vmatprep.subr.mxu0 0.0
  %641 = vmatpush1.msra.mxu0 0.0
  %642 = vmatprep.subr.mxu0 0.0
  %643 = vmatpush1.msra.mxu0 0.0
  %644 = vmatprep.subr.mxu0 0.0
  %645 = vmatpush1.msra.mxu0 0.0
  %646 = vmatprep.subr.mxu0 0.0
  %647 = vmatpush1.msra.mxu0 0.0
  %648 = vmatprep.subr.mxu0 0.0
  %649 = vmatpush1.msra.mxu0 0.0
  %650 = vmatprep.subr.mxu0 0.0
  %651 = vmatpush1.msra.mxu0 0.0
  %652 = vmatprep.subr.mxu0 0.0
  %653 = vmatpush1.msra.mxu0 0.0
  %654 = vmatprep.subr.mxu0 0.0
  %655 = vmatpush1.msra.mxu0 0.0
  %656 = vmatprep.subr.mxu0 0.0
  %657 = vmatpush1.msra.mxu0 0.0
  %658 = vmatprep.subr.mxu0 0.0
  %659 = vmatpush1.msra.mxu0 0.0
  %660 = vmatprep.mubr.f32.mxu0 0.0
  %661 = vmatmul.mubr.f32.gmra.mrb[0].mxu0 %v591
  %v662 = vpop.f32.mrb[0].mxu0
  %v663 = vadd.f32 0.0, %v662
  %v664 = vpop.f32.mrb[0].mxu0
  %v665 = vadd.f32 0.0, %v664
  %666 = vmatprep.mubr.f32.mxu0 0.0
  %667 = vmatmul.mubr.f32.gmra.mrb[0].mxu0 %v594
  %v668 = vpop.f32.mrb[0].mxu0
  %v669 = vadd.f32 0.0, %v668
  %v670 = vpop.f32.mrb[0].mxu0
  %v671 = vadd.f32 0.0, %v670
  %672 = vdwg.mxu0
  %v673 = vadd.f32 %v445, %v663
  %v674 = vadd.f32 %v447, %v665
  %v675 = vadd.f32 %v451, %v669
  %v676 = vadd.f32 %v453, %v671
  %s677 = scalar_lea.vmem %s4, 6
  %v678 = vld [vmem:[%s677] sm:$0x3]
  %679 = vrot.lane.b32.xlu0 %v25, 1
  %v680 = vpop.permute.xlu0 %679
  %682 = vrot.lane.b32.xlu0 %v20, 1
  %v683 = vpop.permute.xlu0 %682
  %vm684 = vcmask 7168
  %v685 = vsel %vm684, %v683, %v680
  %v688 = vsel %vm684, %v680, %v683
  %v690 = vlaneseq
  %v691 = vshrl.u32 %v690, 7
  %v692 = vsub.s32 0, %v691
  %v693 = vrot.slane %v678, %v692
  %v694 = vlaneseq
  %v695 = vshrl.u32 %v694, 7
  %v696 = vsub.s32 1, %v695
  %v697 = vrot.slane %v678, %v696
  %v700 = vmul.f32 %v688, %v693
  %v701 = vmul.f32 %v685, %v697
  %702 = vrot.lane.b32.xlu0 %v22, 1
  %v703 = vpop.permute.xlu0 %702
  %705 = vrot.lane.b32.xlu0 %v21, 1
  %v706 = vpop.permute.xlu0 %705
  %v707 = vsel %vm684, %v706, %v703
  %v710 = vsel %vm684, %v703, %v706
  %v711 = vmul.f32 %v710, %v693
  %v712 = vmul.f32 %v707, %v697
  %s713 = scalar_lea.vmem %s2, 48
  %v714 = vld [vmem:[%s713] sm:$0xff]
  %v715 = vld [vmem:[%s713 + $0x8] sm:$0xff]
  %v717 = vsel %vm105, %v714, 0
  %v720 = vsel %vm105, %v715, 0
  %v723 = vsel %vm112, %v700, 0
  %v726 = vsel %vm112, %v701, 0
  %728 = vmatprep.subr.mxu0 %v726
  %729 = vmatpush1.msra.mxu0 %v723
  %730 = vmatprep.subr.mxu0 0.0
  %731 = vmatpush1.msra.mxu0 0.0
  %732 = vmatprep.subr.mxu0 0.0
  %733 = vmatpush1.msra.mxu0 0.0
  %734 = vmatprep.subr.mxu0 0.0
  %735 = vmatpush1.msra.mxu0 0.0
  %736 = vmatprep.subr.mxu0 0.0
  %737 = vmatpush1.msra.mxu0 0.0
  %738 = vmatprep.subr.mxu0 0.0
  %739 = vmatpush1.msra.mxu0 0.0
  %740 = vmatprep.subr.mxu0 0.0
  %741 = vmatpush1.msra.mxu0 0.0
  %742 = vmatprep.subr.mxu0 0.0
  %743 = vmatpush1.msra.mxu0 0.0
  %744 = vmatprep.subr.mxu0 0.0
  %745 = vmatpush1.msra.mxu0 0.0
  %746 = vmatprep.subr.mxu0 0.0
  %747 = vmatpush1.msra.mxu0 0.0
  %748 = vmatprep.subr.mxu0 0.0
  %749 = vmatpush1.msra.mxu0 0.0
  %750 = vmatprep.subr.mxu0 0.0
  %751 = vmatpush1.msra.mxu0 0.0
  %752 = vmatprep.subr.mxu0 0.0
  %753 = vmatpush1.msra.mxu0 0.0
  %754 = vmatprep.subr.mxu0 0.0
  %755 = vmatpush1.msra.mxu0 0.0
  %756 = vmatprep.subr.mxu0 0.0
  %757 = vmatpush1.msra.mxu0 0.0
  %758 = vmatprep.subr.mxu0 0.0
  %759 = vmatpush1.msra.mxu0 0.0
  %760 = vmatprep.subr.mxu0 0.0
  %761 = vmatpush1.msra.mxu0 0.0
  %762 = vmatprep.subr.mxu0 0.0
  %763 = vmatpush1.msra.mxu0 0.0
  %764 = vmatprep.subr.mxu0 0.0
  %765 = vmatpush1.msra.mxu0 0.0
  %766 = vmatprep.subr.mxu0 0.0
  %767 = vmatpush1.msra.mxu0 0.0
  %768 = vmatprep.subr.mxu0 0.0
  %769 = vmatpush1.msra.mxu0 0.0
  %770 = vmatprep.subr.mxu0 0.0
  %771 = vmatpush1.msra.mxu0 0.0
  %772 = vmatprep.subr.mxu0 0.0
  %773 = vmatpush1.msra.mxu0 0.0
  %774 = vmatprep.subr.mxu0 0.0
  %775 = vmatpush1.msra.mxu0 0.0
  %776 = vmatprep.subr.mxu0 0.0
  %777 = vmatpush1.msra.mxu0 0.0
  %778 = vmatprep.subr.mxu0 0.0
  %779 = vmatpush1.msra.mxu0 0.0
  %780 = vmatprep.subr.mxu0 0.0
  %781 = vmatpush1.msra.mxu0 0.0
  %782 = vmatprep.subr.mxu0 0.0
  %783 = vmatpush1.msra.mxu0 0.0
  %784 = vmatprep.subr.mxu0 0.0
  %785 = vmatpush1.msra.mxu0 0.0
  %786 = vmatprep.subr.mxu0 0.0
  %787 = vmatpush1.msra.mxu0 0.0
  %788 = vmatprep.subr.mxu0 0.0
  %789 = vmatpush1.msra.mxu0 0.0
  %790 = vmatprep.subr.mxu0 0.0
  %791 = vmatpush1.msra.mxu0 0.0
  %792 = vmatprep.mubr.f32.mxu0 0.0
  %793 = vmatmul.mubr.f32.gmra.mrb[0].mxu0 %v717
  %v794 = vpop.f32.mrb[0].mxu0
  %v795 = vadd.f32 0.0, %v794
  %v796 = vpop.f32.mrb[0].mxu0
  %v797 = vadd.f32 0.0, %v796
  %798 = vmatprep.mubr.f32.mxu0 0.0
  %799 = vmatmul.mubr.f32.gmra.mrb[0].mxu0 %v720
  %v800 = vpop.f32.mrb[0].mxu0
  %v801 = vadd.f32 0.0, %v800
  %v802 = vpop.f32.mrb[0].mxu0
  %v803 = vadd.f32 0.0, %v802
  %804 = vdwg.mxu0
  %v805 = vadd.f32 %v583, %v795
  %v806 = vadd.f32 %v584, %v797
  %v807 = vadd.f32 %v585, %v801
  %v808 = vadd.f32 %v586, %v803
  %s809 = scalar_lea.vmem %s3, 48
  %v810 = vld [vmem:[%s809] sm:$0xff]
  %v811 = vld [vmem:[%s809 + $0x8] sm:$0xff]
  %v813 = vsel %vm288, %v810, 0
  %v816 = vsel %vm288, %v811, 0
  %818 = vmatprep.subr.mxu0 %v712
  %819 = vmatpush1.msra.mxu0 %v711
  %820 = vmatprep.subr.mxu0 0.0
  %821 = vmatpush1.msra.mxu0 0.0
  %822 = vmatprep.subr.mxu0 0.0
  %823 = vmatpush1.msra.mxu0 0.0
  %824 = vmatprep.subr.mxu0 0.0
  %825 = vmatpush1.msra.mxu0 0.0
  %826 = vmatprep.subr.mxu0 0.0
  %827 = vmatpush1.msra.mxu0 0.0
  %828 = vmatprep.subr.mxu0 0.0
  %829 = vmatpush1.msra.mxu0 0.0
  %830 = vmatprep.subr.mxu0 0.0
  %831 = vmatpush1.msra.mxu0 0.0
  %832 = vmatprep.subr.mxu0 0.0
  %833 = vmatpush1.msra.mxu0 0.0
  %834 = vmatprep.subr.mxu0 0.0
  %835 = vmatpush1.msra.mxu0 0.0
  %836 = vmatprep.subr.mxu0 0.0
  %837 = vmatpush1.msra.mxu0 0.0
  %838 = vmatprep.subr.mxu0 0.0
  %839 = vmatpush1.msra.mxu0 0.0
  %840 = vmatprep.subr.mxu0 0.0
  %841 = vmatpush1.msra.mxu0 0.0
  %842 = vmatprep.subr.mxu0 0.0
  %843 = vmatpush1.msra.mxu0 0.0
  %844 = vmatprep.subr.mxu0 0.0
  %845 = vmatpush1.msra.mxu0 0.0
  %846 = vmatprep.subr.mxu0 0.0
  %847 = vmatpush1.msra.mxu0 0.0
  %848 = vmatprep.subr.mxu0 0.0
  %849 = vmatpush1.msra.mxu0 0.0
  %850 = vmatprep.subr.mxu0 0.0
  %851 = vmatpush1.msra.mxu0 0.0
  %852 = vmatprep.subr.mxu0 0.0
  %853 = vmatpush1.msra.mxu0 0.0
  %854 = vmatprep.subr.mxu0 0.0
  %855 = vmatpush1.msra.mxu0 0.0
  %856 = vmatprep.subr.mxu0 0.0
  %857 = vmatpush1.msra.mxu0 0.0
  %858 = vmatprep.subr.mxu0 0.0
  %859 = vmatpush1.msra.mxu0 0.0
  %860 = vmatprep.subr.mxu0 0.0
  %861 = vmatpush1.msra.mxu0 0.0
  %862 = vmatprep.subr.mxu0 0.0
  %863 = vmatpush1.msra.mxu0 0.0
  %864 = vmatprep.subr.mxu0 0.0
  %865 = vmatpush1.msra.mxu0 0.0
  %866 = vmatprep.subr.mxu0 0.0
  %867 = vmatpush1.msra.mxu0 0.0
  %868 = vmatprep.subr.mxu0 0.0
  %869 = vmatpush1.msra.mxu0 0.0
  %870 = vmatprep.subr.mxu0 0.0
  %871 = vmatpush1.msra.mxu0 0.0
  %872 = vmatprep.subr.mxu0 0.0
  %873 = vmatpush1.msra.mxu0 0.0
  %874 = vmatprep.subr.mxu0 0.0
  %875 = vmatpush1.msra.mxu0 0.0
  %876 = vmatprep.subr.mxu0 0.0
  %877 = vmatpush1.msra.mxu0 0.0
  %878 = vmatprep.subr.mxu0 0.0
  %879 = vmatpush1.msra.mxu0 0.0
  %880 = vmatprep.subr.mxu0 0.0
  %881 = vmatpush1.msra.mxu0 0.0
  %882 = vmatprep.mubr.f32.mxu0 0.0
  %883 = vmatmul.mubr.f32.gmra.mrb[0].mxu0 %v813
  %v884 = vpop.f32.mrb[0].mxu0
  %v885 = vadd.f32 0.0, %v884
  %v886 = vpop.f32.mrb[0].mxu0
  %v887 = vadd.f32 0.0, %v886
  %888 = vmatprep.mubr.f32.mxu0 0.0
  %889 = vmatmul.mubr.f32.gmra.mrb[0].mxu0 %v816
  %v890 = vpop.f32.mrb[0].mxu0
  %v891 = vadd.f32 0.0, %v890
  %v892 = vpop.f32.mrb[0].mxu0
  %v893 = vadd.f32 0.0, %v892
  %894 = vdwg.mxu0
  %v895 = vadd.f32 %v673, %v885
  %v896 = vadd.f32 %v674, %v887
  %v897 = vadd.f32 %v675, %v891
  %v898 = vadd.f32 %v676, %v893
  %s899 = scalar_lea.vmem %s2, 64
  %v900 = vld [vmem:[%s899] sm:$0xff]
  %v901 = vld [vmem:[%s899 + $0x8] sm:$0xff]
  %v903 = vsel %vm105, %v900, 0
  %v906 = vsel %vm105, %v901, 0
  %v908 = vsel %vm112, %v20, 0
  %v910 = vsel %vm112, %v25, 0
  %912 = vmatprep.subr.mxu0 %v910
  %913 = vmatpush1.msra.mxu0 %v908
  %914 = vmatprep.subr.mxu0 0.0
  %915 = vmatpush1.msra.mxu0 0.0
  %916 = vmatprep.subr.mxu0 0.0
  %917 = vmatpush1.msra.mxu0 0.0
  %918 = vmatprep.subr.mxu0 0.0
  %919 = vmatpush1.msra.mxu0 0.0
  %920 = vmatprep.subr.mxu0 0.0
  %921 = vmatpush1.msra.mxu0 0.0
  %922 = vmatprep.subr.mxu0 0.0
  %923 = vmatpush1.msra.mxu0 0.0
  %924 = vmatprep.subr.mxu0 0.0
  %925 = vmatpush1.msra.mxu0 0.0
  %926 = vmatprep.subr.mxu0 0.0
  %927 = vmatpush1.msra.mxu0 0.0
  %928 = vmatprep.subr.mxu0 0.0
  %929 = vmatpush1.msra.mxu0 0.0
  %930 = vmatprep.subr.mxu0 0.0
  %931 = vmatpush1.msra.mxu0 0.0
  %932 = vmatprep.subr.mxu0 0.0
  %933 = vmatpush1.msra.mxu0 0.0
  %934 = vmatprep.subr.mxu0 0.0
  %935 = vmatpush1.msra.mxu0 0.0
  %936 = vmatprep.subr.mxu0 0.0
  %937 = vmatpush1.msra.mxu0 0.0
  %938 = vmatprep.subr.mxu0 0.0
  %939 = vmatpush1.msra.mxu0 0.0
  %940 = vmatprep.subr.mxu0 0.0
  %941 = vmatpush1.msra.mxu0 0.0
  %942 = vmatprep.subr.mxu0 0.0
  %943 = vmatpush1.msra.mxu0 0.0
  %944 = vmatprep.subr.mxu0 0.0
  %945 = vmatpush1.msra.mxu0 0.0
  %946 = vmatprep.subr.mxu0 0.0
  %947 = vmatpush1.msra.mxu0 0.0
  %948 = vmatprep.subr.mxu0 0.0
  %949 = vmatpush1.msra.mxu0 0.0
  %950 = vmatprep.subr.mxu0 0.0
  %951 = vmatpush1.msra.mxu0 0.0
  %952 = vmatprep.subr.mxu0 0.0
  %953 = vmatpush1.msra.mxu0 0.0
  %954 = vmatprep.subr.mxu0 0.0
  %955 = vmatpush1.msra.mxu0 0.0
  %956 = vmatprep.subr.mxu0 0.0
  %957 = vmatpush1.msra.mxu0 0.0
  %958 = vmatprep.subr.mxu0 0.0
  %959 = vmatpush1.msra.mxu0 0.0
  %960 = vmatprep.subr.mxu0 0.0
  %961 = vmatpush1.msra.mxu0 0.0
  %962 = vmatprep.subr.mxu0 0.0
  %963 = vmatpush1.msra.mxu0 0.0
  %964 = vmatprep.subr.mxu0 0.0
  %965 = vmatpush1.msra.mxu0 0.0
  %966 = vmatprep.subr.mxu0 0.0
  %967 = vmatpush1.msra.mxu0 0.0
  %968 = vmatprep.subr.mxu0 0.0
  %969 = vmatpush1.msra.mxu0 0.0
  %970 = vmatprep.subr.mxu0 0.0
  %971 = vmatpush1.msra.mxu0 0.0
  %972 = vmatprep.subr.mxu0 0.0
  %973 = vmatpush1.msra.mxu0 0.0
  %974 = vmatprep.subr.mxu0 0.0
  %975 = vmatpush1.msra.mxu0 0.0
  %976 = vmatprep.mubr.f32.mxu0 0.0
  %977 = vmatmul.mubr.f32.gmra.mrb[0].mxu0 %v903
  %v978 = vpop.f32.mrb[0].mxu0
  %v979 = vadd.f32 0.0, %v978
  %v980 = vpop.f32.mrb[0].mxu0
  %v981 = vadd.f32 0.0, %v980
  %982 = vmatprep.mubr.f32.mxu0 0.0
  %983 = vmatmul.mubr.f32.gmra.mrb[0].mxu0 %v906
  %v984 = vpop.f32.mrb[0].mxu0
  %v985 = vadd.f32 0.0, %v984
  %v986 = vpop.f32.mrb[0].mxu0
  %v987 = vadd.f32 0.0, %v986
  %988 = vdwg.mxu0
  %v989 = vadd.f32 %v805, %v979
  %v990 = vadd.f32 %v806, %v981
  %v991 = vadd.f32 %v807, %v985
  %v992 = vadd.f32 %v808, %v987
  %s993 = scalar_lea.vmem %s3, 64
  %v994 = vld [vmem:[%s993] sm:$0xff]
  %v995 = vld [vmem:[%s993 + $0x8] sm:$0xff]
  %v997 = vsel %vm288, %v994, 0
  %v1000 = vsel %vm288, %v995, 0
  %1002 = vmatprep.subr.mxu0 %v22
  %1003 = vmatpush1.msra.mxu0 %v21
  %1004 = vmatprep.subr.mxu0 0.0
  %1005 = vmatpush1.msra.mxu0 0.0
  %1006 = vmatprep.subr.mxu0 0.0
  %1007 = vmatpush1.msra.mxu0 0.0
  %1008 = vmatprep.subr.mxu0 0.0
  %1009 = vmatpush1.msra.mxu0 0.0
  %1010 = vmatprep.subr.mxu0 0.0
  %1011 = vmatpush1.msra.mxu0 0.0
  %1012 = vmatprep.subr.mxu0 0.0
  %1013 = vmatpush1.msra.mxu0 0.0
  %1014 = vmatprep.subr.mxu0 0.0
  %1015 = vmatpush1.msra.mxu0 0.0
  %1016 = vmatprep.subr.mxu0 0.0
  %1017 = vmatpush1.msra.mxu0 0.0
  %1018 = vmatprep.subr.mxu0 0.0
  %1019 = vmatpush1.msra.mxu0 0.0
  %1020 = vmatprep.subr.mxu0 0.0
  %1021 = vmatpush1.msra.mxu0 0.0
  %1022 = vmatprep.subr.mxu0 0.0
  %1023 = vmatpush1.msra.mxu0 0.0
  %1024 = vmatprep.subr.mxu0 0.0
  %1025 = vmatpush1.msra.mxu0 0.0
  %1026 = vmatprep.subr.mxu0 0.0
  %1027 = vmatpush1.msra.mxu0 0.0
  %1028 = vmatprep.subr.mxu0 0.0
  %1029 = vmatpush1.msra.mxu0 0.0
  %1030 = vmatprep.subr.mxu0 0.0
  %1031 = vmatpush1.msra.mxu0 0.0
  %1032 = vmatprep.subr.mxu0 0.0
  %1033 = vmatpush1.msra.mxu0 0.0
  %1034 = vmatprep.subr.mxu0 0.0
  %1035 = vmatpush1.msra.mxu0 0.0
  %1036 = vmatprep.subr.mxu0 0.0
  %1037 = vmatpush1.msra.mxu0 0.0
  %1038 = vmatprep.subr.mxu0 0.0
  %1039 = vmatpush1.msra.mxu0 0.0
  %1040 = vmatprep.subr.mxu0 0.0
  %1041 = vmatpush1.msra.mxu0 0.0
  %1042 = vmatprep.subr.mxu0 0.0
  %1043 = vmatpush1.msra.mxu0 0.0
  %1044 = vmatprep.subr.mxu0 0.0
  %1045 = vmatpush1.msra.mxu0 0.0
  %1046 = vmatprep.subr.mxu0 0.0
  %1047 = vmatpush1.msra.mxu0 0.0
  %1048 = vmatprep.subr.mxu0 0.0
  %1049 = vmatpush1.msra.mxu0 0.0
  %1050 = vmatprep.subr.mxu0 0.0
  %1051 = vmatpush1.msra.mxu0 0.0
  %1052 = vmatprep.subr.mxu0 0.0
  %1053 = vmatpush1.msra.mxu0 0.0
  %1054 = vmatprep.subr.mxu0 0.0
  %1055 = vmatpush1.msra.mxu0 0.0
  %1056 = vmatprep.subr.mxu0 0.0
  %1057 = vmatpush1.msra.mxu0 0.0
  %1058 = vmatprep.subr.mxu0 0.0
  %1059 = vmatpush1.msra.mxu0 0.0
  %1060 = vmatprep.subr.mxu0 0.0
  %1061 = vmatpush1.msra.mxu0 0.0
  %1062 = vmatprep.subr.mxu0 0.0
  %1063 = vmatpush1.msra.mxu0 0.0
  %1064 = vmatprep.subr.mxu0 0.0
  %1065 = vmatpush1.msra.mxu0 0.0
  %1066 = vmatprep.mubr.f32.mxu0 0.0
  %1067 = vmatmul.mubr.f32.gmra.mrb[0].mxu0 %v997
  %v1068 = vpop.f32.mrb[0].mxu0
  %v1069 = vadd.f32 0.0, %v1068
  %v1070 = vpop.f32.mrb[0].mxu0
  %v1071 = vadd.f32 0.0, %v1070
  %1072 = vmatprep.mubr.f32.mxu0 0.0
  %1073 = vmatmul.mubr.f32.gmra.mrb[0].mxu0 %v1000
  %v1074 = vpop.f32.mrb[0].mxu0
  %v1075 = vadd.f32 0.0, %v1074
  %v1076 = vpop.f32.mrb[0].mxu0
  %v1077 = vadd.f32 0.0, %v1076
  %1078 = vdwg.mxu0
  %v1079 = vadd.f32 %v895, %v1069
  %v1080 = vadd.f32 %v896, %v1071
  %v1081 = vadd.f32 %v897, %v1075
  %v1082 = vadd.f32 %v898, %v1077
  %s1083 = scalar_lea.vmem %s4, 10
  %v1084 = vld [vmem:[%s1083] sm:$0x3]
  %1085 = vrot.lane.b32.xlu0 %v20, 127
  %v1086 = vpop.permute.xlu0 %1085
  %1087 = vrot.lane.b32.xlu0 %v25, 127
  %v1088 = vpop.permute.xlu0 %1087
  %vm1089 = vcmask 1039360
  %v1090 = vsel %vm1089, %v1086, %v1088
  %v1094 = vsel %vm1089, %v1088, %v1086
  %v1096 = vlaneseq
  %v1097 = vshrl.u32 %v1096, 7
  %v1098 = vsub.s32 0, %v1097
  %v1099 = vrot.slane %v1084, %v1098
  %v1100 = vlaneseq
  %v1101 = vshrl.u32 %v1100, 7
  %v1102 = vsub.s32 1, %v1101
  %v1103 = vrot.slane %v1084, %v1102
  %v1106 = vmul.f32 %v1090, %v1099
  %v1107 = vmul.f32 %v1094, %v1103
  %1108 = vrot.lane.b32.xlu0 %v21, 127
  %v1109 = vpop.permute.xlu0 %1108
  %1110 = vrot.lane.b32.xlu0 %v22, 127
  %v1111 = vpop.permute.xlu0 %1110
  %v1112 = vsel %vm1089, %v1109, %v1111
  %v1116 = vsel %vm1089, %v1111, %v1109
  %v1117 = vmul.f32 %v1112, %v1099
  %v1118 = vmul.f32 %v1116, %v1103
  %s1119 = scalar_lea.vmem %s2, 80
  %v1120 = vld [vmem:[%s1119] sm:$0xff]
  %v1121 = vld [vmem:[%s1119 + $0x8] sm:$0xff]
  %v1123 = vsel %vm105, %v1120, 0
  %v1126 = vsel %vm105, %v1121, 0
  %v1129 = vsel %vm112, %v1106, 0
  %v1132 = vsel %vm112, %v1107, 0
  %1134 = vmatprep.subr.mxu0 %v1132
  %1135 = vmatpush1.msra.mxu0 %v1129
  %1136 = vmatprep.subr.mxu0 0.0
  %1137 = vmatpush1.msra.mxu0 0.0
  %1138 = vmatprep.subr.mxu0 0.0
  %1139 = vmatpush1.msra.mxu0 0.0
  %1140 = vmatprep.subr.mxu0 0.0
  %1141 = vmatpush1.msra.mxu0 0.0
  %1142 = vmatprep.subr.mxu0 0.0
  %1143 = vmatpush1.msra.mxu0 0.0
  %1144 = vmatprep.subr.mxu0 0.0
  %1145 = vmatpush1.msra.mxu0 0.0
  %1146 = vmatprep.subr.mxu0 0.0
  %1147 = vmatpush1.msra.mxu0 0.0
  %1148 = vmatprep.subr.mxu0 0.0
  %1149 = vmatpush1.msra.mxu0 0.0
  %1150 = vmatprep.subr.mxu0 0.0
  %1151 = vmatpush1.msra.mxu0 0.0
  %1152 = vmatprep.subr.mxu0 0.0
  %1153 = vmatpush1.msra.mxu0 0.0
  %1154 = vmatprep.subr.mxu0 0.0
  %1155 = vmatpush1.msra.mxu0 0.0
  %1156 = vmatprep.subr.mxu0 0.0
  %1157 = vmatpush1.msra.mxu0 0.0
  %1158 = vmatprep.subr.mxu0 0.0
  %1159 = vmatpush1.msra.mxu0 0.0
  %1160 = vmatprep.subr.mxu0 0.0
  %1161 = vmatpush1.msra.mxu0 0.0
  %1162 = vmatprep.subr.mxu0 0.0
  %1163 = vmatpush1.msra.mxu0 0.0
  %1164 = vmatprep.subr.mxu0 0.0
  %1165 = vmatpush1.msra.mxu0 0.0
  %1166 = vmatprep.subr.mxu0 0.0
  %1167 = vmatpush1.msra.mxu0 0.0
  %1168 = vmatprep.subr.mxu0 0.0
  %1169 = vmatpush1.msra.mxu0 0.0
  %1170 = vmatprep.subr.mxu0 0.0
  %1171 = vmatpush1.msra.mxu0 0.0
  %1172 = vmatprep.subr.mxu0 0.0
  %1173 = vmatpush1.msra.mxu0 0.0
  %1174 = vmatprep.subr.mxu0 0.0
  %1175 = vmatpush1.msra.mxu0 0.0
  %1176 = vmatprep.subr.mxu0 0.0
  %1177 = vmatpush1.msra.mxu0 0.0
  %1178 = vmatprep.subr.mxu0 0.0
  %1179 = vmatpush1.msra.mxu0 0.0
  %1180 = vmatprep.subr.mxu0 0.0
  %1181 = vmatpush1.msra.mxu0 0.0
  %1182 = vmatprep.subr.mxu0 0.0
  %1183 = vmatpush1.msra.mxu0 0.0
  %1184 = vmatprep.subr.mxu0 0.0
  %1185 = vmatpush1.msra.mxu0 0.0
  %1186 = vmatprep.subr.mxu0 0.0
  %1187 = vmatpush1.msra.mxu0 0.0
  %1188 = vmatprep.subr.mxu0 0.0
  %1189 = vmatpush1.msra.mxu0 0.0
  %1190 = vmatprep.subr.mxu0 0.0
  %1191 = vmatpush1.msra.mxu0 0.0
  %1192 = vmatprep.subr.mxu0 0.0
  %1193 = vmatpush1.msra.mxu0 0.0
  %1194 = vmatprep.subr.mxu0 0.0
  %1195 = vmatpush1.msra.mxu0 0.0
  %1196 = vmatprep.subr.mxu0 0.0
  %1197 = vmatpush1.msra.mxu0 0.0
  %1198 = vmatprep.mubr.f32.mxu0 0.0
  %1199 = vmatmul.mubr.f32.gmra.mrb[0].mxu0 %v1123
  %v1200 = vpop.f32.mrb[0].mxu0
  %v1201 = vadd.f32 0.0, %v1200
  %v1202 = vpop.f32.mrb[0].mxu0
  %v1203 = vadd.f32 0.0, %v1202
  %1204 = vmatprep.mubr.f32.mxu0 0.0
  %1205 = vmatmul.mubr.f32.gmra.mrb[0].mxu0 %v1126
  %v1206 = vpop.f32.mrb[0].mxu0
  %v1207 = vadd.f32 0.0, %v1206
  %v1208 = vpop.f32.mrb[0].mxu0
  %v1209 = vadd.f32 0.0, %v1208
  %1210 = vdwg.mxu0
  %v1211 = vadd.f32 %v989, %v1201
  %v1212 = vadd.f32 %v990, %v1203
  %v1213 = vadd.f32 %v991, %v1207
  %v1214 = vadd.f32 %v992, %v1209
  %s1215 = scalar_lea.vmem %s3, 80
  %v1216 = vld [vmem:[%s1215] sm:$0xff]
  %v1217 = vld [vmem:[%s1215 + $0x8] sm:$0xff]
  %v1219 = vsel %vm288, %v1216, 0
  %v1222 = vsel %vm288, %v1217, 0
  %1224 = vmatprep.subr.mxu0 %v1118
  %1225 = vmatpush1.msra.mxu0 %v1117
  %1226 = vmatprep.subr.mxu0 0.0
  %1227 = vmatpush1.msra.mxu0 0.0
  %1228 = vmatprep.subr.mxu0 0.0
  %1229 = vmatpush1.msra.mxu0 0.0
  %1230 = vmatprep.subr.mxu0 0.0
  %1231 = vmatpush1.msra.mxu0 0.0
  %1232 = vmatprep.subr.mxu0 0.0
  %1233 = vmatpush1.msra.mxu0 0.0
  %1234 = vmatprep.subr.mxu0 0.0
  %1235 = vmatpush1.msra.mxu0 0.0
  %1236 = vmatprep.subr.mxu0 0.0
  %1237 = vmatpush1.msra.mxu0 0.0
  %1238 = vmatprep.subr.mxu0 0.0
  %1239 = vmatpush1.msra.mxu0 0.0
  %1240 = vmatprep.subr.mxu0 0.0
  %1241 = vmatpush1.msra.mxu0 0.0
  %1242 = vmatprep.subr.mxu0 0.0
  %1243 = vmatpush1.msra.mxu0 0.0
  %1244 = vmatprep.subr.mxu0 0.0
  %1245 = vmatpush1.msra.mxu0 0.0
  %1246 = vmatprep.subr.mxu0 0.0
  %1247 = vmatpush1.msra.mxu0 0.0
  %1248 = vmatprep.subr.mxu0 0.0
  %1249 = vmatpush1.msra.mxu0 0.0
  %1250 = vmatprep.subr.mxu0 0.0
  %1251 = vmatpush1.msra.mxu0 0.0
  %1252 = vmatprep.subr.mxu0 0.0
  %1253 = vmatpush1.msra.mxu0 0.0
  %1254 = vmatprep.subr.mxu0 0.0
  %1255 = vmatpush1.msra.mxu0 0.0
  %1256 = vmatprep.subr.mxu0 0.0
  %1257 = vmatpush1.msra.mxu0 0.0
  %1258 = vmatprep.subr.mxu0 0.0
  %1259 = vmatpush1.msra.mxu0 0.0
  %1260 = vmatprep.subr.mxu0 0.0
  %1261 = vmatpush1.msra.mxu0 0.0
  %1262 = vmatprep.subr.mxu0 0.0
  %1263 = vmatpush1.msra.mxu0 0.0
  %1264 = vmatprep.subr.mxu0 0.0
  %1265 = vmatpush1.msra.mxu0 0.0
  %1266 = vmatprep.subr.mxu0 0.0
  %1267 = vmatpush1.msra.mxu0 0.0
  %1268 = vmatprep.subr.mxu0 0.0
  %1269 = vmatpush1.msra.mxu0 0.0
  %1270 = vmatprep.subr.mxu0 0.0
  %1271 = vmatpush1.msra.mxu0 0.0
  %1272 = vmatprep.subr.mxu0 0.0
  %1273 = vmatpush1.msra.mxu0 0.0
  %1274 = vmatprep.subr.mxu0 0.0
  %1275 = vmatpush1.msra.mxu0 0.0
  %1276 = vmatprep.subr.mxu0 0.0
  %1277 = vmatpush1.msra.mxu0 0.0
  %1278 = vmatprep.subr.mxu0 0.0
  %1279 = vmatpush1.msra.mxu0 0.0
  %1280 = vmatprep.subr.mxu0 0.0
  %1281 = vmatpush1.msra.mxu0 0.0
  %1282 = vmatprep.subr.mxu0 0.0
  %1283 = vmatpush1.msra.mxu0 0.0
  %1284 = vmatprep.subr.mxu0 0.0
  %1285 = vmatpush1.msra.mxu0 0.0
  %1286 = vmatprep.subr.mxu0 0.0
  %1287 = vmatpush1.msra.mxu0 0.0
  %1288 = vmatprep.mubr.f32.mxu0 0.0
  %1289 = vmatmul.mubr.f32.gmra.mrb[0].mxu0 %v1219
  %v1290 = vpop.f32.mrb[0].mxu0
  %v1291 = vadd.f32 0.0, %v1290
  %v1292 = vpop.f32.mrb[0].mxu0
  %v1293 = vadd.f32 0.0, %v1292
  %1294 = vmatprep.mubr.f32.mxu0 0.0
  %1295 = vmatmul.mubr.f32.gmra.mrb[0].mxu0 %v1222
  %v1296 = vpop.f32.mrb[0].mxu0
  %v1297 = vadd.f32 0.0, %v1296
  %v1298 = vpop.f32.mrb[0].mxu0
  %v1299 = vadd.f32 0.0, %v1298
  %1300 = vdwg.mxu0
  %v1301 = vadd.f32 %v1079, %v1291
  %v1302 = vadd.f32 %v1080, %v1293
  %v1303 = vadd.f32 %v1081, %v1297
  %v1304 = vadd.f32 %v1082, %v1299
  %s1305 = scalar_lea.vmem %s4, 12
  %v1306 = vld [vmem:[%s1305] sm:$0x3]
  %1307 = vrot.lane.b32.xlu0 %v20, 113
  %v1308 = vpop.permute.xlu0 %1307
  %1309 = vrot.lane.b32.xlu0 %v25, 113
  %v1310 = vpop.permute.xlu0 %1309
  %vm1311 = vcmask 924672
  %v1312 = vsel %vm1311, %v1308, %v1310
  %v1316 = vsel %vm1311, %v1310, %v1308
  %v1318 = vlaneseq
  %v1319 = vshrl.u32 %v1318, 7
  %v1320 = vsub.s32 0, %v1319
  %v1321 = vrot.slane %v1306, %v1320
  %v1322 = vlaneseq
  %v1323 = vshrl.u32 %v1322, 7
  %v1324 = vsub.s32 1, %v1323
  %v1325 = vrot.slane %v1306, %v1324
  %v1328 = vmul.f32 %v1312, %v1321
  %v1329 = vmul.f32 %v1316, %v1325
  %1330 = vrot.lane.b32.xlu0 %v21, 113
  %v1331 = vpop.permute.xlu0 %1330
  %1332 = vrot.lane.b32.xlu0 %v22, 113
  %v1333 = vpop.permute.xlu0 %1332
  %v1334 = vsel %vm1311, %v1331, %v1333
  %v1338 = vsel %vm1311, %v1333, %v1331
  %v1339 = vmul.f32 %v1334, %v1321
  %v1340 = vmul.f32 %v1338, %v1325
  %s1341 = scalar_lea.vmem %s2, 96
  %v1342 = vld [vmem:[%s1341] sm:$0xff]
  %v1343 = vld [vmem:[%s1341 + $0x8] sm:$0xff]
  %v1345 = vsel %vm105, %v1342, 0
  %v1348 = vsel %vm105, %v1343, 0
  %v1351 = vsel %vm112, %v1328, 0
  %v1354 = vsel %vm112, %v1329, 0
  %1356 = vmatprep.subr.mxu0 %v1354
  %1357 = vmatpush1.msra.mxu0 %v1351
  %1358 = vmatprep.subr.mxu0 0.0
  %1359 = vmatpush1.msra.mxu0 0.0
  %1360 = vmatprep.subr.mxu0 0.0
  %1361 = vmatpush1.msra.mxu0 0.0
  %1362 = vmatprep.subr.mxu0 0.0
  %1363 = vmatpush1.msra.mxu0 0.0
  %1364 = vmatprep.subr.mxu0 0.0
  %1365 = vmatpush1.msra.mxu0 0.0
  %1366 = vmatprep.subr.mxu0 0.0
  %1367 = vmatpush1.msra.mxu0 0.0
  %1368 = vmatprep.subr.mxu0 0.0
  %1369 = vmatpush1.msra.mxu0 0.0
  %1370 = vmatprep.subr.mxu0 0.0
  %1371 = vmatpush1.msra.mxu0 0.0
  %1372 = vmatprep.subr.mxu0 0.0
  %1373 = vmatpush1.msra.mxu0 0.0
  %1374 = vmatprep.subr.mxu0 0.0
  %1375 = vmatpush1.msra.mxu0 0.0
  %1376 = vmatprep.subr.mxu0 0.0
  %1377 = vmatpush1.msra.mxu0 0.0
  %1378 = vmatprep.subr.mxu0 0.0
  %1379 = vmatpush1.msra.mxu0 0.0
  %1380 = vmatprep.subr.mxu0 0.0
  %1381 = vmatpush1.msra.mxu0 0.0
  %1382 = vmatprep.subr.mxu0 0.0
  %1383 = vmatpush1.msra.mxu0 0.0
  %1384 = vmatprep.subr.mxu0 0.0
  %1385 = vmatpush1.msra.mxu0 0.0
  %1386 = vmatprep.subr.mxu0 0.0
  %1387 = vmatpush1.msra.mxu0 0.0
  %1388 = vmatprep.subr.mxu0 0.0
  %1389 = vmatpush1.msra.mxu0 0.0
  %1390 = vmatprep.subr.mxu0 0.0
  %1391 = vmatpush1.msra.mxu0 0.0
  %1392 = vmatprep.subr.mxu0 0.0
  %1393 = vmatpush1.msra.mxu0 0.0
  %1394 = vmatprep.subr.mxu0 0.0
  %1395 = vmatpush1.msra.mxu0 0.0
  %1396 = vmatprep.subr.mxu0 0.0
  %1397 = vmatpush1.msra.mxu0 0.0
  %1398 = vmatprep.subr.mxu0 0.0
  %1399 = vmatpush1.msra.mxu0 0.0
  %1400 = vmatprep.subr.mxu0 0.0
  %1401 = vmatpush1.msra.mxu0 0.0
  %1402 = vmatprep.subr.mxu0 0.0
  %1403 = vmatpush1.msra.mxu0 0.0
  %1404 = vmatprep.subr.mxu0 0.0
  %1405 = vmatpush1.msra.mxu0 0.0
  %1406 = vmatprep.subr.mxu0 0.0
  %1407 = vmatpush1.msra.mxu0 0.0
  %1408 = vmatprep.subr.mxu0 0.0
  %1409 = vmatpush1.msra.mxu0 0.0
  %1410 = vmatprep.subr.mxu0 0.0
  %1411 = vmatpush1.msra.mxu0 0.0
  %1412 = vmatprep.subr.mxu0 0.0
  %1413 = vmatpush1.msra.mxu0 0.0
  %1414 = vmatprep.subr.mxu0 0.0
  %1415 = vmatpush1.msra.mxu0 0.0
  %1416 = vmatprep.subr.mxu0 0.0
  %1417 = vmatpush1.msra.mxu0 0.0
  %1418 = vmatprep.subr.mxu0 0.0
  %1419 = vmatpush1.msra.mxu0 0.0
  %1420 = vmatprep.mubr.f32.mxu0 0.0
  %1421 = vmatmul.mubr.f32.gmra.mrb[0].mxu0 %v1345
  %v1422 = vpop.f32.mrb[0].mxu0
  %v1423 = vadd.f32 0.0, %v1422
  %v1424 = vpop.f32.mrb[0].mxu0
  %v1425 = vadd.f32 0.0, %v1424
  %1426 = vmatprep.mubr.f32.mxu0 0.0
  %1427 = vmatmul.mubr.f32.gmra.mrb[0].mxu0 %v1348
  %v1428 = vpop.f32.mrb[0].mxu0
  %v1429 = vadd.f32 0.0, %v1428
  %v1430 = vpop.f32.mrb[0].mxu0
  %v1431 = vadd.f32 0.0, %v1430
  %1432 = vdwg.mxu0
  %v1433 = vadd.f32 %v1211, %v1423
  %v1434 = vadd.f32 %v1212, %v1425
  %v1435 = vadd.f32 %v1213, %v1429
  %v1436 = vadd.f32 %v1214, %v1431
  %s1437 = scalar_lea.vmem %s3, 96
  %v1438 = vld [vmem:[%s1437] sm:$0xff]
  %v1439 = vld [vmem:[%s1437 + $0x8] sm:$0xff]
  %v1441 = vsel %vm288, %v1438, 0
  %v1444 = vsel %vm288, %v1439, 0
  %1446 = vmatprep.subr.mxu0 %v1340
  %1447 = vmatpush1.msra.mxu0 %v1339
  %1448 = vmatprep.subr.mxu0 0.0
  %1449 = vmatpush1.msra.mxu0 0.0
  %1450 = vmatprep.subr.mxu0 0.0
  %1451 = vmatpush1.msra.mxu0 0.0
  %1452 = vmatprep.subr.mxu0 0.0
  %1453 = vmatpush1.msra.mxu0 0.0
  %1454 = vmatprep.subr.mxu0 0.0
  %1455 = vmatpush1.msra.mxu0 0.0
  %1456 = vmatprep.subr.mxu0 0.0
  %1457 = vmatpush1.msra.mxu0 0.0
  %1458 = vmatprep.subr.mxu0 0.0
  %1459 = vmatpush1.msra.mxu0 0.0
  %1460 = vmatprep.subr.mxu0 0.0
  %1461 = vmatpush1.msra.mxu0 0.0
  %1462 = vmatprep.subr.mxu0 0.0
  %1463 = vmatpush1.msra.mxu0 0.0
  %1464 = vmatprep.subr.mxu0 0.0
  %1465 = vmatpush1.msra.mxu0 0.0
  %1466 = vmatprep.subr.mxu0 0.0
  %1467 = vmatpush1.msra.mxu0 0.0
  %1468 = vmatprep.subr.mxu0 0.0
  %1469 = vmatpush1.msra.mxu0 0.0
  %1470 = vmatprep.subr.mxu0 0.0
  %1471 = vmatpush1.msra.mxu0 0.0
  %1472 = vmatprep.subr.mxu0 0.0
  %1473 = vmatpush1.msra.mxu0 0.0
  %1474 = vmatprep.subr.mxu0 0.0
  %1475 = vmatpush1.msra.mxu0 0.0
  %1476 = vmatprep.subr.mxu0 0.0
  %1477 = vmatpush1.msra.mxu0 0.0
  %1478 = vmatprep.subr.mxu0 0.0
  %1479 = vmatpush1.msra.mxu0 0.0
  %1480 = vmatprep.subr.mxu0 0.0
  %1481 = vmatpush1.msra.mxu0 0.0
  %1482 = vmatprep.subr.mxu0 0.0
  %1483 = vmatpush1.msra.mxu0 0.0
  %1484 = vmatprep.subr.mxu0 0.0
  %1485 = vmatpush1.msra.mxu0 0.0
  %1486 = vmatprep.subr.mxu0 0.0
  %1487 = vmatpush1.msra.mxu0 0.0
  %1488 = vmatprep.subr.mxu0 0.0
  %1489 = vmatpush1.msra.mxu0 0.0
  %1490 = vmatprep.subr.mxu0 0.0
  %1491 = vmatpush1.msra.mxu0 0.0
  %1492 = vmatprep.subr.mxu0 0.0
  %1493 = vmatpush1.msra.mxu0 0.0
  %1494 = vmatprep.subr.mxu0 0.0
  %1495 = vmatpush1.msra.mxu0 0.0
  %1496 = vmatprep.subr.mxu0 0.0
  %1497 = vmatpush1.msra.mxu0 0.0
  %1498 = vmatprep.subr.mxu0 0.0
  %1499 = vmatpush1.msra.mxu0 0.0
  %1500 = vmatprep.subr.mxu0 0.0
  %1501 = vmatpush1.msra.mxu0 0.0
  %1502 = vmatprep.subr.mxu0 0.0
  %1503 = vmatpush1.msra.mxu0 0.0
  %1504 = vmatprep.subr.mxu0 0.0
  %1505 = vmatpush1.msra.mxu0 0.0
  %1506 = vmatprep.subr.mxu0 0.0
  %1507 = vmatpush1.msra.mxu0 0.0
  %1508 = vmatprep.subr.mxu0 0.0
  %1509 = vmatpush1.msra.mxu0 0.0
  %1510 = vmatprep.mubr.f32.mxu0 0.0
  %1511 = vmatmul.mubr.f32.gmra.mrb[0].mxu0 %v1441
  %v1512 = vpop.f32.mrb[0].mxu0
  %v1513 = vadd.f32 0.0, %v1512
  %v1514 = vpop.f32.mrb[0].mxu0
  %v1515 = vadd.f32 0.0, %v1514
  %1516 = vmatprep.mubr.f32.mxu0 0.0
  %1517 = vmatmul.mubr.f32.gmra.mrb[0].mxu0 %v1444
  %v1518 = vpop.f32.mrb[0].mxu0
  %v1519 = vadd.f32 0.0, %v1518
  %v1520 = vpop.f32.mrb[0].mxu0
  %v1521 = vadd.f32 0.0, %v1520
  %1522 = vdwg.mxu0
  %v1523 = vadd.f32 %v1301, %v1513
  %v1524 = vadd.f32 %v1302, %v1515
  %v1525 = vadd.f32 %v1303, %v1519
  %v1526 = vadd.f32 %v1304, %v1521
  %s1527 = scalar_lea.vmem %s4, 14
  %v1528 = vld [vmem:[%s1527] sm:$0x3]
  %1529 = vrot.lane.b32.xlu0 %v20, 112
  %v1530 = vpop.permute.xlu0 %1529
  %1531 = vrot.lane.b32.xlu0 %v25, 112
  %v1532 = vpop.permute.xlu0 %1531
  %vm1533 = vcmask 916480
  %v1534 = vsel %vm1533, %v1530, %v1532
  %v1538 = vsel %vm1533, %v1532, %v1530
  %v1540 = vlaneseq
  %v1541 = vshrl.u32 %v1540, 7
  %v1542 = vsub.s32 0, %v1541
  %v1543 = vrot.slane %v1528, %v1542
  %v1544 = vlaneseq
  %v1545 = vshrl.u32 %v1544, 7
  %v1546 = vsub.s32 1, %v1545
  %v1547 = vrot.slane %v1528, %v1546
  %v1550 = vmul.f32 %v1534, %v1543
  %v1551 = vmul.f32 %v1538, %v1547
  %1552 = vrot.lane.b32.xlu0 %v21, 112
  %v1553 = vpop.permute.xlu0 %1552
  %1554 = vrot.lane.b32.xlu0 %v22, 112
  %v1555 = vpop.permute.xlu0 %1554
  %v1556 = vsel %vm1533, %v1553, %v1555
  %v1560 = vsel %vm1533, %v1555, %v1553
  %v1561 = vmul.f32 %v1556, %v1543
  %v1562 = vmul.f32 %v1560, %v1547
  %s1563 = scalar_lea.vmem %s2, 112
  %v1564 = vld [vmem:[%s1563] sm:$0xff]
  %v1565 = vld [vmem:[%s1563 + $0x8] sm:$0xff]
  %v1567 = vsel %vm105, %v1564, 0
  %v1570 = vsel %vm105, %v1565, 0
  %v1573 = vsel %vm112, %v1550, 0
  %v1576 = vsel %vm112, %v1551, 0
  %1578 = vmatprep.subr.mxu0 %v1576
  %1579 = vmatpush1.msra.mxu0 %v1573
  %1580 = vmatprep.subr.mxu0 0.0
  %1581 = vmatpush1.msra.mxu0 0.0
  %1582 = vmatprep.subr.mxu0 0.0
  %1583 = vmatpush1.msra.mxu0 0.0
  %1584 = vmatprep.subr.mxu0 0.0
  %1585 = vmatpush1.msra.mxu0 0.0
  %1586 = vmatprep.subr.mxu0 0.0
  %1587 = vmatpush1.msra.mxu0 0.0
  %1588 = vmatprep.subr.mxu0 0.0
  %1589 = vmatpush1.msra.mxu0 0.0
  %1590 = vmatprep.subr.mxu0 0.0
  %1591 = vmatpush1.msra.mxu0 0.0
  %1592 = vmatprep.subr.mxu0 0.0
  %1593 = vmatpush1.msra.mxu0 0.0
  %1594 = vmatprep.subr.mxu0 0.0
  %1595 = vmatpush1.msra.mxu0 0.0
  %1596 = vmatprep.subr.mxu0 0.0
  %1597 = vmatpush1.msra.mxu0 0.0
  %1598 = vmatprep.subr.mxu0 0.0
  %1599 = vmatpush1.msra.mxu0 0.0
  %1600 = vmatprep.subr.mxu0 0.0
  %1601 = vmatpush1.msra.mxu0 0.0
  %1602 = vmatprep.subr.mxu0 0.0
  %1603 = vmatpush1.msra.mxu0 0.0
  %1604 = vmatprep.subr.mxu0 0.0
  %1605 = vmatpush1.msra.mxu0 0.0
  %1606 = vmatprep.subr.mxu0 0.0
  %1607 = vmatpush1.msra.mxu0 0.0
  %1608 = vmatprep.subr.mxu0 0.0
  %1609 = vmatpush1.msra.mxu0 0.0
  %1610 = vmatprep.subr.mxu0 0.0
  %1611 = vmatpush1.msra.mxu0 0.0
  %1612 = vmatprep.subr.mxu0 0.0
  %1613 = vmatpush1.msra.mxu0 0.0
  %1614 = vmatprep.subr.mxu0 0.0
  %1615 = vmatpush1.msra.mxu0 0.0
  %1616 = vmatprep.subr.mxu0 0.0
  %1617 = vmatpush1.msra.mxu0 0.0
  %1618 = vmatprep.subr.mxu0 0.0
  %1619 = vmatpush1.msra.mxu0 0.0
  %1620 = vmatprep.subr.mxu0 0.0
  %1621 = vmatpush1.msra.mxu0 0.0
  %1622 = vmatprep.subr.mxu0 0.0
  %1623 = vmatpush1.msra.mxu0 0.0
  %1624 = vmatprep.subr.mxu0 0.0
  %1625 = vmatpush1.msra.mxu0 0.0
  %1626 = vmatprep.subr.mxu0 0.0
  %1627 = vmatpush1.msra.mxu0 0.0
  %1628 = vmatprep.subr.mxu0 0.0
  %1629 = vmatpush1.msra.mxu0 0.0
  %1630 = vmatprep.subr.mxu0 0.0
  %1631 = vmatpush1.msra.mxu0 0.0
  %1632 = vmatprep.subr.mxu0 0.0
  %1633 = vmatpush1.msra.mxu0 0.0
  %1634 = vmatprep.subr.mxu0 0.0
  %1635 = vmatpush1.msra.mxu0 0.0
  %1636 = vmatprep.subr.mxu0 0.0
  %1637 = vmatpush1.msra.mxu0 0.0
  %1638 = vmatprep.subr.mxu0 0.0
  %1639 = vmatpush1.msra.mxu0 0.0
  %1640 = vmatprep.subr.mxu0 0.0
  %1641 = vmatpush1.msra.mxu0 0.0
  %1642 = vmatprep.mubr.f32.mxu0 0.0
  %1643 = vmatmul.mubr.f32.gmra.mrb[0].mxu0 %v1567
  %v1644 = vpop.f32.mrb[0].mxu0
  %v1645 = vadd.f32 0.0, %v1644
  %v1646 = vpop.f32.mrb[0].mxu0
  %v1647 = vadd.f32 0.0, %v1646
  %1648 = vmatprep.mubr.f32.mxu0 0.0
  %1649 = vmatmul.mubr.f32.gmra.mrb[0].mxu0 %v1570
  %v1650 = vpop.f32.mrb[0].mxu0
  %v1651 = vadd.f32 0.0, %v1650
  %v1652 = vpop.f32.mrb[0].mxu0
  %v1653 = vadd.f32 0.0, %v1652
  %1654 = vdwg.mxu0
  %v1655 = vadd.f32 %v1433, %v1645
  %v1656 = vadd.f32 %v1434, %v1647
  %v1657 = vadd.f32 %v1435, %v1651
  %v1658 = vadd.f32 %v1436, %v1653
  %s1659 = scalar_lea.vmem %s3, 112
  %v1660 = vld [vmem:[%s1659] sm:$0xff]
  %v1661 = vld [vmem:[%s1659 + $0x8] sm:$0xff]
  %v1663 = vsel %vm288, %v1660, 0
  %v1666 = vsel %vm288, %v1661, 0
  %1668 = vmatprep.subr.mxu0 %v1562
  %1669 = vmatpush1.msra.mxu0 %v1561
  %1670 = vmatprep.subr.mxu0 0.0
  %1671 = vmatpush1.msra.mxu0 0.0
  %1672 = vmatprep.subr.mxu0 0.0
  %1673 = vmatpush1.msra.mxu0 0.0
  %1674 = vmatprep.subr.mxu0 0.0
  %1675 = vmatpush1.msra.mxu0 0.0
  %1676 = vmatprep.subr.mxu0 0.0
  %1677 = vmatpush1.msra.mxu0 0.0
  %1678 = vmatprep.subr.mxu0 0.0
  %1679 = vmatpush1.msra.mxu0 0.0
  %1680 = vmatprep.subr.mxu0 0.0
  %1681 = vmatpush1.msra.mxu0 0.0
  %1682 = vmatprep.subr.mxu0 0.0
  %1683 = vmatpush1.msra.mxu0 0.0
  %1684 = vmatprep.subr.mxu0 0.0
  %1685 = vmatpush1.msra.mxu0 0.0
  %1686 = vmatprep.subr.mxu0 0.0
  %1687 = vmatpush1.msra.mxu0 0.0
  %1688 = vmatprep.subr.mxu0 0.0
  %1689 = vmatpush1.msra.mxu0 0.0
  %1690 = vmatprep.subr.mxu0 0.0
  %1691 = vmatpush1.msra.mxu0 0.0
  %1692 = vmatprep.subr.mxu0 0.0
  %1693 = vmatpush1.msra.mxu0 0.0
  %1694 = vmatprep.subr.mxu0 0.0
  %1695 = vmatpush1.msra.mxu0 0.0
  %1696 = vmatprep.subr.mxu0 0.0
  %1697 = vmatpush1.msra.mxu0 0.0
  %1698 = vmatprep.subr.mxu0 0.0
  %1699 = vmatpush1.msra.mxu0 0.0
  %1700 = vmatprep.subr.mxu0 0.0
  %1701 = vmatpush1.msra.mxu0 0.0
  %1702 = vmatprep.subr.mxu0 0.0
  %1703 = vmatpush1.msra.mxu0 0.0
  %1704 = vmatprep.subr.mxu0 0.0
  %1705 = vmatpush1.msra.mxu0 0.0
  %1706 = vmatprep.subr.mxu0 0.0
  %1707 = vmatpush1.msra.mxu0 0.0
  %1708 = vmatprep.subr.mxu0 0.0
  %1709 = vmatpush1.msra.mxu0 0.0
  %1710 = vmatprep.subr.mxu0 0.0
  %1711 = vmatpush1.msra.mxu0 0.0
  %1712 = vmatprep.subr.mxu0 0.0
  %1713 = vmatpush1.msra.mxu0 0.0
  %1714 = vmatprep.subr.mxu0 0.0
  %1715 = vmatpush1.msra.mxu0 0.0
  %1716 = vmatprep.subr.mxu0 0.0
  %1717 = vmatpush1.msra.mxu0 0.0
  %1718 = vmatprep.subr.mxu0 0.0
  %1719 = vmatpush1.msra.mxu0 0.0
  %1720 = vmatprep.subr.mxu0 0.0
  %1721 = vmatpush1.msra.mxu0 0.0
  %1722 = vmatprep.subr.mxu0 0.0
  %1723 = vmatpush1.msra.mxu0 0.0
  %1724 = vmatprep.subr.mxu0 0.0
  %1725 = vmatpush1.msra.mxu0 0.0
  %1726 = vmatprep.subr.mxu0 0.0
  %1727 = vmatpush1.msra.mxu0 0.0
  %1728 = vmatprep.subr.mxu0 0.0
  %1729 = vmatpush1.msra.mxu0 0.0
  %1730 = vmatprep.subr.mxu0 0.0
  %1731 = vmatpush1.msra.mxu0 0.0
  %1732 = vmatprep.mubr.f32.mxu0 0.0
  %1733 = vmatmul.mubr.f32.gmra.mrb[0].mxu0 %v1663
  %v1734 = vpop.f32.mrb[0].mxu0
  %v1735 = vadd.f32 0.0, %v1734
  %v1736 = vpop.f32.mrb[0].mxu0
  %v1737 = vadd.f32 0.0, %v1736
  %1738 = vmatprep.mubr.f32.mxu0 0.0
  %1739 = vmatmul.mubr.f32.gmra.mrb[0].mxu0 %v1666
  %v1740 = vpop.f32.mrb[0].mxu0
  %v1741 = vadd.f32 0.0, %v1740
  %v1742 = vpop.f32.mrb[0].mxu0
  %v1743 = vadd.f32 0.0, %v1742
  %1744 = vdwg.mxu0
  %v1745 = vadd.f32 %v1523, %v1735
  %v1746 = vadd.f32 %v1524, %v1737
  %v1747 = vadd.f32 %v1525, %v1741
  %v1748 = vadd.f32 %v1526, %v1743
  %s1749 = scalar_lea.vmem %s4, 16
  %v1750 = vld [vmem:[%s1749] sm:$0x3]
  %1751 = vrot.lane.b32.xlu0 %v20, 111
  %v1752 = vpop.permute.xlu0 %1751
  %1753 = vrot.lane.b32.xlu0 %v25, 111
  %v1754 = vpop.permute.xlu0 %1753
  %vm1755 = vcmask 908288
  %v1756 = vsel %vm1755, %v1752, %v1754
  %v1760 = vsel %vm1755, %v1754, %v1752
  %v1762 = vlaneseq
  %v1763 = vshrl.u32 %v1762, 7
  %v1764 = vsub.s32 0, %v1763
  %v1765 = vrot.slane %v1750, %v1764
  %v1766 = vlaneseq
  %v1767 = vshrl.u32 %v1766, 7
  %v1768 = vsub.s32 1, %v1767
  %v1769 = vrot.slane %v1750, %v1768
  %v1772 = vmul.f32 %v1756, %v1765
  %v1773 = vmul.f32 %v1760, %v1769
  %1774 = vrot.lane.b32.xlu0 %v21, 111
  %v1775 = vpop.permute.xlu0 %1774
  %1776 = vrot.lane.b32.xlu0 %v22, 111
  %v1777 = vpop.permute.xlu0 %1776
  %v1778 = vsel %vm1755, %v1775, %v1777
  %v1782 = vsel %vm1755, %v1777, %v1775
  %v1783 = vmul.f32 %v1778, %v1765
  %v1784 = vmul.f32 %v1782, %v1769
  %s1785 = scalar_lea.vmem %s2, 128
  %v1786 = vld [vmem:[%s1785] sm:$0xff]
  %v1787 = vld [vmem:[%s1785 + $0x8] sm:$0xff]
  %v1789 = vsel %vm105, %v1786, 0
  %v1792 = vsel %vm105, %v1787, 0
  %v1795 = vsel %vm112, %v1772, 0
  %v1798 = vsel %vm112, %v1773, 0
  %1800 = vmatprep.subr.mxu0 %v1798
  %1801 = vmatpush1.msra.mxu0 %v1795
  %1802 = vmatprep.subr.mxu0 0.0
  %1803 = vmatpush1.msra.mxu0 0.0
  %1804 = vmatprep.subr.mxu0 0.0
  %1805 = vmatpush1.msra.mxu0 0.0
  %1806 = vmatprep.subr.mxu0 0.0
  %1807 = vmatpush1.msra.mxu0 0.0
  %1808 = vmatprep.subr.mxu0 0.0
  %1809 = vmatpush1.msra.mxu0 0.0
  %1810 = vmatprep.subr.mxu0 0.0
  %1811 = vmatpush1.msra.mxu0 0.0
  %1812 = vmatprep.subr.mxu0 0.0
  %1813 = vmatpush1.msra.mxu0 0.0
  %1814 = vmatprep.subr.mxu0 0.0
  %1815 = vmatpush1.msra.mxu0 0.0
  %1816 = vmatprep.subr.mxu0 0.0
  %1817 = vmatpush1.msra.mxu0 0.0
  %1818 = vmatprep.subr.mxu0 0.0
  %1819 = vmatpush1.msra.mxu0 0.0
  %1820 = vmatprep.subr.mxu0 0.0
  %1821 = vmatpush1.msra.mxu0 0.0
  %1822 = vmatprep.subr.mxu0 0.0
  %1823 = vmatpush1.msra.mxu0 0.0
  %1824 = vmatprep.subr.mxu0 0.0
  %1825 = vmatpush1.msra.mxu0 0.0
  %1826 = vmatprep.subr.mxu0 0.0
  %1827 = vmatpush1.msra.mxu0 0.0
  %1828 = vmatprep.subr.mxu0 0.0
  %1829 = vmatpush1.msra.mxu0 0.0
  %1830 = vmatprep.subr.mxu0 0.0
  %1831 = vmatpush1.msra.mxu0 0.0
  %1832 = vmatprep.subr.mxu0 0.0
  %1833 = vmatpush1.msra.mxu0 0.0
  %1834 = vmatprep.subr.mxu0 0.0
  %1835 = vmatpush1.msra.mxu0 0.0
  %1836 = vmatprep.subr.mxu0 0.0
  %1837 = vmatpush1.msra.mxu0 0.0
  %1838 = vmatprep.subr.mxu0 0.0
  %1839 = vmatpush1.msra.mxu0 0.0
  %1840 = vmatprep.subr.mxu0 0.0
  %1841 = vmatpush1.msra.mxu0 0.0
  %1842 = vmatprep.subr.mxu0 0.0
  %1843 = vmatpush1.msra.mxu0 0.0
  %1844 = vmatprep.subr.mxu0 0.0
  %1845 = vmatpush1.msra.mxu0 0.0
  %1846 = vmatprep.subr.mxu0 0.0
  %1847 = vmatpush1.msra.mxu0 0.0
  %1848 = vmatprep.subr.mxu0 0.0
  %1849 = vmatpush1.msra.mxu0 0.0
  %1850 = vmatprep.subr.mxu0 0.0
  %1851 = vmatpush1.msra.mxu0 0.0
  %1852 = vmatprep.subr.mxu0 0.0
  %1853 = vmatpush1.msra.mxu0 0.0
  %1854 = vmatprep.subr.mxu0 0.0
  %1855 = vmatpush1.msra.mxu0 0.0
  %1856 = vmatprep.subr.mxu0 0.0
  %1857 = vmatpush1.msra.mxu0 0.0
  %1858 = vmatprep.subr.mxu0 0.0
  %1859 = vmatpush1.msra.mxu0 0.0
  %1860 = vmatprep.subr.mxu0 0.0
  %1861 = vmatpush1.msra.mxu0 0.0
  %1862 = vmatprep.subr.mxu0 0.0
  %1863 = vmatpush1.msra.mxu0 0.0
  %1864 = vmatprep.mubr.f32.mxu0 0.0
  %1865 = vmatmul.mubr.f32.gmra.mrb[0].mxu0 %v1789
  %v1866 = vpop.f32.mrb[0].mxu0
  %v1867 = vadd.f32 0.0, %v1866
  %v1868 = vpop.f32.mrb[0].mxu0
  %v1869 = vadd.f32 0.0, %v1868
  %1870 = vmatprep.mubr.f32.mxu0 0.0
  %1871 = vmatmul.mubr.f32.gmra.mrb[0].mxu0 %v1792
  %v1872 = vpop.f32.mrb[0].mxu0
  %v1873 = vadd.f32 0.0, %v1872
  %v1874 = vpop.f32.mrb[0].mxu0
  %v1875 = vadd.f32 0.0, %v1874
  %1876 = vdwg.mxu0
  %v1877 = vadd.f32 %v1655, %v1867
  %v1878 = vadd.f32 %v1656, %v1869
  %v1879 = vadd.f32 %v1657, %v1873
  %v1880 = vadd.f32 %v1658, %v1875
  %s1881 = scalar_lea.vmem %s3, 128
  %v1882 = vld [vmem:[%s1881] sm:$0xff]
  %v1883 = vld [vmem:[%s1881 + $0x8] sm:$0xff]
  %v1885 = vsel %vm288, %v1882, 0
  %v1888 = vsel %vm288, %v1883, 0
  %1890 = vmatprep.subr.mxu0 %v1784
  %1891 = vmatpush1.msra.mxu0 %v1783
  %1892 = vmatprep.subr.mxu0 0.0
  %1893 = vmatpush1.msra.mxu0 0.0
  %1894 = vmatprep.subr.mxu0 0.0
  %1895 = vmatpush1.msra.mxu0 0.0
  %1896 = vmatprep.subr.mxu0 0.0
  %1897 = vmatpush1.msra.mxu0 0.0
  %1898 = vmatprep.subr.mxu0 0.0
  %1899 = vmatpush1.msra.mxu0 0.0
  %1900 = vmatprep.subr.mxu0 0.0
  %1901 = vmatpush1.msra.mxu0 0.0
  %1902 = vmatprep.subr.mxu0 0.0
  %1903 = vmatpush1.msra.mxu0 0.0
  %1904 = vmatprep.subr.mxu0 0.0
  %1905 = vmatpush1.msra.mxu0 0.0
  %1906 = vmatprep.subr.mxu0 0.0
  %1907 = vmatpush1.msra.mxu0 0.0
  %1908 = vmatprep.subr.mxu0 0.0
  %1909 = vmatpush1.msra.mxu0 0.0
  %1910 = vmatprep.subr.mxu0 0.0
  %1911 = vmatpush1.msra.mxu0 0.0
  %1912 = vmatprep.subr.mxu0 0.0
  %1913 = vmatpush1.msra.mxu0 0.0
  %1914 = vmatprep.subr.mxu0 0.0
  %1915 = vmatpush1.msra.mxu0 0.0
  %1916 = vmatprep.subr.mxu0 0.0
  %1917 = vmatpush1.msra.mxu0 0.0
  %1918 = vmatprep.subr.mxu0 0.0
  %1919 = vmatpush1.msra.mxu0 0.0
  %1920 = vmatprep.subr.mxu0 0.0
  %1921 = vmatpush1.msra.mxu0 0.0
  %1922 = vmatprep.subr.mxu0 0.0
  %1923 = vmatpush1.msra.mxu0 0.0
  %1924 = vmatprep.subr.mxu0 0.0
  %1925 = vmatpush1.msra.mxu0 0.0
  %1926 = vmatprep.subr.mxu0 0.0
  %1927 = vmatpush1.msra.mxu0 0.0
  %1928 = vmatprep.subr.mxu0 0.0
  %1929 = vmatpush1.msra.mxu0 0.0
  %1930 = vmatprep.subr.mxu0 0.0
  %1931 = vmatpush1.msra.mxu0 0.0
  %1932 = vmatprep.subr.mxu0 0.0
  %1933 = vmatpush1.msra.mxu0 0.0
  %1934 = vmatprep.subr.mxu0 0.0
  %1935 = vmatpush1.msra.mxu0 0.0
  %1936 = vmatprep.subr.mxu0 0.0
  %1937 = vmatpush1.msra.mxu0 0.0
  %1938 = vmatprep.subr.mxu0 0.0
  %1939 = vmatpush1.msra.mxu0 0.0
  %1940 = vmatprep.subr.mxu0 0.0
  %1941 = vmatpush1.msra.mxu0 0.0
  %1942 = vmatprep.subr.mxu0 0.0
  %1943 = vmatpush1.msra.mxu0 0.0
  %1944 = vmatprep.subr.mxu0 0.0
  %1945 = vmatpush1.msra.mxu0 0.0
  %1946 = vmatprep.subr.mxu0 0.0
  %1947 = vmatpush1.msra.mxu0 0.0
  %1948 = vmatprep.subr.mxu0 0.0
  %1949 = vmatpush1.msra.mxu0 0.0
  %1950 = vmatprep.subr.mxu0 0.0
  %1951 = vmatpush1.msra.mxu0 0.0
  %1952 = vmatprep.subr.mxu0 0.0
  %1953 = vmatpush1.msra.mxu0 0.0
  %1954 = vmatprep.mubr.f32.mxu0 0.0
  %1955 = vmatmul.mubr.f32.gmra.mrb[0].mxu0 %v1885
  %v1956 = vpop.f32.mrb[0].mxu0
  %v1957 = vadd.f32 0.0, %v1956
  %v1958 = vpop.f32.mrb[0].mxu0
  %v1959 = vadd.f32 0.0, %v1958
  %1960 = vmatprep.mubr.f32.mxu0 0.0
  %1961 = vmatmul.mubr.f32.gmra.mrb[0].mxu0 %v1888
  %v1962 = vpop.f32.mrb[0].mxu0
  %v1963 = vadd.f32 0.0, %v1962
  %v1964 = vpop.f32.mrb[0].mxu0
  %v1965 = vadd.f32 0.0, %v1964
  %1966 = vdwg.mxu0
  %v1967 = vadd.f32 %v1745, %v1957
  %v1968 = vadd.f32 %v1746, %v1959
  %v1969 = vadd.f32 %v1747, %v1963
  %v1970 = vadd.f32 %v1748, %v1965
  %v1971 = vadd.f32 %v1877, %v1878
  %v1972 = vadd.f32 %v1971, %v1879
  %v1973 = vadd.f32 %v1972, %v1880
  %1974 = vadd.xlane.f32.xlu0 %v1973
  %v1975 = vpop.xlane.xlu0 %1974
  %v1976 = vrot.slane %v1975, 4
  %v1977 = vadd.f32 %v1975, %v1976
  %v1978 = vrot.slane %v1977, 2
  %v1979 = vadd.f32 %v1977, %v1978
  %v1980 = vrot.slane %v1979, 1
  %v1981 = vadd.f32 %v1979, %v1980
  %s1982 = vtos %v1981
  %s1983 = smul.f32 %s1982, 0.00024414063
  %v1984 = vstv %s1983
  %v1985 = vsub.f32 %v1877, %v1984
  %v1986 = vsub.f32 %v1878, %v1984
  %v1987 = vsub.f32 %v1879, %v1984
  %v1988 = vsub.f32 %v1880, %v1984
  %v1989 = vmul.f32 %v1985, %v1985
  %v1990 = vmul.f32 %v1986, %v1986
  %v1991 = vmul.f32 %v1987, %v1987
  %v1992 = vmul.f32 %v1988, %v1988
  %v1993 = vadd.f32 %v1989, %v1990
  %v1994 = vadd.f32 %v1993, %v1991
  %v1995 = vadd.f32 %v1994, %v1992
  %1996 = vadd.xlane.f32.xlu0 %v1995
  %v1997 = vpop.xlane.xlu0 %1996
  %v1998 = vrot.slane %v1997, 4
  %v1999 = vadd.f32 %v1997, %v1998
  %v2000 = vrot.slane %v1999, 2
  %v2001 = vadd.f32 %v1999, %v2000
  %v2002 = vrot.slane %v2001, 1
  %v2003 = vadd.f32 %v2001, %v2002
  %s2004 = vtos %v2003
  %s2005 = smul.f32 %s2004, 0.00024414063
  %s2006 = sadd.f32 %s2005, 1e-05
  %v2007 = vstv %s2006
  %v2008 = vrsqrt.pop %v2007
  %s2009 = vtos %v2008
  %v2010 = vstv %s2009
  %v2011 = vmul.f32 %v1985, %v2010
  %v2012 = vmul.f32 %v1986, %v2010
  %v2013 = vmul.f32 %v1987, %v2010
  %v2014 = vmul.f32 %v1988, %v2010
  %v2015 = vadd.f32 %v1967, %v1968
  %v2016 = vadd.f32 %v2015, %v1969
  %v2017 = vadd.f32 %v2016, %v1970
  %2018 = vadd.xlane.f32.xlu0 %v2017
  %v2019 = vpop.xlane.xlu0 %2018
  %v2020 = vrot.slane %v2019, 4
  %v2021 = vadd.f32 %v2019, %v2020
  %v2022 = vrot.slane %v2021, 2
  %v2023 = vadd.f32 %v2021, %v2022
  %v2024 = vrot.slane %v2023, 1
  %v2025 = vadd.f32 %v2023, %v2024
  %s2026 = vtos %v2025
  %s2027 = smul.f32 %s2026, 0.00024414063
  %v2028 = vstv %s2027
  %v2029 = vsub.f32 %v1967, %v2028
  %v2030 = vsub.f32 %v1968, %v2028
  %v2031 = vsub.f32 %v1969, %v2028
  %v2032 = vsub.f32 %v1970, %v2028
  %v2033 = vmul.f32 %v2029, %v2029
  %v2034 = vmul.f32 %v2030, %v2030
  %v2035 = vmul.f32 %v2031, %v2031
  %v2036 = vmul.f32 %v2032, %v2032
  %v2037 = vadd.f32 %v2033, %v2034
  %v2038 = vadd.f32 %v2037, %v2035
  %v2039 = vadd.f32 %v2038, %v2036
  %2040 = vadd.xlane.f32.xlu0 %v2039
  %v2041 = vpop.xlane.xlu0 %2040
  %v2042 = vrot.slane %v2041, 4
  %v2043 = vadd.f32 %v2041, %v2042
  %v2044 = vrot.slane %v2043, 2
  %v2045 = vadd.f32 %v2043, %v2044
  %v2046 = vrot.slane %v2045, 1
  %v2047 = vadd.f32 %v2045, %v2046
  %s2048 = vtos %v2047
  %s2049 = smul.f32 %s2048, 0.00024414063
  %s2050 = sadd.f32 %s2049, 1e-05
  %v2051 = vstv %s2050
  %v2052 = vrsqrt.pop %v2051
  %s2053 = vtos %v2052
  %v2054 = vstv %s2053
  %v2055 = vmul.f32 %v2029, %v2054
  %v2056 = vmul.f32 %v2030, %v2054
  %v2057 = vmul.f32 %v2031, %v2054
  %v2058 = vmul.f32 %v2032, %v2054
  %v2059 = vadd.f32 %v2011, %v2055
  %v2060 = vadd.f32 %v2012, %v2056
  %v2061 = vtanh.pop %v2059
  %v2062 = vtanh.pop %v2060
  %v2063 = vadd.f32 %v2013, %v2057
  %v2064 = vadd.f32 %v2014, %v2058
  %v2065 = vxor.u32 %v2063, 2147483648
  %v2066 = vxor.u32 %v2064, 2147483648
  %v2067 = vmul.f32 %v2065, 1.442695
  %v2068 = vpow.pop %v2067
  %v2069 = vmul.f32 %v2066, 1.442695
  %v2070 = vpow.pop %v2069
  %v2071 = vadd.f32 %v2068, 1.0
  %v2072 = vadd.f32 %v2070, 1.0
  %v2073 = vrcp.pop %v2071
  %v2074 = vmul.f32 1.0, %v2073
  %v2075 = vrcp.pop %v2072
  %v2076 = vmul.f32 1.0, %v2075
  %v2077 = vsub.f32 %v2061, %v21
  %v2078 = vsub.f32 %v2062, %v22
  %v2079 = vmul.f32 %v2074, %v2077
  %v2080 = vmul.f32 %v2076, %v2078
  %v2081 = vadd.f32 %v21, %v2079
  %v2082 = vadd.f32 %v22, %v2080
  %2083 = vst [vmem:[%s5] sm:$0xff] %v2081
  %2084 = vst [vmem:[%s5 + $0x8] sm:$0xff] %v2082
  %s2085 = scalar_lea.vmem %s0, 8
  %v2086 = vld [vmem:[%s2085] sm:$0xff]
  %s2087 = scalar_lea.vmem %s1, 16
  %v2088 = vld [vmem:[%s2087] sm:$0xff]
  %v2089 = vld [vmem:[%s2087 + $0x8] sm:$0xff]
  %v2090 = vld [vmem:[%s4] sm:$0x3]
  %v2092 = vcombine.high %v2086, %v2086
  %2093 = vrot.lane.b32.xlu0 %v2092, 17
  %v2094 = vpop.permute.xlu0 %2093
  %2096 = vrot.lane.b32.xlu0 %v2086, 17
  %v2097 = vpop.permute.xlu0 %2096
  %v2098 = vsel %vm31, %v2097, %v2094
  %v2101 = vsel %vm31, %v2094, %v2097
  %v2103 = vlaneseq
  %v2104 = vshrl.u32 %v2103, 7
  %v2105 = vsub.s32 0, %v2104
  %v2106 = vrot.slane %v2090, %v2105
  %v2107 = vlaneseq
  %v2108 = vshrl.u32 %v2107, 7
  %v2109 = vsub.s32 1, %v2108
  %v2110 = vrot.slane %v2090, %v2109
  %v2113 = vmul.f32 %v2101, %v2106
  %v2114 = vmul.f32 %v2098, %v2110
  %2116 = vrot.lane.b32.xlu0 %v2089, 17
  %v2117 = vpop.permute.xlu0 %2116
  %2120 = vrot.lane.b32.xlu0 %v2088, 17
  %v2121 = vpop.permute.xlu0 %2120
  %v2122 = vsel %vm31, %v2121, %v2117
  %v2125 = vsel %vm31, %v2117, %v2121
  %v2126 = vmul.f32 %v2125, %v2106
  %v2127 = vmul.f32 %v2122, %v2110
  %v2128 = vld [vmem:[%s2] sm:$0xff]
  %v2129 = vld [vmem:[%s2 + $0x8] sm:$0xff]
  %v2130 = vld [vmem:[%s3] sm:$0xff]
  %v2131 = vld [vmem:[%s3 + $0x8] sm:$0xff]
  %v2132 = vld [vmem:[%s66] sm:$0x3]
  %2133 = vrot.lane.b32.xlu0 %v2092, 16
  %v2134 = vpop.permute.xlu0 %2133
  %2136 = vrot.lane.b32.xlu0 %v2086, 16
  %v2137 = vpop.permute.xlu0 %2136
  %v2138 = vsel %vm73, %v2137, %v2134
  %v2141 = vsel %vm73, %v2134, %v2137
  %v2143 = vlaneseq
  %v2144 = vshrl.u32 %v2143, 7
  %v2145 = vsub.s32 0, %v2144
  %v2146 = vrot.slane %v2132, %v2145
  %v2147 = vlaneseq
  %v2148 = vshrl.u32 %v2147, 7
  %v2149 = vsub.s32 1, %v2148
  %v2150 = vrot.slane %v2132, %v2149
  %v2153 = vmul.f32 %v2141, %v2146
  %v2154 = vmul.f32 %v2138, %v2150
  %2155 = vrot.lane.b32.xlu0 %v2089, 16
  %v2156 = vpop.permute.xlu0 %2155
  %2158 = vrot.lane.b32.xlu0 %v2088, 16
  %v2159 = vpop.permute.xlu0 %2158
  %v2160 = vsel %vm73, %v2159, %v2156
  %v2163 = vsel %vm73, %v2156, %v2159
  %v2164 = vmul.f32 %v2163, %v2146
  %v2165 = vmul.f32 %v2160, %v2150
  %v2166 = vld [vmem:[%s102] sm:$0xff]
  %v2167 = vld [vmem:[%s102 + $0x8] sm:$0xff]
  %v2169 = vsel %vm105, %v2166, 0
  %v2172 = vsel %vm105, %v2167, 0
  %v2175 = vsel %vm112, %v2153, 0
  %v2178 = vsel %vm112, %v2154, 0
  %2180 = vmatprep.subr.mxu0 %v2178
  %2181 = vmatpush1.msra.mxu0 %v2175
  %2182 = vmatprep.subr.mxu0 0.0
  %2183 = vmatpush1.msra.mxu0 0.0
  %2184 = vmatprep.subr.mxu0 0.0
  %2185 = vmatpush1.msra.mxu0 0.0
  %2186 = vmatprep.subr.mxu0 0.0
  %2187 = vmatpush1.msra.mxu0 0.0
  %2188 = vmatprep.subr.mxu0 0.0
  %2189 = vmatpush1.msra.mxu0 0.0
  %2190 = vmatprep.subr.mxu0 0.0
  %2191 = vmatpush1.msra.mxu0 0.0
  %2192 = vmatprep.subr.mxu0 0.0
  %2193 = vmatpush1.msra.mxu0 0.0
  %2194 = vmatprep.subr.mxu0 0.0
  %2195 = vmatpush1.msra.mxu0 0.0
  %2196 = vmatprep.subr.mxu0 0.0
  %2197 = vmatpush1.msra.mxu0 0.0
  %2198 = vmatprep.subr.mxu0 0.0
  %2199 = vmatpush1.msra.mxu0 0.0
  %2200 = vmatprep.subr.mxu0 0.0
  %2201 = vmatpush1.msra.mxu0 0.0
  %2202 = vmatprep.subr.mxu0 0.0
  %2203 = vmatpush1.msra.mxu0 0.0
  %2204 = vmatprep.subr.mxu0 0.0
  %2205 = vmatpush1.msra.mxu0 0.0
  %2206 = vmatprep.subr.mxu0 0.0
  %2207 = vmatpush1.msra.mxu0 0.0
  %2208 = vmatprep.subr.mxu0 0.0
  %2209 = vmatpush1.msra.mxu0 0.0
  %2210 = vmatprep.subr.mxu0 0.0
  %2211 = vmatpush1.msra.mxu0 0.0
  %2212 = vmatprep.subr.mxu0 0.0
  %2213 = vmatpush1.msra.mxu0 0.0
  %2214 = vmatprep.subr.mxu0 0.0
  %2215 = vmatpush1.msra.mxu0 0.0
  %2216 = vmatprep.subr.mxu0 0.0
  %2217 = vmatpush1.msra.mxu0 0.0
  %2218 = vmatprep.subr.mxu0 0.0
  %2219 = vmatpush1.msra.mxu0 0.0
  %2220 = vmatprep.subr.mxu0 0.0
  %2221 = vmatpush1.msra.mxu0 0.0
  %2222 = vmatprep.subr.mxu0 0.0
  %2223 = vmatpush1.msra.mxu0 0.0
  %2224 = vmatprep.subr.mxu0 0.0
  %2225 = vmatpush1.msra.mxu0 0.0
  %2226 = vmatprep.subr.mxu0 0.0
  %2227 = vmatpush1.msra.mxu0 0.0
  %2228 = vmatprep.subr.mxu0 0.0
  %2229 = vmatpush1.msra.mxu0 0.0
  %2230 = vmatprep.subr.mxu0 0.0
  %2231 = vmatpush1.msra.mxu0 0.0
  %2232 = vmatprep.subr.mxu0 0.0
  %2233 = vmatpush1.msra.mxu0 0.0
  %2234 = vmatprep.subr.mxu0 0.0
  %2235 = vmatpush1.msra.mxu0 0.0
  %2236 = vmatprep.subr.mxu0 0.0
  %2237 = vmatpush1.msra.mxu0 0.0
  %2238 = vmatprep.subr.mxu0 0.0
  %2239 = vmatpush1.msra.mxu0 0.0
  %2240 = vmatprep.subr.mxu0 0.0
  %2241 = vmatpush1.msra.mxu0 0.0
  %2242 = vmatprep.subr.mxu0 0.0
  %2243 = vmatpush1.msra.mxu0 0.0
  %2244 = vmatprep.mubr.f32.mxu0 0.0
  %2245 = vmatmul.mubr.f32.gmra.mrb[0].mxu0 %v2169
  %v2246 = vpop.f32.mrb[0].mxu0
  %v2247 = vadd.f32 0.0, %v2246
  %v2248 = vpop.f32.mrb[0].mxu0
  %v2249 = vadd.f32 0.0, %v2248
  %2250 = vmatprep.mubr.f32.mxu0 0.0
  %2251 = vmatmul.mubr.f32.gmra.mrb[0].mxu0 %v2172
  %v2252 = vpop.f32.mrb[0].mxu0
  %v2253 = vadd.f32 0.0, %v2252
  %v2254 = vpop.f32.mrb[0].mxu0
  %v2255 = vadd.f32 0.0, %v2254
  %2256 = vdwg.mxu0
  %v2258 = vsel %vm105, %v2128, 0
  %v2261 = vsel %vm105, %v2129, 0
  %v2264 = vsel %vm112, %v2113, 0
  %v2267 = vsel %vm112, %v2114, 0
  %2269 = vmatprep.subr.mxu0 %v2267
  %2270 = vmatpush1.msra.mxu0 %v2264
  %2271 = vmatprep.subr.mxu0 0.0
  %2272 = vmatpush1.msra.mxu0 0.0
  %2273 = vmatprep.subr.mxu0 0.0
  %2274 = vmatpush1.msra.mxu0 0.0
  %2275 = vmatprep.subr.mxu0 0.0
  %2276 = vmatpush1.msra.mxu0 0.0
  %2277 = vmatprep.subr.mxu0 0.0
  %2278 = vmatpush1.msra.mxu0 0.0
  %2279 = vmatprep.subr.mxu0 0.0
  %2280 = vmatpush1.msra.mxu0 0.0
  %2281 = vmatprep.subr.mxu0 0.0
  %2282 = vmatpush1.msra.mxu0 0.0
  %2283 = vmatprep.subr.mxu0 0.0
  %2284 = vmatpush1.msra.mxu0 0.0
  %2285 = vmatprep.subr.mxu0 0.0
  %2286 = vmatpush1.msra.mxu0 0.0
  %2287 = vmatprep.subr.mxu0 0.0
  %2288 = vmatpush1.msra.mxu0 0.0
  %2289 = vmatprep.subr.mxu0 0.0
  %2290 = vmatpush1.msra.mxu0 0.0
  %2291 = vmatprep.subr.mxu0 0.0
  %2292 = vmatpush1.msra.mxu0 0.0
  %2293 = vmatprep.subr.mxu0 0.0
  %2294 = vmatpush1.msra.mxu0 0.0
  %2295 = vmatprep.subr.mxu0 0.0
  %2296 = vmatpush1.msra.mxu0 0.0
  %2297 = vmatprep.subr.mxu0 0.0
  %2298 = vmatpush1.msra.mxu0 0.0
  %2299 = vmatprep.subr.mxu0 0.0
  %2300 = vmatpush1.msra.mxu0 0.0
  %2301 = vmatprep.subr.mxu0 0.0
  %2302 = vmatpush1.msra.mxu0 0.0
  %2303 = vmatprep.subr.mxu0 0.0
  %2304 = vmatpush1.msra.mxu0 0.0
  %2305 = vmatprep.subr.mxu0 0.0
  %2306 = vmatpush1.msra.mxu0 0.0
  %2307 = vmatprep.subr.mxu0 0.0
  %2308 = vmatpush1.msra.mxu0 0.0
  %2309 = vmatprep.subr.mxu0 0.0
  %2310 = vmatpush1.msra.mxu0 0.0
  %2311 = vmatprep.subr.mxu0 0.0
  %2312 = vmatpush1.msra.mxu0 0.0
  %2313 = vmatprep.subr.mxu0 0.0
  %2314 = vmatpush1.msra.mxu0 0.0
  %2315 = vmatprep.subr.mxu0 0.0
  %2316 = vmatpush1.msra.mxu0 0.0
  %2317 = vmatprep.subr.mxu0 0.0
  %2318 = vmatpush1.msra.mxu0 0.0
  %2319 = vmatprep.subr.mxu0 0.0
  %2320 = vmatpush1.msra.mxu0 0.0
  %2321 = vmatprep.subr.mxu0 0.0
  %2322 = vmatpush1.msra.mxu0 0.0
  %2323 = vmatprep.subr.mxu0 0.0
  %2324 = vmatpush1.msra.mxu0 0.0
  %2325 = vmatprep.subr.mxu0 0.0
  %2326 = vmatpush1.msra.mxu0 0.0
  %2327 = vmatprep.subr.mxu0 0.0
  %2328 = vmatpush1.msra.mxu0 0.0
  %2329 = vmatprep.subr.mxu0 0.0
  %2330 = vmatpush1.msra.mxu0 0.0
  %2331 = vmatprep.subr.mxu0 0.0
  %2332 = vmatpush1.msra.mxu0 0.0
  %2333 = vmatprep.mubr.f32.mxu0 0.0
  %2334 = vmatmul.mubr.f32.gmra.mrb[0].mxu0 %v2258
  %v2335 = vpop.f32.mrb[0].mxu0
  %v2336 = vadd.f32 %v2247, %v2335
  %v2337 = vpop.f32.mrb[0].mxu0
  %v2338 = vadd.f32 %v2249, %v2337
  %2339 = vmatprep.mubr.f32.mxu0 0.0
  %2340 = vmatmul.mubr.f32.gmra.mrb[0].mxu0 %v2261
  %v2341 = vpop.f32.mrb[0].mxu0
  %v2342 = vadd.f32 %v2253, %v2341
  %v2343 = vpop.f32.mrb[0].mxu0
  %v2344 = vadd.f32 %v2255, %v2343
  %2345 = vdwg.mxu0
  %v2346 = vld [vmem:[%s285] sm:$0xff]
  %v2347 = vld [vmem:[%s285 + $0x8] sm:$0xff]
  %v2349 = vsel %vm288, %v2346, 0
  %v2352 = vsel %vm288, %v2347, 0
  %2354 = vmatprep.subr.mxu0 %v2165
  %2355 = vmatpush1.msra.mxu0 %v2164
  %2356 = vmatprep.subr.mxu0 0.0
  %2357 = vmatpush1.msra.mxu0 0.0
  %2358 = vmatprep.subr.mxu0 0.0
  %2359 = vmatpush1.msra.mxu0 0.0
  %2360 = vmatprep.subr.mxu0 0.0
  %2361 = vmatpush1.msra.mxu0 0.0
  %2362 = vmatprep.subr.mxu0 0.0
  %2363 = vmatpush1.msra.mxu0 0.0
  %2364 = vmatprep.subr.mxu0 0.0
  %2365 = vmatpush1.msra.mxu0 0.0
  %2366 = vmatprep.subr.mxu0 0.0
  %2367 = vmatpush1.msra.mxu0 0.0
  %2368 = vmatprep.subr.mxu0 0.0
  %2369 = vmatpush1.msra.mxu0 0.0
  %2370 = vmatprep.subr.mxu0 0.0
  %2371 = vmatpush1.msra.mxu0 0.0
  %2372 = vmatprep.subr.mxu0 0.0
  %2373 = vmatpush1.msra.mxu0 0.0
  %2374 = vmatprep.subr.mxu0 0.0
  %2375 = vmatpush1.msra.mxu0 0.0
  %2376 = vmatprep.subr.mxu0 0.0
  %2377 = vmatpush1.msra.mxu0 0.0
  %2378 = vmatprep.subr.mxu0 0.0
  %2379 = vmatpush1.msra.mxu0 0.0
  %2380 = vmatprep.subr.mxu0 0.0
  %2381 = vmatpush1.msra.mxu0 0.0
  %2382 = vmatprep.subr.mxu0 0.0
  %2383 = vmatpush1.msra.mxu0 0.0
  %2384 = vmatprep.subr.mxu0 0.0
  %2385 = vmatpush1.msra.mxu0 0.0
  %2386 = vmatprep.subr.mxu0 0.0
  %2387 = vmatpush1.msra.mxu0 0.0
  %2388 = vmatprep.subr.mxu0 0.0
  %2389 = vmatpush1.msra.mxu0 0.0
  %2390 = vmatprep.subr.mxu0 0.0
  %2391 = vmatpush1.msra.mxu0 0.0
  %2392 = vmatprep.subr.mxu0 0.0
  %2393 = vmatpush1.msra.mxu0 0.0
  %2394 = vmatprep.subr.mxu0 0.0
  %2395 = vmatpush1.msra.mxu0 0.0
  %2396 = vmatprep.subr.mxu0 0.0
  %2397 = vmatpush1.msra.mxu0 0.0
  %2398 = vmatprep.subr.mxu0 0.0
  %2399 = vmatpush1.msra.mxu0 0.0
  %2400 = vmatprep.subr.mxu0 0.0
  %2401 = vmatpush1.msra.mxu0 0.0
  %2402 = vmatprep.subr.mxu0 0.0
  %2403 = vmatpush1.msra.mxu0 0.0
  %2404 = vmatprep.subr.mxu0 0.0
  %2405 = vmatpush1.msra.mxu0 0.0
  %2406 = vmatprep.subr.mxu0 0.0
  %2407 = vmatpush1.msra.mxu0 0.0
  %2408 = vmatprep.subr.mxu0 0.0
  %2409 = vmatpush1.msra.mxu0 0.0
  %2410 = vmatprep.subr.mxu0 0.0
  %2411 = vmatpush1.msra.mxu0 0.0
  %2412 = vmatprep.subr.mxu0 0.0
  %2413 = vmatpush1.msra.mxu0 0.0
  %2414 = vmatprep.subr.mxu0 0.0
  %2415 = vmatpush1.msra.mxu0 0.0
  %2416 = vmatprep.subr.mxu0 0.0
  %2417 = vmatpush1.msra.mxu0 0.0
  %2418 = vmatprep.mubr.f32.mxu0 0.0
  %2419 = vmatmul.mubr.f32.gmra.mrb[0].mxu0 %v2349
  %v2420 = vpop.f32.mrb[0].mxu0
  %v2421 = vadd.f32 0.0, %v2420
  %v2422 = vpop.f32.mrb[0].mxu0
  %v2423 = vadd.f32 0.0, %v2422
  %2424 = vmatprep.mubr.f32.mxu0 0.0
  %2425 = vmatmul.mubr.f32.gmra.mrb[0].mxu0 %v2352
  %v2426 = vpop.f32.mrb[0].mxu0
  %v2427 = vadd.f32 0.0, %v2426
  %v2428 = vpop.f32.mrb[0].mxu0
  %v2429 = vadd.f32 0.0, %v2428
  %2430 = vdwg.mxu0
  %v2432 = vsel %vm288, %v2130, 0
  %v2435 = vsel %vm288, %v2131, 0
  %2437 = vmatprep.subr.mxu0 %v2127
  %2438 = vmatpush1.msra.mxu0 %v2126
  %2439 = vmatprep.subr.mxu0 0.0
  %2440 = vmatpush1.msra.mxu0 0.0
  %2441 = vmatprep.subr.mxu0 0.0
  %2442 = vmatpush1.msra.mxu0 0.0
  %2443 = vmatprep.subr.mxu0 0.0
  %2444 = vmatpush1.msra.mxu0 0.0
  %2445 = vmatprep.subr.mxu0 0.0
  %2446 = vmatpush1.msra.mxu0 0.0
  %2447 = vmatprep.subr.mxu0 0.0
  %2448 = vmatpush1.msra.mxu0 0.0
  %2449 = vmatprep.subr.mxu0 0.0
  %2450 = vmatpush1.msra.mxu0 0.0
  %2451 = vmatprep.subr.mxu0 0.0
  %2452 = vmatpush1.msra.mxu0 0.0
  %2453 = vmatprep.subr.mxu0 0.0
  %2454 = vmatpush1.msra.mxu0 0.0
  %2455 = vmatprep.subr.mxu0 0.0
  %2456 = vmatpush1.msra.mxu0 0.0
  %2457 = vmatprep.subr.mxu0 0.0
  %2458 = vmatpush1.msra.mxu0 0.0
  %2459 = vmatprep.subr.mxu0 0.0
  %2460 = vmatpush1.msra.mxu0 0.0
  %2461 = vmatprep.subr.mxu0 0.0
  %2462 = vmatpush1.msra.mxu0 0.0
  %2463 = vmatprep.subr.mxu0 0.0
  %2464 = vmatpush1.msra.mxu0 0.0
  %2465 = vmatprep.subr.mxu0 0.0
  %2466 = vmatpush1.msra.mxu0 0.0
  %2467 = vmatprep.subr.mxu0 0.0
  %2468 = vmatpush1.msra.mxu0 0.0
  %2469 = vmatprep.subr.mxu0 0.0
  %2470 = vmatpush1.msra.mxu0 0.0
  %2471 = vmatprep.subr.mxu0 0.0
  %2472 = vmatpush1.msra.mxu0 0.0
  %2473 = vmatprep.subr.mxu0 0.0
  %2474 = vmatpush1.msra.mxu0 0.0
  %2475 = vmatprep.subr.mxu0 0.0
  %2476 = vmatpush1.msra.mxu0 0.0
  %2477 = vmatprep.subr.mxu0 0.0
  %2478 = vmatpush1.msra.mxu0 0.0
  %2479 = vmatprep.subr.mxu0 0.0
  %2480 = vmatpush1.msra.mxu0 0.0
  %2481 = vmatprep.subr.mxu0 0.0
  %2482 = vmatpush1.msra.mxu0 0.0
  %2483 = vmatprep.subr.mxu0 0.0
  %2484 = vmatpush1.msra.mxu0 0.0
  %2485 = vmatprep.subr.mxu0 0.0
  %2486 = vmatpush1.msra.mxu0 0.0
  %2487 = vmatprep.subr.mxu0 0.0
  %2488 = vmatpush1.msra.mxu0 0.0
  %2489 = vmatprep.subr.mxu0 0.0
  %2490 = vmatpush1.msra.mxu0 0.0
  %2491 = vmatprep.subr.mxu0 0.0
  %2492 = vmatpush1.msra.mxu0 0.0
  %2493 = vmatprep.subr.mxu0 0.0
  %2494 = vmatpush1.msra.mxu0 0.0
  %2495 = vmatprep.subr.mxu0 0.0
  %2496 = vmatpush1.msra.mxu0 0.0
  %2497 = vmatprep.subr.mxu0 0.0
  %2498 = vmatpush1.msra.mxu0 0.0
  %2499 = vmatprep.subr.mxu0 0.0
  %2500 = vmatpush1.msra.mxu0 0.0
  %2501 = vmatprep.mubr.f32.mxu0 0.0
  %2502 = vmatmul.mubr.f32.gmra.mrb[0].mxu0 %v2432
  %v2503 = vpop.f32.mrb[0].mxu0
  %v2504 = vadd.f32 %v2421, %v2503
  %v2505 = vpop.f32.mrb[0].mxu0
  %v2506 = vadd.f32 %v2423, %v2505
  %2507 = vmatprep.mubr.f32.mxu0 0.0
  %2508 = vmatmul.mubr.f32.gmra.mrb[0].mxu0 %v2435
  %v2509 = vpop.f32.mrb[0].mxu0
  %v2510 = vadd.f32 %v2427, %v2509
  %v2511 = vpop.f32.mrb[0].mxu0
  %v2512 = vadd.f32 %v2429, %v2511
  %2513 = vdwg.mxu0
  %v2514 = vld [vmem:[%s455] sm:$0x3]
  %2515 = vrot.lane.b32.xlu0 %v2092, 15
  %v2516 = vpop.permute.xlu0 %2515
  %2518 = vrot.lane.b32.xlu0 %v2086, 15
  %v2519 = vpop.permute.xlu0 %2518
  %v2520 = vsel %vm462, %v2519, %v2516
  %v2523 = vsel %vm462, %v2516, %v2519
  %v2525 = vlaneseq
  %v2526 = vshrl.u32 %v2525, 7
  %v2527 = vsub.s32 0, %v2526
  %v2528 = vrot.slane %v2514, %v2527
  %v2529 = vlaneseq
  %v2530 = vshrl.u32 %v2529, 7
  %v2531 = vsub.s32 1, %v2530
  %v2532 = vrot.slane %v2514, %v2531
  %v2535 = vmul.f32 %v2523, %v2528
  %v2536 = vmul.f32 %v2520, %v2532
  %2537 = vrot.lane.b32.xlu0 %v2089, 15
  %v2538 = vpop.permute.xlu0 %2537
  %2540 = vrot.lane.b32.xlu0 %v2088, 15
  %v2541 = vpop.permute.xlu0 %2540
  %v2542 = vsel %vm462, %v2541, %v2538
  %v2545 = vsel %vm462, %v2538, %v2541
  %v2546 = vmul.f32 %v2545, %v2528
  %v2547 = vmul.f32 %v2542, %v2532
  %v2548 = vld [vmem:[%s491] sm:$0xff]
  %v2549 = vld [vmem:[%s491 + $0x8] sm:$0xff]
  %v2551 = vsel %vm105, %v2548, 0
  %v2554 = vsel %vm105, %v2549, 0
  %v2557 = vsel %vm112, %v2535, 0
  %v2560 = vsel %vm112, %v2536, 0
  %2562 = vmatprep.subr.mxu0 %v2560
  %2563 = vmatpush1.msra.mxu0 %v2557
  %2564 = vmatprep.subr.mxu0 0.0
  %2565 = vmatpush1.msra.mxu0 0.0
  %2566 = vmatprep.subr.mxu0 0.0
  %2567 = vmatpush1.msra.mxu0 0.0
  %2568 = vmatprep.subr.mxu0 0.0
  %2569 = vmatpush1.msra.mxu0 0.0
  %2570 = vmatprep.subr.mxu0 0.0
  %2571 = vmatpush1.msra.mxu0 0.0
  %2572 = vmatprep.subr.mxu0 0.0
  %2573 = vmatpush1.msra.mxu0 0.0
  %2574 = vmatprep.subr.mxu0 0.0
  %2575 = vmatpush1.msra.mxu0 0.0
  %2576 = vmatprep.subr.mxu0 0.0
  %2577 = vmatpush1.msra.mxu0 0.0
  %2578 = vmatprep.subr.mxu0 0.0
  %2579 = vmatpush1.msra.mxu0 0.0
  %2580 = vmatprep.subr.mxu0 0.0
  %2581 = vmatpush1.msra.mxu0 0.0
  %2582 = vmatprep.subr.mxu0 0.0
  %2583 = vmatpush1.msra.mxu0 0.0
  %2584 = vmatprep.subr.mxu0 0.0
  %2585 = vmatpush1.msra.mxu0 0.0
  %2586 = vmatprep.subr.mxu0 0.0
  %2587 = vmatpush1.msra.mxu0 0.0
  %2588 = vmatprep.subr.mxu0 0.0
  %2589 = vmatpush1.msra.mxu0 0.0
  %2590 = vmatprep.subr.mxu0 0.0
  %2591 = vmatpush1.msra.mxu0 0.0
  %2592 = vmatprep.subr.mxu0 0.0
  %2593 = vmatpush1.msra.mxu0 0.0
  %2594 = vmatprep.subr.mxu0 0.0
  %2595 = vmatpush1.msra.mxu0 0.0
  %2596 = vmatprep.subr.mxu0 0.0
  %2597 = vmatpush1.msra.mxu0 0.0
  %2598 = vmatprep.subr.mxu0 0.0
  %2599 = vmatpush1.msra.mxu0 0.0
  %2600 = vmatprep.subr.mxu0 0.0
  %2601 = vmatpush1.msra.mxu0 0.0
  %2602 = vmatprep.subr.mxu0 0.0
  %2603 = vmatpush1.msra.mxu0 0.0
  %2604 = vmatprep.subr.mxu0 0.0
  %2605 = vmatpush1.msra.mxu0 0.0
  %2606 = vmatprep.subr.mxu0 0.0
  %2607 = vmatpush1.msra.mxu0 0.0
  %2608 = vmatprep.subr.mxu0 0.0
  %2609 = vmatpush1.msra.mxu0 0.0
  %2610 = vmatprep.subr.mxu0 0.0
  %2611 = vmatpush1.msra.mxu0 0.0
  %2612 = vmatprep.subr.mxu0 0.0
  %2613 = vmatpush1.msra.mxu0 0.0
  %2614 = vmatprep.subr.mxu0 0.0
  %2615 = vmatpush1.msra.mxu0 0.0
  %2616 = vmatprep.subr.mxu0 0.0
  %2617 = vmatpush1.msra.mxu0 0.0
  %2618 = vmatprep.subr.mxu0 0.0
  %2619 = vmatpush1.msra.mxu0 0.0
  %2620 = vmatprep.subr.mxu0 0.0
  %2621 = vmatpush1.msra.mxu0 0.0
  %2622 = vmatprep.subr.mxu0 0.0
  %2623 = vmatpush1.msra.mxu0 0.0
  %2624 = vmatprep.subr.mxu0 0.0
  %2625 = vmatpush1.msra.mxu0 0.0
  %2626 = vmatprep.mubr.f32.mxu0 0.0
  %2627 = vmatmul.mubr.f32.gmra.mrb[0].mxu0 %v2551
  %v2628 = vpop.f32.mrb[0].mxu0
  %v2629 = vadd.f32 0.0, %v2628
  %v2630 = vpop.f32.mrb[0].mxu0
  %v2631 = vadd.f32 0.0, %v2630
  %2632 = vmatprep.mubr.f32.mxu0 0.0
  %2633 = vmatmul.mubr.f32.gmra.mrb[0].mxu0 %v2554
  %v2634 = vpop.f32.mrb[0].mxu0
  %v2635 = vadd.f32 0.0, %v2634
  %v2636 = vpop.f32.mrb[0].mxu0
  %v2637 = vadd.f32 0.0, %v2636
  %2638 = vdwg.mxu0
  %v2639 = vadd.f32 %v2336, %v2629
  %v2640 = vadd.f32 %v2338, %v2631
  %v2641 = vadd.f32 %v2342, %v2635
  %v2642 = vadd.f32 %v2344, %v2637
  %v2643 = vld [vmem:[%s587] sm:$0xff]
  %v2644 = vld [vmem:[%s587 + $0x8] sm:$0xff]
  %v2646 = vsel %vm288, %v2643, 0
  %v2649 = vsel %vm288, %v2644, 0
  %2651 = vmatprep.subr.mxu0 %v2547
  %2652 = vmatpush1.msra.mxu0 %v2546
  %2653 = vmatprep.subr.mxu0 0.0
  %2654 = vmatpush1.msra.mxu0 0.0
  %2655 = vmatprep.subr.mxu0 0.0
  %2656 = vmatpush1.msra.mxu0 0.0
  %2657 = vmatprep.subr.mxu0 0.0
  %2658 = vmatpush1.msra.mxu0 0.0
  %2659 = vmatprep.subr.mxu0 0.0
  %2660 = vmatpush1.msra.mxu0 0.0
  %2661 = vmatprep.subr.mxu0 0.0
  %2662 = vmatpush1.msra.mxu0 0.0
  %2663 = vmatprep.subr.mxu0 0.0
  %2664 = vmatpush1.msra.mxu0 0.0
  %2665 = vmatprep.subr.mxu0 0.0
  %2666 = vmatpush1.msra.mxu0 0.0
  %2667 = vmatprep.subr.mxu0 0.0
  %2668 = vmatpush1.msra.mxu0 0.0
  %2669 = vmatprep.subr.mxu0 0.0
  %2670 = vmatpush1.msra.mxu0 0.0
  %2671 = vmatprep.subr.mxu0 0.0
  %2672 = vmatpush1.msra.mxu0 0.0
  %2673 = vmatprep.subr.mxu0 0.0
  %2674 = vmatpush1.msra.mxu0 0.0
  %2675 = vmatprep.subr.mxu0 0.0
  %2676 = vmatpush1.msra.mxu0 0.0
  %2677 = vmatprep.subr.mxu0 0.0
  %2678 = vmatpush1.msra.mxu0 0.0
  %2679 = vmatprep.subr.mxu0 0.0
  %2680 = vmatpush1.msra.mxu0 0.0
  %2681 = vmatprep.subr.mxu0 0.0
  %2682 = vmatpush1.msra.mxu0 0.0
  %2683 = vmatprep.subr.mxu0 0.0
  %2684 = vmatpush1.msra.mxu0 0.0
  %2685 = vmatprep.subr.mxu0 0.0
  %2686 = vmatpush1.msra.mxu0 0.0
  %2687 = vmatprep.subr.mxu0 0.0
  %2688 = vmatpush1.msra.mxu0 0.0
  %2689 = vmatprep.subr.mxu0 0.0
  %2690 = vmatpush1.msra.mxu0 0.0
  %2691 = vmatprep.subr.mxu0 0.0
  %2692 = vmatpush1.msra.mxu0 0.0
  %2693 = vmatprep.subr.mxu0 0.0
  %2694 = vmatpush1.msra.mxu0 0.0
  %2695 = vmatprep.subr.mxu0 0.0
  %2696 = vmatpush1.msra.mxu0 0.0
  %2697 = vmatprep.subr.mxu0 0.0
  %2698 = vmatpush1.msra.mxu0 0.0
  %2699 = vmatprep.subr.mxu0 0.0
  %2700 = vmatpush1.msra.mxu0 0.0
  %2701 = vmatprep.subr.mxu0 0.0
  %2702 = vmatpush1.msra.mxu0 0.0
  %2703 = vmatprep.subr.mxu0 0.0
  %2704 = vmatpush1.msra.mxu0 0.0
  %2705 = vmatprep.subr.mxu0 0.0
  %2706 = vmatpush1.msra.mxu0 0.0
  %2707 = vmatprep.subr.mxu0 0.0
  %2708 = vmatpush1.msra.mxu0 0.0
  %2709 = vmatprep.subr.mxu0 0.0
  %2710 = vmatpush1.msra.mxu0 0.0
  %2711 = vmatprep.subr.mxu0 0.0
  %2712 = vmatpush1.msra.mxu0 0.0
  %2713 = vmatprep.subr.mxu0 0.0
  %2714 = vmatpush1.msra.mxu0 0.0
  %2715 = vmatprep.mubr.f32.mxu0 0.0
  %2716 = vmatmul.mubr.f32.gmra.mrb[0].mxu0 %v2646
  %v2717 = vpop.f32.mrb[0].mxu0
  %v2718 = vadd.f32 0.0, %v2717
  %v2719 = vpop.f32.mrb[0].mxu0
  %v2720 = vadd.f32 0.0, %v2719
  %2721 = vmatprep.mubr.f32.mxu0 0.0
  %2722 = vmatmul.mubr.f32.gmra.mrb[0].mxu0 %v2649
  %v2723 = vpop.f32.mrb[0].mxu0
  %v2724 = vadd.f32 0.0, %v2723
  %v2725 = vpop.f32.mrb[0].mxu0
  %v2726 = vadd.f32 0.0, %v2725
  %2727 = vdwg.mxu0
  %v2728 = vadd.f32 %v2504, %v2718
  %v2729 = vadd.f32 %v2506, %v2720
  %v2730 = vadd.f32 %v2510, %v2724
  %v2731 = vadd.f32 %v2512, %v2726
  %v2732 = vld [vmem:[%s677] sm:$0x3]
  %2733 = vrot.lane.b32.xlu0 %v2092, 1
  %v2734 = vpop.permute.xlu0 %2733
  %2736 = vrot.lane.b32.xlu0 %v2086, 1
  %v2737 = vpop.permute.xlu0 %2736
  %v2738 = vsel %vm684, %v2737, %v2734
  %v2741 = vsel %vm684, %v2734, %v2737
  %v2743 = vlaneseq
  %v2744 = vshrl.u32 %v2743, 7
  %v2745 = vsub.s32 0, %v2744
  %v2746 = vrot.slane %v2732, %v2745
  %v2747 = vlaneseq
  %v2748 = vshrl.u32 %v2747, 7
  %v2749 = vsub.s32 1, %v2748
  %v2750 = vrot.slane %v2732, %v2749
  %v2753 = vmul.f32 %v2741, %v2746
  %v2754 = vmul.f32 %v2738, %v2750
  %2755 = vrot.lane.b32.xlu0 %v2089, 1
  %v2756 = vpop.permute.xlu0 %2755
  %2758 = vrot.lane.b32.xlu0 %v2088, 1
  %v2759 = vpop.permute.xlu0 %2758
  %v2760 = vsel %vm684, %v2759, %v2756
  %v2763 = vsel %vm684, %v2756, %v2759
  %v2764 = vmul.f32 %v2763, %v2746
  %v2765 = vmul.f32 %v2760, %v2750
  %v2766 = vld [vmem:[%s713] sm:$0xff]
  %v2767 = vld [vmem:[%s713 + $0x8] sm:$0xff]
  %v2769 = vsel %vm105, %v2766, 0
  %v2772 = vsel %vm105, %v2767, 0
  %v2775 = vsel %vm112, %v2753, 0
  %v2778 = vsel %vm112, %v2754, 0
  %2780 = vmatprep.subr.mxu0 %v2778
  %2781 = vmatpush1.msra.mxu0 %v2775
  %2782 = vmatprep.subr.mxu0 0.0
  %2783 = vmatpush1.msra.mxu0 0.0
  %2784 = vmatprep.subr.mxu0 0.0
  %2785 = vmatpush1.msra.mxu0 0.0
  %2786 = vmatprep.subr.mxu0 0.0
  %2787 = vmatpush1.msra.mxu0 0.0
  %2788 = vmatprep.subr.mxu0 0.0
  %2789 = vmatpush1.msra.mxu0 0.0
  %2790 = vmatprep.subr.mxu0 0.0
  %2791 = vmatpush1.msra.mxu0 0.0
  %2792 = vmatprep.subr.mxu0 0.0
  %2793 = vmatpush1.msra.mxu0 0.0
  %2794 = vmatprep.subr.mxu0 0.0
  %2795 = vmatpush1.msra.mxu0 0.0
  %2796 = vmatprep.subr.mxu0 0.0
  %2797 = vmatpush1.msra.mxu0 0.0
  %2798 = vmatprep.subr.mxu0 0.0
  %2799 = vmatpush1.msra.mxu0 0.0
  %2800 = vmatprep.subr.mxu0 0.0
  %2801 = vmatpush1.msra.mxu0 0.0
  %2802 = vmatprep.subr.mxu0 0.0
  %2803 = vmatpush1.msra.mxu0 0.0
  %2804 = vmatprep.subr.mxu0 0.0
  %2805 = vmatpush1.msra.mxu0 0.0
  %2806 = vmatprep.subr.mxu0 0.0
  %2807 = vmatpush1.msra.mxu0 0.0
  %2808 = vmatprep.subr.mxu0 0.0
  %2809 = vmatpush1.msra.mxu0 0.0
  %2810 = vmatprep.subr.mxu0 0.0
  %2811 = vmatpush1.msra.mxu0 0.0
  %2812 = vmatprep.subr.mxu0 0.0
  %2813 = vmatpush1.msra.mxu0 0.0
  %2814 = vmatprep.subr.mxu0 0.0
  %2815 = vmatpush1.msra.mxu0 0.0
  %2816 = vmatprep.subr.mxu0 0.0
  %2817 = vmatpush1.msra.mxu0 0.0
  %2818 = vmatprep.subr.mxu0 0.0
  %2819 = vmatpush1.msra.mxu0 0.0
  %2820 = vmatprep.subr.mxu0 0.0
  %2821 = vmatpush1.msra.mxu0 0.0
  %2822 = vmatprep.subr.mxu0 0.0
  %2823 = vmatpush1.msra.mxu0 0.0
  %2824 = vmatprep.subr.mxu0 0.0
  %2825 = vmatpush1.msra.mxu0 0.0
  %2826 = vmatprep.subr.mxu0 0.0
  %2827 = vmatpush1.msra.mxu0 0.0
  %2828 = vmatprep.subr.mxu0 0.0
  %2829 = vmatpush1.msra.mxu0 0.0
  %2830 = vmatprep.subr.mxu0 0.0
  %2831 = vmatpush1.msra.mxu0 0.0
  %2832 = vmatprep.subr.mxu0 0.0
  %2833 = vmatpush1.msra.mxu0 0.0
  %2834 = vmatprep.subr.mxu0 0.0
  %2835 = vmatpush1.msra.mxu0 0.0
  %2836 = vmatprep.subr.mxu0 0.0
  %2837 = vmatpush1.msra.mxu0 0.0
  %2838 = vmatprep.subr.mxu0 0.0
  %2839 = vmatpush1.msra.mxu0 0.0
  %2840 = vmatprep.subr.mxu0 0.0
  %2841 = vmatpush1.msra.mxu0 0.0
  %2842 = vmatprep.subr.mxu0 0.0
  %2843 = vmatpush1.msra.mxu0 0.0
  %2844 = vmatprep.mubr.f32.mxu0 0.0
  %2845 = vmatmul.mubr.f32.gmra.mrb[0].mxu0 %v2769
  %v2846 = vpop.f32.mrb[0].mxu0
  %v2847 = vadd.f32 0.0, %v2846
  %v2848 = vpop.f32.mrb[0].mxu0
  %v2849 = vadd.f32 0.0, %v2848
  %2850 = vmatprep.mubr.f32.mxu0 0.0
  %2851 = vmatmul.mubr.f32.gmra.mrb[0].mxu0 %v2772
  %v2852 = vpop.f32.mrb[0].mxu0
  %v2853 = vadd.f32 0.0, %v2852
  %v2854 = vpop.f32.mrb[0].mxu0
  %v2855 = vadd.f32 0.0, %v2854
  %2856 = vdwg.mxu0
  %v2857 = vadd.f32 %v2639, %v2847
  %v2858 = vadd.f32 %v2640, %v2849
  %v2859 = vadd.f32 %v2641, %v2853
  %v2860 = vadd.f32 %v2642, %v2855
  %v2861 = vld [vmem:[%s809] sm:$0xff]
  %v2862 = vld [vmem:[%s809 + $0x8] sm:$0xff]
  %v2864 = vsel %vm288, %v2861, 0
  %v2867 = vsel %vm288, %v2862, 0
  %2869 = vmatprep.subr.mxu0 %v2765
  %2870 = vmatpush1.msra.mxu0 %v2764
  %2871 = vmatprep.subr.mxu0 0.0
  %2872 = vmatpush1.msra.mxu0 0.0
  %2873 = vmatprep.subr.mxu0 0.0
  %2874 = vmatpush1.msra.mxu0 0.0
  %2875 = vmatprep.subr.mxu0 0.0
  %2876 = vmatpush1.msra.mxu0 0.0
  %2877 = vmatprep.subr.mxu0 0.0
  %2878 = vmatpush1.msra.mxu0 0.0
  %2879 = vmatprep.subr.mxu0 0.0
  %2880 = vmatpush1.msra.mxu0 0.0
  %2881 = vmatprep.subr.mxu0 0.0
  %2882 = vmatpush1.msra.mxu0 0.0
  %2883 = vmatprep.subr.mxu0 0.0
  %2884 = vmatpush1.msra.mxu0 0.0
  %2885 = vmatprep.subr.mxu0 0.0
  %2886 = vmatpush1.msra.mxu0 0.0
  %2887 = vmatprep.subr.mxu0 0.0
  %2888 = vmatpush1.msra.mxu0 0.0
  %2889 = vmatprep.subr.mxu0 0.0
  %2890 = vmatpush1.msra.mxu0 0.0
  %2891 = vmatprep.subr.mxu0 0.0
  %2892 = vmatpush1.msra.mxu0 0.0
  %2893 = vmatprep.subr.mxu0 0.0
  %2894 = vmatpush1.msra.mxu0 0.0
  %2895 = vmatprep.subr.mxu0 0.0
  %2896 = vmatpush1.msra.mxu0 0.0
  %2897 = vmatprep.subr.mxu0 0.0
  %2898 = vmatpush1.msra.mxu0 0.0
  %2899 = vmatprep.subr.mxu0 0.0
  %2900 = vmatpush1.msra.mxu0 0.0
  %2901 = vmatprep.subr.mxu0 0.0
  %2902 = vmatpush1.msra.mxu0 0.0
  %2903 = vmatprep.subr.mxu0 0.0
  %2904 = vmatpush1.msra.mxu0 0.0
  %2905 = vmatprep.subr.mxu0 0.0
  %2906 = vmatpush1.msra.mxu0 0.0
  %2907 = vmatprep.subr.mxu0 0.0
  %2908 = vmatpush1.msra.mxu0 0.0
  %2909 = vmatprep.subr.mxu0 0.0
  %2910 = vmatpush1.msra.mxu0 0.0
  %2911 = vmatprep.subr.mxu0 0.0
  %2912 = vmatpush1.msra.mxu0 0.0
  %2913 = vmatprep.subr.mxu0 0.0
  %2914 = vmatpush1.msra.mxu0 0.0
  %2915 = vmatprep.subr.mxu0 0.0
  %2916 = vmatpush1.msra.mxu0 0.0
  %2917 = vmatprep.subr.mxu0 0.0
  %2918 = vmatpush1.msra.mxu0 0.0
  %2919 = vmatprep.subr.mxu0 0.0
  %2920 = vmatpush1.msra.mxu0 0.0
  %2921 = vmatprep.subr.mxu0 0.0
  %2922 = vmatpush1.msra.mxu0 0.0
  %2923 = vmatprep.subr.mxu0 0.0
  %2924 = vmatpush1.msra.mxu0 0.0
  %2925 = vmatprep.subr.mxu0 0.0
  %2926 = vmatpush1.msra.mxu0 0.0
  %2927 = vmatprep.subr.mxu0 0.0
  %2928 = vmatpush1.msra.mxu0 0.0
  %2929 = vmatprep.subr.mxu0 0.0
  %2930 = vmatpush1.msra.mxu0 0.0
  %2931 = vmatprep.subr.mxu0 0.0
  %2932 = vmatpush1.msra.mxu0 0.0
  %2933 = vmatprep.mubr.f32.mxu0 0.0
  %2934 = vmatmul.mubr.f32.gmra.mrb[0].mxu0 %v2864
  %v2935 = vpop.f32.mrb[0].mxu0
  %v2936 = vadd.f32 0.0, %v2935
  %v2937 = vpop.f32.mrb[0].mxu0
  %v2938 = vadd.f32 0.0, %v2937
  %2939 = vmatprep.mubr.f32.mxu0 0.0
  %2940 = vmatmul.mubr.f32.gmra.mrb[0].mxu0 %v2867
  %v2941 = vpop.f32.mrb[0].mxu0
  %v2942 = vadd.f32 0.0, %v2941
  %v2943 = vpop.f32.mrb[0].mxu0
  %v2944 = vadd.f32 0.0, %v2943
  %2945 = vdwg.mxu0
  %v2946 = vadd.f32 %v2728, %v2936
  %v2947 = vadd.f32 %v2729, %v2938
  %v2948 = vadd.f32 %v2730, %v2942
  %v2949 = vadd.f32 %v2731, %v2944
  %v2950 = vld [vmem:[%s899] sm:$0xff]
  %v2951 = vld [vmem:[%s899 + $0x8] sm:$0xff]
  %v2953 = vsel %vm105, %v2950, 0
  %v2956 = vsel %vm105, %v2951, 0
  %v2958 = vsel %vm112, %v2086, 0
  %v2960 = vsel %vm112, %v2092, 0
  %2962 = vmatprep.subr.mxu0 %v2960
  %2963 = vmatpush1.msra.mxu0 %v2958
  %2964 = vmatprep.subr.mxu0 0.0
  %2965 = vmatpush1.msra.mxu0 0.0
  %2966 = vmatprep.subr.mxu0 0.0
  %2967 = vmatpush1.msra.mxu0 0.0
  %2968 = vmatprep.subr.mxu0 0.0
  %2969 = vmatpush1.msra.mxu0 0.0
  %2970 = vmatprep.subr.mxu0 0.0
  %2971 = vmatpush1.msra.mxu0 0.0
  %2972 = vmatprep.subr.mxu0 0.0
  %2973 = vmatpush1.msra.mxu0 0.0
  %2974 = vmatprep.subr.mxu0 0.0
  %2975 = vmatpush1.msra.mxu0 0.0
  %2976 = vmatprep.subr.mxu0 0.0
  %2977 = vmatpush1.msra.mxu0 0.0
  %2978 = vmatprep.subr.mxu0 0.0
  %2979 = vmatpush1.msra.mxu0 0.0
  %2980 = vmatprep.subr.mxu0 0.0
  %2981 = vmatpush1.msra.mxu0 0.0
  %2982 = vmatprep.subr.mxu0 0.0
  %2983 = vmatpush1.msra.mxu0 0.0
  %2984 = vmatprep.subr.mxu0 0.0
  %2985 = vmatpush1.msra.mxu0 0.0
  %2986 = vmatprep.subr.mxu0 0.0
  %2987 = vmatpush1.msra.mxu0 0.0
  %2988 = vmatprep.subr.mxu0 0.0
  %2989 = vmatpush1.msra.mxu0 0.0
  %2990 = vmatprep.subr.mxu0 0.0
  %2991 = vmatpush1.msra.mxu0 0.0
  %2992 = vmatprep.subr.mxu0 0.0
  %2993 = vmatpush1.msra.mxu0 0.0
  %2994 = vmatprep.subr.mxu0 0.0
  %2995 = vmatpush1.msra.mxu0 0.0
  %2996 = vmatprep.subr.mxu0 0.0
  %2997 = vmatpush1.msra.mxu0 0.0
  %2998 = vmatprep.subr.mxu0 0.0
  %2999 = vmatpush1.msra.mxu0 0.0
  %3000 = vmatprep.subr.mxu0 0.0
  %3001 = vmatpush1.msra.mxu0 0.0
  %3002 = vmatprep.subr.mxu0 0.0
  %3003 = vmatpush1.msra.mxu0 0.0
  %3004 = vmatprep.subr.mxu0 0.0
  %3005 = vmatpush1.msra.mxu0 0.0
  %3006 = vmatprep.subr.mxu0 0.0
  %3007 = vmatpush1.msra.mxu0 0.0
  %3008 = vmatprep.subr.mxu0 0.0
  %3009 = vmatpush1.msra.mxu0 0.0
  %3010 = vmatprep.subr.mxu0 0.0
  %3011 = vmatpush1.msra.mxu0 0.0
  %3012 = vmatprep.subr.mxu0 0.0
  %3013 = vmatpush1.msra.mxu0 0.0
  %3014 = vmatprep.subr.mxu0 0.0
  %3015 = vmatpush1.msra.mxu0 0.0
  %3016 = vmatprep.subr.mxu0 0.0
  %3017 = vmatpush1.msra.mxu0 0.0
  %3018 = vmatprep.subr.mxu0 0.0
  %3019 = vmatpush1.msra.mxu0 0.0
  %3020 = vmatprep.subr.mxu0 0.0
  %3021 = vmatpush1.msra.mxu0 0.0
  %3022 = vmatprep.subr.mxu0 0.0
  %3023 = vmatpush1.msra.mxu0 0.0
  %3024 = vmatprep.subr.mxu0 0.0
  %3025 = vmatpush1.msra.mxu0 0.0
  %3026 = vmatprep.mubr.f32.mxu0 0.0
  %3027 = vmatmul.mubr.f32.gmra.mrb[0].mxu0 %v2953
  %v3028 = vpop.f32.mrb[0].mxu0
  %v3029 = vadd.f32 0.0, %v3028
  %v3030 = vpop.f32.mrb[0].mxu0
  %v3031 = vadd.f32 0.0, %v3030
  %3032 = vmatprep.mubr.f32.mxu0 0.0
  %3033 = vmatmul.mubr.f32.gmra.mrb[0].mxu0 %v2956
  %v3034 = vpop.f32.mrb[0].mxu0
  %v3035 = vadd.f32 0.0, %v3034
  %v3036 = vpop.f32.mrb[0].mxu0
  %v3037 = vadd.f32 0.0, %v3036
  %3038 = vdwg.mxu0
  %v3039 = vadd.f32 %v2857, %v3029
  %v3040 = vadd.f32 %v2858, %v3031
  %v3041 = vadd.f32 %v2859, %v3035
  %v3042 = vadd.f32 %v2860, %v3037
  %v3043 = vld [vmem:[%s993] sm:$0xff]
  %v3044 = vld [vmem:[%s993 + $0x8] sm:$0xff]
  %v3046 = vsel %vm288, %v3043, 0
  %v3049 = vsel %vm288, %v3044, 0
  %3051 = vmatprep.subr.mxu0 %v2089
  %3052 = vmatpush1.msra.mxu0 %v2088
  %3053 = vmatprep.subr.mxu0 0.0
  %3054 = vmatpush1.msra.mxu0 0.0
  %3055 = vmatprep.subr.mxu0 0.0
  %3056 = vmatpush1.msra.mxu0 0.0
  %3057 = vmatprep.subr.mxu0 0.0
  %3058 = vmatpush1.msra.mxu0 0.0
  %3059 = vmatprep.subr.mxu0 0.0
  %3060 = vmatpush1.msra.mxu0 0.0
  %3061 = vmatprep.subr.mxu0 0.0
  %3062 = vmatpush1.msra.mxu0 0.0
  %3063 = vmatprep.subr.mxu0 0.0
  %3064 = vmatpush1.msra.mxu0 0.0
  %3065 = vmatprep.subr.mxu0 0.0
  %3066 = vmatpush1.msra.mxu0 0.0
  %3067 = vmatprep.subr.mxu0 0.0
  %3068 = vmatpush1.msra.mxu0 0.0
  %3069 = vmatprep.subr.mxu0 0.0
  %3070 = vmatpush1.msra.mxu0 0.0
  %3071 = vmatprep.subr.mxu0 0.0
  %3072 = vmatpush1.msra.mxu0 0.0
  %3073 = vmatprep.subr.mxu0 0.0
  %3074 = vmatpush1.msra.mxu0 0.0
  %3075 = vmatprep.subr.mxu0 0.0
  %3076 = vmatpush1.msra.mxu0 0.0
  %3077 = vmatprep.subr.mxu0 0.0
  %3078 = vmatpush1.msra.mxu0 0.0
  %3079 = vmatprep.subr.mxu0 0.0
  %3080 = vmatpush1.msra.mxu0 0.0
  %3081 = vmatprep.subr.mxu0 0.0
  %3082 = vmatpush1.msra.mxu0 0.0
  %3083 = vmatprep.subr.mxu0 0.0
  %3084 = vmatpush1.msra.mxu0 0.0
  %3085 = vmatprep.subr.mxu0 0.0
  %3086 = vmatpush1.msra.mxu0 0.0
  %3087 = vmatprep.subr.mxu0 0.0
  %3088 = vmatpush1.msra.mxu0 0.0
  %3089 = vmatprep.subr.mxu0 0.0
  %3090 = vmatpush1.msra.mxu0 0.0
  %3091 = vmatprep.subr.mxu0 0.0
  %3092 = vmatpush1.msra.mxu0 0.0
  %3093 = vmatprep.subr.mxu0 0.0
  %3094 = vmatpush1.msra.mxu0 0.0
  %3095 = vmatprep.subr.mxu0 0.0
  %3096 = vmatpush1.msra.mxu0 0.0
  %3097 = vmatprep.subr.mxu0 0.0
  %3098 = vmatpush1.msra.mxu0 0.0
  %3099 = vmatprep.subr.mxu0 0.0
  %3100 = vmatpush1.msra.mxu0 0.0
  %3101 = vmatprep.subr.mxu0 0.0
  %3102 = vmatpush1.msra.mxu0 0.0
  %3103 = vmatprep.subr.mxu0 0.0
  %3104 = vmatpush1.msra.mxu0 0.0
  %3105 = vmatprep.subr.mxu0 0.0
  %3106 = vmatpush1.msra.mxu0 0.0
  %3107 = vmatprep.subr.mxu0 0.0
  %3108 = vmatpush1.msra.mxu0 0.0
  %3109 = vmatprep.subr.mxu0 0.0
  %3110 = vmatpush1.msra.mxu0 0.0
  %3111 = vmatprep.subr.mxu0 0.0
  %3112 = vmatpush1.msra.mxu0 0.0
  %3113 = vmatprep.subr.mxu0 0.0
  %3114 = vmatpush1.msra.mxu0 0.0
  %3115 = vmatprep.mubr.f32.mxu0 0.0
  %3116 = vmatmul.mubr.f32.gmra.mrb[0].mxu0 %v3046
  %v3117 = vpop.f32.mrb[0].mxu0
  %v3118 = vadd.f32 0.0, %v3117
  %v3119 = vpop.f32.mrb[0].mxu0
  %v3120 = vadd.f32 0.0, %v3119
  %3121 = vmatprep.mubr.f32.mxu0 0.0
  %3122 = vmatmul.mubr.f32.gmra.mrb[0].mxu0 %v3049
  %v3123 = vpop.f32.mrb[0].mxu0
  %v3124 = vadd.f32 0.0, %v3123
  %v3125 = vpop.f32.mrb[0].mxu0
  %v3126 = vadd.f32 0.0, %v3125
  %3127 = vdwg.mxu0
  %v3128 = vadd.f32 %v2946, %v3118
  %v3129 = vadd.f32 %v2947, %v3120
  %v3130 = vadd.f32 %v2948, %v3124
  %v3131 = vadd.f32 %v2949, %v3126
  %v3132 = vld [vmem:[%s1083] sm:$0x3]
  %3133 = vrot.lane.b32.xlu0 %v2086, 127
  %v3134 = vpop.permute.xlu0 %3133
  %3135 = vrot.lane.b32.xlu0 %v2092, 127
  %v3136 = vpop.permute.xlu0 %3135
  %v3137 = vsel %vm1089, %v3134, %v3136
  %v3141 = vsel %vm1089, %v3136, %v3134
  %v3143 = vlaneseq
  %v3144 = vshrl.u32 %v3143, 7
  %v3145 = vsub.s32 0, %v3144
  %v3146 = vrot.slane %v3132, %v3145
  %v3147 = vlaneseq
  %v3148 = vshrl.u32 %v3147, 7
  %v3149 = vsub.s32 1, %v3148
  %v3150 = vrot.slane %v3132, %v3149
  %v3153 = vmul.f32 %v3137, %v3146
  %v3154 = vmul.f32 %v3141, %v3150
  %3155 = vrot.lane.b32.xlu0 %v2088, 127
  %v3156 = vpop.permute.xlu0 %3155
  %3157 = vrot.lane.b32.xlu0 %v2089, 127
  %v3158 = vpop.permute.xlu0 %3157
  %v3159 = vsel %vm1089, %v3156, %v3158
  %v3163 = vsel %vm1089, %v3158, %v3156
  %v3164 = vmul.f32 %v3159, %v3146
  %v3165 = vmul.f32 %v3163, %v3150
  %v3166 = vld [vmem:[%s1119] sm:$0xff]
  %v3167 = vld [vmem:[%s1119 + $0x8] sm:$0xff]
  %v3169 = vsel %vm105, %v3166, 0
  %v3172 = vsel %vm105, %v3167, 0
  %v3175 = vsel %vm112, %v3153, 0
  %v3178 = vsel %vm112, %v3154, 0
  %3180 = vmatprep.subr.mxu0 %v3178
  %3181 = vmatpush1.msra.mxu0 %v3175
  %3182 = vmatprep.subr.mxu0 0.0
  %3183 = vmatpush1.msra.mxu0 0.0
  %3184 = vmatprep.subr.mxu0 0.0
  %3185 = vmatpush1.msra.mxu0 0.0
  %3186 = vmatprep.subr.mxu0 0.0
  %3187 = vmatpush1.msra.mxu0 0.0
  %3188 = vmatprep.subr.mxu0 0.0
  %3189 = vmatpush1.msra.mxu0 0.0
  %3190 = vmatprep.subr.mxu0 0.0
  %3191 = vmatpush1.msra.mxu0 0.0
  %3192 = vmatprep.subr.mxu0 0.0
  %3193 = vmatpush1.msra.mxu0 0.0
  %3194 = vmatprep.subr.mxu0 0.0
  %3195 = vmatpush1.msra.mxu0 0.0
  %3196 = vmatprep.subr.mxu0 0.0
  %3197 = vmatpush1.msra.mxu0 0.0
  %3198 = vmatprep.subr.mxu0 0.0
  %3199 = vmatpush1.msra.mxu0 0.0
  %3200 = vmatprep.subr.mxu0 0.0
  %3201 = vmatpush1.msra.mxu0 0.0
  %3202 = vmatprep.subr.mxu0 0.0
  %3203 = vmatpush1.msra.mxu0 0.0
  %3204 = vmatprep.subr.mxu0 0.0
  %3205 = vmatpush1.msra.mxu0 0.0
  %3206 = vmatprep.subr.mxu0 0.0
  %3207 = vmatpush1.msra.mxu0 0.0
  %3208 = vmatprep.subr.mxu0 0.0
  %3209 = vmatpush1.msra.mxu0 0.0
  %3210 = vmatprep.subr.mxu0 0.0
  %3211 = vmatpush1.msra.mxu0 0.0
  %3212 = vmatprep.subr.mxu0 0.0
  %3213 = vmatpush1.msra.mxu0 0.0
  %3214 = vmatprep.subr.mxu0 0.0
  %3215 = vmatpush1.msra.mxu0 0.0
  %3216 = vmatprep.subr.mxu0 0.0
  %3217 = vmatpush1.msra.mxu0 0.0
  %3218 = vmatprep.subr.mxu0 0.0
  %3219 = vmatpush1.msra.mxu0 0.0
  %3220 = vmatprep.subr.mxu0 0.0
  %3221 = vmatpush1.msra.mxu0 0.0
  %3222 = vmatprep.subr.mxu0 0.0
  %3223 = vmatpush1.msra.mxu0 0.0
  %3224 = vmatprep.subr.mxu0 0.0
  %3225 = vmatpush1.msra.mxu0 0.0
  %3226 = vmatprep.subr.mxu0 0.0
  %3227 = vmatpush1.msra.mxu0 0.0
  %3228 = vmatprep.subr.mxu0 0.0
  %3229 = vmatpush1.msra.mxu0 0.0
  %3230 = vmatprep.subr.mxu0 0.0
  %3231 = vmatpush1.msra.mxu0 0.0
  %3232 = vmatprep.subr.mxu0 0.0
  %3233 = vmatpush1.msra.mxu0 0.0
  %3234 = vmatprep.subr.mxu0 0.0
  %3235 = vmatpush1.msra.mxu0 0.0
  %3236 = vmatprep.subr.mxu0 0.0
  %3237 = vmatpush1.msra.mxu0 0.0
  %3238 = vmatprep.subr.mxu0 0.0
  %3239 = vmatpush1.msra.mxu0 0.0
  %3240 = vmatprep.subr.mxu0 0.0
  %3241 = vmatpush1.msra.mxu0 0.0
  %3242 = vmatprep.subr.mxu0 0.0
  %3243 = vmatpush1.msra.mxu0 0.0
  %3244 = vmatprep.mubr.f32.mxu0 0.0
  %3245 = vmatmul.mubr.f32.gmra.mrb[0].mxu0 %v3169
  %v3246 = vpop.f32.mrb[0].mxu0
  %v3247 = vadd.f32 0.0, %v3246
  %v3248 = vpop.f32.mrb[0].mxu0
  %v3249 = vadd.f32 0.0, %v3248
  %3250 = vmatprep.mubr.f32.mxu0 0.0
  %3251 = vmatmul.mubr.f32.gmra.mrb[0].mxu0 %v3172
  %v3252 = vpop.f32.mrb[0].mxu0
  %v3253 = vadd.f32 0.0, %v3252
  %v3254 = vpop.f32.mrb[0].mxu0
  %v3255 = vadd.f32 0.0, %v3254
  %3256 = vdwg.mxu0
  %v3257 = vadd.f32 %v3039, %v3247
  %v3258 = vadd.f32 %v3040, %v3249
  %v3259 = vadd.f32 %v3041, %v3253
  %v3260 = vadd.f32 %v3042, %v3255
  %v3261 = vld [vmem:[%s1215] sm:$0xff]
  %v3262 = vld [vmem:[%s1215 + $0x8] sm:$0xff]
  %v3264 = vsel %vm288, %v3261, 0
  %v3267 = vsel %vm288, %v3262, 0
  %3269 = vmatprep.subr.mxu0 %v3165
  %3270 = vmatpush1.msra.mxu0 %v3164
  %3271 = vmatprep.subr.mxu0 0.0
  %3272 = vmatpush1.msra.mxu0 0.0
  %3273 = vmatprep.subr.mxu0 0.0
  %3274 = vmatpush1.msra.mxu0 0.0
  %3275 = vmatprep.subr.mxu0 0.0
  %3276 = vmatpush1.msra.mxu0 0.0
  %3277 = vmatprep.subr.mxu0 0.0
  %3278 = vmatpush1.msra.mxu0 0.0
  %3279 = vmatprep.subr.mxu0 0.0
  %3280 = vmatpush1.msra.mxu0 0.0
  %3281 = vmatprep.subr.mxu0 0.0
  %3282 = vmatpush1.msra.mxu0 0.0
  %3283 = vmatprep.subr.mxu0 0.0
  %3284 = vmatpush1.msra.mxu0 0.0
  %3285 = vmatprep.subr.mxu0 0.0
  %3286 = vmatpush1.msra.mxu0 0.0
  %3287 = vmatprep.subr.mxu0 0.0
  %3288 = vmatpush1.msra.mxu0 0.0
  %3289 = vmatprep.subr.mxu0 0.0
  %3290 = vmatpush1.msra.mxu0 0.0
  %3291 = vmatprep.subr.mxu0 0.0
  %3292 = vmatpush1.msra.mxu0 0.0
  %3293 = vmatprep.subr.mxu0 0.0
  %3294 = vmatpush1.msra.mxu0 0.0
  %3295 = vmatprep.subr.mxu0 0.0
  %3296 = vmatpush1.msra.mxu0 0.0
  %3297 = vmatprep.subr.mxu0 0.0
  %3298 = vmatpush1.msra.mxu0 0.0
  %3299 = vmatprep.subr.mxu0 0.0
  %3300 = vmatpush1.msra.mxu0 0.0
  %3301 = vmatprep.subr.mxu0 0.0
  %3302 = vmatpush1.msra.mxu0 0.0
  %3303 = vmatprep.subr.mxu0 0.0
  %3304 = vmatpush1.msra.mxu0 0.0
  %3305 = vmatprep.subr.mxu0 0.0
  %3306 = vmatpush1.msra.mxu0 0.0
  %3307 = vmatprep.subr.mxu0 0.0
  %3308 = vmatpush1.msra.mxu0 0.0
  %3309 = vmatprep.subr.mxu0 0.0
  %3310 = vmatpush1.msra.mxu0 0.0
  %3311 = vmatprep.subr.mxu0 0.0
  %3312 = vmatpush1.msra.mxu0 0.0
  %3313 = vmatprep.subr.mxu0 0.0
  %3314 = vmatpush1.msra.mxu0 0.0
  %3315 = vmatprep.subr.mxu0 0.0
  %3316 = vmatpush1.msra.mxu0 0.0
  %3317 = vmatprep.subr.mxu0 0.0
  %3318 = vmatpush1.msra.mxu0 0.0
  %3319 = vmatprep.subr.mxu0 0.0
  %3320 = vmatpush1.msra.mxu0 0.0
  %3321 = vmatprep.subr.mxu0 0.0
  %3322 = vmatpush1.msra.mxu0 0.0
  %3323 = vmatprep.subr.mxu0 0.0
  %3324 = vmatpush1.msra.mxu0 0.0
  %3325 = vmatprep.subr.mxu0 0.0
  %3326 = vmatpush1.msra.mxu0 0.0
  %3327 = vmatprep.subr.mxu0 0.0
  %3328 = vmatpush1.msra.mxu0 0.0
  %3329 = vmatprep.subr.mxu0 0.0
  %3330 = vmatpush1.msra.mxu0 0.0
  %3331 = vmatprep.subr.mxu0 0.0
  %3332 = vmatpush1.msra.mxu0 0.0
  %3333 = vmatprep.mubr.f32.mxu0 0.0
  %3334 = vmatmul.mubr.f32.gmra.mrb[0].mxu0 %v3264
  %v3335 = vpop.f32.mrb[0].mxu0
  %v3336 = vadd.f32 0.0, %v3335
  %v3337 = vpop.f32.mrb[0].mxu0
  %v3338 = vadd.f32 0.0, %v3337
  %3339 = vmatprep.mubr.f32.mxu0 0.0
  %3340 = vmatmul.mubr.f32.gmra.mrb[0].mxu0 %v3267
  %v3341 = vpop.f32.mrb[0].mxu0
  %v3342 = vadd.f32 0.0, %v3341
  %v3343 = vpop.f32.mrb[0].mxu0
  %v3344 = vadd.f32 0.0, %v3343
  %3345 = vdwg.mxu0
  %v3346 = vadd.f32 %v3128, %v3336
  %v3347 = vadd.f32 %v3129, %v3338
  %v3348 = vadd.f32 %v3130, %v3342
  %v3349 = vadd.f32 %v3131, %v3344
  %v3350 = vld [vmem:[%s1305] sm:$0x3]
  %3351 = vrot.lane.b32.xlu0 %v2086, 113
  %v3352 = vpop.permute.xlu0 %3351
  %3353 = vrot.lane.b32.xlu0 %v2092, 113
  %v3354 = vpop.permute.xlu0 %3353
  %v3355 = vsel %vm1311, %v3352, %v3354
  %v3359 = vsel %vm1311, %v3354, %v3352
  %v3361 = vlaneseq
  %v3362 = vshrl.u32 %v3361, 7
  %v3363 = vsub.s32 0, %v3362
  %v3364 = vrot.slane %v3350, %v3363
  %v3365 = vlaneseq
  %v3366 = vshrl.u32 %v3365, 7
  %v3367 = vsub.s32 1, %v3366
  %v3368 = vrot.slane %v3350, %v3367
  %v3371 = vmul.f32 %v3355, %v3364
  %v3372 = vmul.f32 %v3359, %v3368
  %3373 = vrot.lane.b32.xlu0 %v2088, 113
  %v3374 = vpop.permute.xlu0 %3373
  %3375 = vrot.lane.b32.xlu0 %v2089, 113
  %v3376 = vpop.permute.xlu0 %3375
  %v3377 = vsel %vm1311, %v3374, %v3376
  %v3381 = vsel %vm1311, %v3376, %v3374
  %v3382 = vmul.f32 %v3377, %v3364
  %v3383 = vmul.f32 %v3381, %v3368
  %v3384 = vld [vmem:[%s1341] sm:$0xff]
  %v3385 = vld [vmem:[%s1341 + $0x8] sm:$0xff]
  %v3387 = vsel %vm105, %v3384, 0
  %v3390 = vsel %vm105, %v3385, 0
  %v3393 = vsel %vm112, %v3371, 0
  %v3396 = vsel %vm112, %v3372, 0
  %3398 = vmatprep.subr.mxu0 %v3396
  %3399 = vmatpush1.msra.mxu0 %v3393
  %3400 = vmatprep.subr.mxu0 0.0
  %3401 = vmatpush1.msra.mxu0 0.0
  %3402 = vmatprep.subr.mxu0 0.0
  %3403 = vmatpush1.msra.mxu0 0.0
  %3404 = vmatprep.subr.mxu0 0.0
  %3405 = vmatpush1.msra.mxu0 0.0
  %3406 = vmatprep.subr.mxu0 0.0
  %3407 = vmatpush1.msra.mxu0 0.0
  %3408 = vmatprep.subr.mxu0 0.0
  %3409 = vmatpush1.msra.mxu0 0.0
  %3410 = vmatprep.subr.mxu0 0.0
  %3411 = vmatpush1.msra.mxu0 0.0
  %3412 = vmatprep.subr.mxu0 0.0
  %3413 = vmatpush1.msra.mxu0 0.0
  %3414 = vmatprep.subr.mxu0 0.0
  %3415 = vmatpush1.msra.mxu0 0.0
  %3416 = vmatprep.subr.mxu0 0.0
  %3417 = vmatpush1.msra.mxu0 0.0
  %3418 = vmatprep.subr.mxu0 0.0
  %3419 = vmatpush1.msra.mxu0 0.0
  %3420 = vmatprep.subr.mxu0 0.0
  %3421 = vmatpush1.msra.mxu0 0.0
  %3422 = vmatprep.subr.mxu0 0.0
  %3423 = vmatpush1.msra.mxu0 0.0
  %3424 = vmatprep.subr.mxu0 0.0
  %3425 = vmatpush1.msra.mxu0 0.0
  %3426 = vmatprep.subr.mxu0 0.0
  %3427 = vmatpush1.msra.mxu0 0.0
  %3428 = vmatprep.subr.mxu0 0.0
  %3429 = vmatpush1.msra.mxu0 0.0
  %3430 = vmatprep.subr.mxu0 0.0
  %3431 = vmatpush1.msra.mxu0 0.0
  %3432 = vmatprep.subr.mxu0 0.0
  %3433 = vmatpush1.msra.mxu0 0.0
  %3434 = vmatprep.subr.mxu0 0.0
  %3435 = vmatpush1.msra.mxu0 0.0
  %3436 = vmatprep.subr.mxu0 0.0
  %3437 = vmatpush1.msra.mxu0 0.0
  %3438 = vmatprep.subr.mxu0 0.0
  %3439 = vmatpush1.msra.mxu0 0.0
  %3440 = vmatprep.subr.mxu0 0.0
  %3441 = vmatpush1.msra.mxu0 0.0
  %3442 = vmatprep.subr.mxu0 0.0
  %3443 = vmatpush1.msra.mxu0 0.0
  %3444 = vmatprep.subr.mxu0 0.0
  %3445 = vmatpush1.msra.mxu0 0.0
  %3446 = vmatprep.subr.mxu0 0.0
  %3447 = vmatpush1.msra.mxu0 0.0
  %3448 = vmatprep.subr.mxu0 0.0
  %3449 = vmatpush1.msra.mxu0 0.0
  %3450 = vmatprep.subr.mxu0 0.0
  %3451 = vmatpush1.msra.mxu0 0.0
  %3452 = vmatprep.subr.mxu0 0.0
  %3453 = vmatpush1.msra.mxu0 0.0
  %3454 = vmatprep.subr.mxu0 0.0
  %3455 = vmatpush1.msra.mxu0 0.0
  %3456 = vmatprep.subr.mxu0 0.0
  %3457 = vmatpush1.msra.mxu0 0.0
  %3458 = vmatprep.subr.mxu0 0.0
  %3459 = vmatpush1.msra.mxu0 0.0
  %3460 = vmatprep.subr.mxu0 0.0
  %3461 = vmatpush1.msra.mxu0 0.0
  %3462 = vmatprep.mubr.f32.mxu0 0.0
  %3463 = vmatmul.mubr.f32.gmra.mrb[0].mxu0 %v3387
  %v3464 = vpop.f32.mrb[0].mxu0
  %v3465 = vadd.f32 0.0, %v3464
  %v3466 = vpop.f32.mrb[0].mxu0
  %v3467 = vadd.f32 0.0, %v3466
  %3468 = vmatprep.mubr.f32.mxu0 0.0
  %3469 = vmatmul.mubr.f32.gmra.mrb[0].mxu0 %v3390
  %v3470 = vpop.f32.mrb[0].mxu0
  %v3471 = vadd.f32 0.0, %v3470
  %v3472 = vpop.f32.mrb[0].mxu0
  %v3473 = vadd.f32 0.0, %v3472
  %3474 = vdwg.mxu0
  %v3475 = vadd.f32 %v3257, %v3465
  %v3476 = vadd.f32 %v3258, %v3467
  %v3477 = vadd.f32 %v3259, %v3471
  %v3478 = vadd.f32 %v3260, %v3473
  %v3479 = vld [vmem:[%s1437] sm:$0xff]
  %v3480 = vld [vmem:[%s1437 + $0x8] sm:$0xff]
  %v3482 = vsel %vm288, %v3479, 0
  %v3485 = vsel %vm288, %v3480, 0
  %3487 = vmatprep.subr.mxu0 %v3383
  %3488 = vmatpush1.msra.mxu0 %v3382
  %3489 = vmatprep.subr.mxu0 0.0
  %3490 = vmatpush1.msra.mxu0 0.0
  %3491 = vmatprep.subr.mxu0 0.0
  %3492 = vmatpush1.msra.mxu0 0.0
  %3493 = vmatprep.subr.mxu0 0.0
  %3494 = vmatpush1.msra.mxu0 0.0
  %3495 = vmatprep.subr.mxu0 0.0
  %3496 = vmatpush1.msra.mxu0 0.0
  %3497 = vmatprep.subr.mxu0 0.0
  %3498 = vmatpush1.msra.mxu0 0.0
  %3499 = vmatprep.subr.mxu0 0.0
  %3500 = vmatpush1.msra.mxu0 0.0
  %3501 = vmatprep.subr.mxu0 0.0
  %3502 = vmatpush1.msra.mxu0 0.0
  %3503 = vmatprep.subr.mxu0 0.0
  %3504 = vmatpush1.msra.mxu0 0.0
  %3505 = vmatprep.subr.mxu0 0.0
  %3506 = vmatpush1.msra.mxu0 0.0
  %3507 = vmatprep.subr.mxu0 0.0
  %3508 = vmatpush1.msra.mxu0 0.0
  %3509 = vmatprep.subr.mxu0 0.0
  %3510 = vmatpush1.msra.mxu0 0.0
  %3511 = vmatprep.subr.mxu0 0.0
  %3512 = vmatpush1.msra.mxu0 0.0
  %3513 = vmatprep.subr.mxu0 0.0
  %3514 = vmatpush1.msra.mxu0 0.0
  %3515 = vmatprep.subr.mxu0 0.0
  %3516 = vmatpush1.msra.mxu0 0.0
  %3517 = vmatprep.subr.mxu0 0.0
  %3518 = vmatpush1.msra.mxu0 0.0
  %3519 = vmatprep.subr.mxu0 0.0
  %3520 = vmatpush1.msra.mxu0 0.0
  %3521 = vmatprep.subr.mxu0 0.0
  %3522 = vmatpush1.msra.mxu0 0.0
  %3523 = vmatprep.subr.mxu0 0.0
  %3524 = vmatpush1.msra.mxu0 0.0
  %3525 = vmatprep.subr.mxu0 0.0
  %3526 = vmatpush1.msra.mxu0 0.0
  %3527 = vmatprep.subr.mxu0 0.0
  %3528 = vmatpush1.msra.mxu0 0.0
  %3529 = vmatprep.subr.mxu0 0.0
  %3530 = vmatpush1.msra.mxu0 0.0
  %3531 = vmatprep.subr.mxu0 0.0
  %3532 = vmatpush1.msra.mxu0 0.0
  %3533 = vmatprep.subr.mxu0 0.0
  %3534 = vmatpush1.msra.mxu0 0.0
  %3535 = vmatprep.subr.mxu0 0.0
  %3536 = vmatpush1.msra.mxu0 0.0
  %3537 = vmatprep.subr.mxu0 0.0
  %3538 = vmatpush1.msra.mxu0 0.0
  %3539 = vmatprep.subr.mxu0 0.0
  %3540 = vmatpush1.msra.mxu0 0.0
  %3541 = vmatprep.subr.mxu0 0.0
  %3542 = vmatpush1.msra.mxu0 0.0
  %3543 = vmatprep.subr.mxu0 0.0
  %3544 = vmatpush1.msra.mxu0 0.0
  %3545 = vmatprep.subr.mxu0 0.0
  %3546 = vmatpush1.msra.mxu0 0.0
  %3547 = vmatprep.subr.mxu0 0.0
  %3548 = vmatpush1.msra.mxu0 0.0
  %3549 = vmatprep.subr.mxu0 0.0
  %3550 = vmatpush1.msra.mxu0 0.0
  %3551 = vmatprep.mubr.f32.mxu0 0.0
  %3552 = vmatmul.mubr.f32.gmra.mrb[0].mxu0 %v3482
  %v3553 = vpop.f32.mrb[0].mxu0
  %v3554 = vadd.f32 0.0, %v3553
  %v3555 = vpop.f32.mrb[0].mxu0
  %v3556 = vadd.f32 0.0, %v3555
  %3557 = vmatprep.mubr.f32.mxu0 0.0
  %3558 = vmatmul.mubr.f32.gmra.mrb[0].mxu0 %v3485
  %v3559 = vpop.f32.mrb[0].mxu0
  %v3560 = vadd.f32 0.0, %v3559
  %v3561 = vpop.f32.mrb[0].mxu0
  %v3562 = vadd.f32 0.0, %v3561
  %3563 = vdwg.mxu0
  %v3564 = vadd.f32 %v3346, %v3554
  %v3565 = vadd.f32 %v3347, %v3556
  %v3566 = vadd.f32 %v3348, %v3560
  %v3567 = vadd.f32 %v3349, %v3562
  %v3568 = vld [vmem:[%s1527] sm:$0x3]
  %3569 = vrot.lane.b32.xlu0 %v2086, 112
  %v3570 = vpop.permute.xlu0 %3569
  %3571 = vrot.lane.b32.xlu0 %v2092, 112
  %v3572 = vpop.permute.xlu0 %3571
  %v3573 = vsel %vm1533, %v3570, %v3572
  %v3577 = vsel %vm1533, %v3572, %v3570
  %v3579 = vlaneseq
  %v3580 = vshrl.u32 %v3579, 7
  %v3581 = vsub.s32 0, %v3580
  %v3582 = vrot.slane %v3568, %v3581
  %v3583 = vlaneseq
  %v3584 = vshrl.u32 %v3583, 7
  %v3585 = vsub.s32 1, %v3584
  %v3586 = vrot.slane %v3568, %v3585
  %v3589 = vmul.f32 %v3573, %v3582
  %v3590 = vmul.f32 %v3577, %v3586
  %3591 = vrot.lane.b32.xlu0 %v2088, 112
  %v3592 = vpop.permute.xlu0 %3591
  %3593 = vrot.lane.b32.xlu0 %v2089, 112
  %v3594 = vpop.permute.xlu0 %3593
  %v3595 = vsel %vm1533, %v3592, %v3594
  %v3599 = vsel %vm1533, %v3594, %v3592
  %v3600 = vmul.f32 %v3595, %v3582
  %v3601 = vmul.f32 %v3599, %v3586
  %v3602 = vld [vmem:[%s1563] sm:$0xff]
  %v3603 = vld [vmem:[%s1563 + $0x8] sm:$0xff]
  %v3605 = vsel %vm105, %v3602, 0
  %v3608 = vsel %vm105, %v3603, 0
  %v3611 = vsel %vm112, %v3589, 0
  %v3614 = vsel %vm112, %v3590, 0
  %3616 = vmatprep.subr.mxu0 %v3614
  %3617 = vmatpush1.msra.mxu0 %v3611
  %3618 = vmatprep.subr.mxu0 0.0
  %3619 = vmatpush1.msra.mxu0 0.0
  %3620 = vmatprep.subr.mxu0 0.0
  %3621 = vmatpush1.msra.mxu0 0.0
  %3622 = vmatprep.subr.mxu0 0.0
  %3623 = vmatpush1.msra.mxu0 0.0
  %3624 = vmatprep.subr.mxu0 0.0
  %3625 = vmatpush1.msra.mxu0 0.0
  %3626 = vmatprep.subr.mxu0 0.0
  %3627 = vmatpush1.msra.mxu0 0.0
  %3628 = vmatprep.subr.mxu0 0.0
  %3629 = vmatpush1.msra.mxu0 0.0
  %3630 = vmatprep.subr.mxu0 0.0
  %3631 = vmatpush1.msra.mxu0 0.0
  %3632 = vmatprep.subr.mxu0 0.0
  %3633 = vmatpush1.msra.mxu0 0.0
  %3634 = vmatprep.subr.mxu0 0.0
  %3635 = vmatpush1.msra.mxu0 0.0
  %3636 = vmatprep.subr.mxu0 0.0
  %3637 = vmatpush1.msra.mxu0 0.0
  %3638 = vmatprep.subr.mxu0 0.0
  %3639 = vmatpush1.msra.mxu0 0.0
  %3640 = vmatprep.subr.mxu0 0.0
  %3641 = vmatpush1.msra.mxu0 0.0
  %3642 = vmatprep.subr.mxu0 0.0
  %3643 = vmatpush1.msra.mxu0 0.0
  %3644 = vmatprep.subr.mxu0 0.0
  %3645 = vmatpush1.msra.mxu0 0.0
  %3646 = vmatprep.subr.mxu0 0.0
  %3647 = vmatpush1.msra.mxu0 0.0
  %3648 = vmatprep.subr.mxu0 0.0
  %3649 = vmatpush1.msra.mxu0 0.0
  %3650 = vmatprep.subr.mxu0 0.0
  %3651 = vmatpush1.msra.mxu0 0.0
  %3652 = vmatprep.subr.mxu0 0.0
  %3653 = vmatpush1.msra.mxu0 0.0
  %3654 = vmatprep.subr.mxu0 0.0
  %3655 = vmatpush1.msra.mxu0 0.0
  %3656 = vmatprep.subr.mxu0 0.0
  %3657 = vmatpush1.msra.mxu0 0.0
  %3658 = vmatprep.subr.mxu0 0.0
  %3659 = vmatpush1.msra.mxu0 0.0
  %3660 = vmatprep.subr.mxu0 0.0
  %3661 = vmatpush1.msra.mxu0 0.0
  %3662 = vmatprep.subr.mxu0 0.0
  %3663 = vmatpush1.msra.mxu0 0.0
  %3664 = vmatprep.subr.mxu0 0.0
  %3665 = vmatpush1.msra.mxu0 0.0
  %3666 = vmatprep.subr.mxu0 0.0
  %3667 = vmatpush1.msra.mxu0 0.0
  %3668 = vmatprep.subr.mxu0 0.0
  %3669 = vmatpush1.msra.mxu0 0.0
  %3670 = vmatprep.subr.mxu0 0.0
  %3671 = vmatpush1.msra.mxu0 0.0
  %3672 = vmatprep.subr.mxu0 0.0
  %3673 = vmatpush1.msra.mxu0 0.0
  %3674 = vmatprep.subr.mxu0 0.0
  %3675 = vmatpush1.msra.mxu0 0.0
  %3676 = vmatprep.subr.mxu0 0.0
  %3677 = vmatpush1.msra.mxu0 0.0
  %3678 = vmatprep.subr.mxu0 0.0
  %3679 = vmatpush1.msra.mxu0 0.0
  %3680 = vmatprep.mubr.f32.mxu0 0.0
  %3681 = vmatmul.mubr.f32.gmra.mrb[0].mxu0 %v3605
  %v3682 = vpop.f32.mrb[0].mxu0
  %v3683 = vadd.f32 0.0, %v3682
  %v3684 = vpop.f32.mrb[0].mxu0
  %v3685 = vadd.f32 0.0, %v3684
  %3686 = vmatprep.mubr.f32.mxu0 0.0
  %3687 = vmatmul.mubr.f32.gmra.mrb[0].mxu0 %v3608
  %v3688 = vpop.f32.mrb[0].mxu0
  %v3689 = vadd.f32 0.0, %v3688
  %v3690 = vpop.f32.mrb[0].mxu0
  %v3691 = vadd.f32 0.0, %v3690
  %3692 = vdwg.mxu0
  %v3693 = vadd.f32 %v3475, %v3683
  %v3694 = vadd.f32 %v3476, %v3685
  %v3695 = vadd.f32 %v3477, %v3689
  %v3696 = vadd.f32 %v3478, %v3691
  %v3697 = vld [vmem:[%s1659] sm:$0xff]
  %v3698 = vld [vmem:[%s1659 + $0x8] sm:$0xff]
  %v3700 = vsel %vm288, %v3697, 0
  %v3703 = vsel %vm288, %v3698, 0
  %3705 = vmatprep.subr.mxu0 %v3601
  %3706 = vmatpush1.msra.mxu0 %v3600
  %3707 = vmatprep.subr.mxu0 0.0
  %3708 = vmatpush1.msra.mxu0 0.0
  %3709 = vmatprep.subr.mxu0 0.0
  %3710 = vmatpush1.msra.mxu0 0.0
  %3711 = vmatprep.subr.mxu0 0.0
  %3712 = vmatpush1.msra.mxu0 0.0
  %3713 = vmatprep.subr.mxu0 0.0
  %3714 = vmatpush1.msra.mxu0 0.0
  %3715 = vmatprep.subr.mxu0 0.0
  %3716 = vmatpush1.msra.mxu0 0.0
  %3717 = vmatprep.subr.mxu0 0.0
  %3718 = vmatpush1.msra.mxu0 0.0
  %3719 = vmatprep.subr.mxu0 0.0
  %3720 = vmatpush1.msra.mxu0 0.0
  %3721 = vmatprep.subr.mxu0 0.0
  %3722 = vmatpush1.msra.mxu0 0.0
  %3723 = vmatprep.subr.mxu0 0.0
  %3724 = vmatpush1.msra.mxu0 0.0
  %3725 = vmatprep.subr.mxu0 0.0
  %3726 = vmatpush1.msra.mxu0 0.0
  %3727 = vmatprep.subr.mxu0 0.0
  %3728 = vmatpush1.msra.mxu0 0.0
  %3729 = vmatprep.subr.mxu0 0.0
  %3730 = vmatpush1.msra.mxu0 0.0
  %3731 = vmatprep.subr.mxu0 0.0
  %3732 = vmatpush1.msra.mxu0 0.0
  %3733 = vmatprep.subr.mxu0 0.0
  %3734 = vmatpush1.msra.mxu0 0.0
  %3735 = vmatprep.subr.mxu0 0.0
  %3736 = vmatpush1.msra.mxu0 0.0
  %3737 = vmatprep.subr.mxu0 0.0
  %3738 = vmatpush1.msra.mxu0 0.0
  %3739 = vmatprep.subr.mxu0 0.0
  %3740 = vmatpush1.msra.mxu0 0.0
  %3741 = vmatprep.subr.mxu0 0.0
  %3742 = vmatpush1.msra.mxu0 0.0
  %3743 = vmatprep.subr.mxu0 0.0
  %3744 = vmatpush1.msra.mxu0 0.0
  %3745 = vmatprep.subr.mxu0 0.0
  %3746 = vmatpush1.msra.mxu0 0.0
  %3747 = vmatprep.subr.mxu0 0.0
  %3748 = vmatpush1.msra.mxu0 0.0
  %3749 = vmatprep.subr.mxu0 0.0
  %3750 = vmatpush1.msra.mxu0 0.0
  %3751 = vmatprep.subr.mxu0 0.0
  %3752 = vmatpush1.msra.mxu0 0.0
  %3753 = vmatprep.subr.mxu0 0.0
  %3754 = vmatpush1.msra.mxu0 0.0
  %3755 = vmatprep.subr.mxu0 0.0
  %3756 = vmatpush1.msra.mxu0 0.0
  %3757 = vmatprep.subr.mxu0 0.0
  %3758 = vmatpush1.msra.mxu0 0.0
  %3759 = vmatprep.subr.mxu0 0.0
  %3760 = vmatpush1.msra.mxu0 0.0
  %3761 = vmatprep.subr.mxu0 0.0
  %3762 = vmatpush1.msra.mxu0 0.0
  %3763 = vmatprep.subr.mxu0 0.0
  %3764 = vmatpush1.msra.mxu0 0.0
  %3765 = vmatprep.subr.mxu0 0.0
  %3766 = vmatpush1.msra.mxu0 0.0
  %3767 = vmatprep.subr.mxu0 0.0
  %3768 = vmatpush1.msra.mxu0 0.0
  %3769 = vmatprep.mubr.f32.mxu0 0.0
  %3770 = vmatmul.mubr.f32.gmra.mrb[0].mxu0 %v3700
  %v3771 = vpop.f32.mrb[0].mxu0
  %v3772 = vadd.f32 0.0, %v3771
  %v3773 = vpop.f32.mrb[0].mxu0
  %v3774 = vadd.f32 0.0, %v3773
  %3775 = vmatprep.mubr.f32.mxu0 0.0
  %3776 = vmatmul.mubr.f32.gmra.mrb[0].mxu0 %v3703
  %v3777 = vpop.f32.mrb[0].mxu0
  %v3778 = vadd.f32 0.0, %v3777
  %v3779 = vpop.f32.mrb[0].mxu0
  %v3780 = vadd.f32 0.0, %v3779
  %3781 = vdwg.mxu0
  %v3782 = vadd.f32 %v3564, %v3772
  %v3783 = vadd.f32 %v3565, %v3774
  %v3784 = vadd.f32 %v3566, %v3778
  %v3785 = vadd.f32 %v3567, %v3780
  %v3786 = vld [vmem:[%s1749] sm:$0x3]
  %3787 = vrot.lane.b32.xlu0 %v2086, 111
  %v3788 = vpop.permute.xlu0 %3787
  %3789 = vrot.lane.b32.xlu0 %v2092, 111
  %v3790 = vpop.permute.xlu0 %3789
  %v3791 = vsel %vm1755, %v3788, %v3790
  %v3795 = vsel %vm1755, %v3790, %v3788
  %v3797 = vlaneseq
  %v3798 = vshrl.u32 %v3797, 7
  %v3799 = vsub.s32 0, %v3798
  %v3800 = vrot.slane %v3786, %v3799
  %v3801 = vlaneseq
  %v3802 = vshrl.u32 %v3801, 7
  %v3803 = vsub.s32 1, %v3802
  %v3804 = vrot.slane %v3786, %v3803
  %v3807 = vmul.f32 %v3791, %v3800
  %v3808 = vmul.f32 %v3795, %v3804
  %3809 = vrot.lane.b32.xlu0 %v2088, 111
  %v3810 = vpop.permute.xlu0 %3809
  %3811 = vrot.lane.b32.xlu0 %v2089, 111
  %v3812 = vpop.permute.xlu0 %3811
  %v3813 = vsel %vm1755, %v3810, %v3812
  %v3817 = vsel %vm1755, %v3812, %v3810
  %v3818 = vmul.f32 %v3813, %v3800
  %v3819 = vmul.f32 %v3817, %v3804
  %v3820 = vld [vmem:[%s1785] sm:$0xff]
  %v3821 = vld [vmem:[%s1785 + $0x8] sm:$0xff]
  %v3823 = vsel %vm105, %v3820, 0
  %v3826 = vsel %vm105, %v3821, 0
  %v3829 = vsel %vm112, %v3807, 0
  %v3832 = vsel %vm112, %v3808, 0
  %3834 = vmatprep.subr.mxu0 %v3832
  %3835 = vmatpush1.msra.mxu0 %v3829
  %3836 = vmatprep.subr.mxu0 0.0
  %3837 = vmatpush1.msra.mxu0 0.0
  %3838 = vmatprep.subr.mxu0 0.0
  %3839 = vmatpush1.msra.mxu0 0.0
  %3840 = vmatprep.subr.mxu0 0.0
  %3841 = vmatpush1.msra.mxu0 0.0
  %3842 = vmatprep.subr.mxu0 0.0
  %3843 = vmatpush1.msra.mxu0 0.0
  %3844 = vmatprep.subr.mxu0 0.0
  %3845 = vmatpush1.msra.mxu0 0.0
  %3846 = vmatprep.subr.mxu0 0.0
  %3847 = vmatpush1.msra.mxu0 0.0
  %3848 = vmatprep.subr.mxu0 0.0
  %3849 = vmatpush1.msra.mxu0 0.0
  %3850 = vmatprep.subr.mxu0 0.0
  %3851 = vmatpush1.msra.mxu0 0.0
  %3852 = vmatprep.subr.mxu0 0.0
  %3853 = vmatpush1.msra.mxu0 0.0
  %3854 = vmatprep.subr.mxu0 0.0
  %3855 = vmatpush1.msra.mxu0 0.0
  %3856 = vmatprep.subr.mxu0 0.0
  %3857 = vmatpush1.msra.mxu0 0.0
  %3858 = vmatprep.subr.mxu0 0.0
  %3859 = vmatpush1.msra.mxu0 0.0
  %3860 = vmatprep.subr.mxu0 0.0
  %3861 = vmatpush1.msra.mxu0 0.0
  %3862 = vmatprep.subr.mxu0 0.0
  %3863 = vmatpush1.msra.mxu0 0.0
  %3864 = vmatprep.subr.mxu0 0.0
  %3865 = vmatpush1.msra.mxu0 0.0
  %3866 = vmatprep.subr.mxu0 0.0
  %3867 = vmatpush1.msra.mxu0 0.0
  %3868 = vmatprep.subr.mxu0 0.0
  %3869 = vmatpush1.msra.mxu0 0.0
  %3870 = vmatprep.subr.mxu0 0.0
  %3871 = vmatpush1.msra.mxu0 0.0
  %3872 = vmatprep.subr.mxu0 0.0
  %3873 = vmatpush1.msra.mxu0 0.0
  %3874 = vmatprep.subr.mxu0 0.0
  %3875 = vmatpush1.msra.mxu0 0.0
  %3876 = vmatprep.subr.mxu0 0.0
  %3877 = vmatpush1.msra.mxu0 0.0
  %3878 = vmatprep.subr.mxu0 0.0
  %3879 = vmatpush1.msra.mxu0 0.0
  %3880 = vmatprep.subr.mxu0 0.0
  %3881 = vmatpush1.msra.mxu0 0.0
  %3882 = vmatprep.subr.mxu0 0.0
  %3883 = vmatpush1.msra.mxu0 0.0
  %3884 = vmatprep.subr.mxu0 0.0
  %3885 = vmatpush1.msra.mxu0 0.0
  %3886 = vmatprep.subr.mxu0 0.0
  %3887 = vmatpush1.msra.mxu0 0.0
  %3888 = vmatprep.subr.mxu0 0.0
  %3889 = vmatpush1.msra.mxu0 0.0
  %3890 = vmatprep.subr.mxu0 0.0
  %3891 = vmatpush1.msra.mxu0 0.0
  %3892 = vmatprep.subr.mxu0 0.0
  %3893 = vmatpush1.msra.mxu0 0.0
  %3894 = vmatprep.subr.mxu0 0.0
  %3895 = vmatpush1.msra.mxu0 0.0
  %3896 = vmatprep.subr.mxu0 0.0
  %3897 = vmatpush1.msra.mxu0 0.0
  %3898 = vmatprep.mubr.f32.mxu0 0.0
  %3899 = vmatmul.mubr.f32.gmra.mrb[0].mxu0 %v3823
  %v3900 = vpop.f32.mrb[0].mxu0
  %v3901 = vadd.f32 0.0, %v3900
  %v3902 = vpop.f32.mrb[0].mxu0
  %v3903 = vadd.f32 0.0, %v3902
  %3904 = vmatprep.mubr.f32.mxu0 0.0
  %3905 = vmatmul.mubr.f32.gmra.mrb[0].mxu0 %v3826
  %v3906 = vpop.f32.mrb[0].mxu0
  %v3907 = vadd.f32 0.0, %v3906
  %v3908 = vpop.f32.mrb[0].mxu0
  %v3909 = vadd.f32 0.0, %v3908
  %3910 = vdwg.mxu0
  %v3911 = vadd.f32 %v3693, %v3901
  %v3912 = vadd.f32 %v3694, %v3903
  %v3913 = vadd.f32 %v3695, %v3907
  %v3914 = vadd.f32 %v3696, %v3909
  %v3915 = vld [vmem:[%s1881] sm:$0xff]
  %v3916 = vld [vmem:[%s1881 + $0x8] sm:$0xff]
  %v3918 = vsel %vm288, %v3915, 0
  %v3921 = vsel %vm288, %v3916, 0
  %3923 = vmatprep.subr.mxu0 %v3819
  %3924 = vmatpush1.msra.mxu0 %v3818
  %3925 = vmatprep.subr.mxu0 0.0
  %3926 = vmatpush1.msra.mxu0 0.0
  %3927 = vmatprep.subr.mxu0 0.0
  %3928 = vmatpush1.msra.mxu0 0.0
  %3929 = vmatprep.subr.mxu0 0.0
  %3930 = vmatpush1.msra.mxu0 0.0
  %3931 = vmatprep.subr.mxu0 0.0
  %3932 = vmatpush1.msra.mxu0 0.0
  %3933 = vmatprep.subr.mxu0 0.0
  %3934 = vmatpush1.msra.mxu0 0.0
  %3935 = vmatprep.subr.mxu0 0.0
  %3936 = vmatpush1.msra.mxu0 0.0
  %3937 = vmatprep.subr.mxu0 0.0
  %3938 = vmatpush1.msra.mxu0 0.0
  %3939 = vmatprep.subr.mxu0 0.0
  %3940 = vmatpush1.msra.mxu0 0.0
  %3941 = vmatprep.subr.mxu0 0.0
  %3942 = vmatpush1.msra.mxu0 0.0
  %3943 = vmatprep.subr.mxu0 0.0
  %3944 = vmatpush1.msra.mxu0 0.0
  %3945 = vmatprep.subr.mxu0 0.0
  %3946 = vmatpush1.msra.mxu0 0.0
  %3947 = vmatprep.subr.mxu0 0.0
  %3948 = vmatpush1.msra.mxu0 0.0
  %3949 = vmatprep.subr.mxu0 0.0
  %3950 = vmatpush1.msra.mxu0 0.0
  %3951 = vmatprep.subr.mxu0 0.0
  %3952 = vmatpush1.msra.mxu0 0.0
  %3953 = vmatprep.subr.mxu0 0.0
  %3954 = vmatpush1.msra.mxu0 0.0
  %3955 = vmatprep.subr.mxu0 0.0
  %3956 = vmatpush1.msra.mxu0 0.0
  %3957 = vmatprep.subr.mxu0 0.0
  %3958 = vmatpush1.msra.mxu0 0.0
  %3959 = vmatprep.subr.mxu0 0.0
  %3960 = vmatpush1.msra.mxu0 0.0
  %3961 = vmatprep.subr.mxu0 0.0
  %3962 = vmatpush1.msra.mxu0 0.0
  %3963 = vmatprep.subr.mxu0 0.0
  %3964 = vmatpush1.msra.mxu0 0.0
  %3965 = vmatprep.subr.mxu0 0.0
  %3966 = vmatpush1.msra.mxu0 0.0
  %3967 = vmatprep.subr.mxu0 0.0
  %3968 = vmatpush1.msra.mxu0 0.0
  %3969 = vmatprep.subr.mxu0 0.0
  %3970 = vmatpush1.msra.mxu0 0.0
  %3971 = vmatprep.subr.mxu0 0.0
  %3972 = vmatpush1.msra.mxu0 0.0
  %3973 = vmatprep.subr.mxu0 0.0
  %3974 = vmatpush1.msra.mxu0 0.0
  %3975 = vmatprep.subr.mxu0 0.0
  %3976 = vmatpush1.msra.mxu0 0.0
  %3977 = vmatprep.subr.mxu0 0.0
  %3978 = vmatpush1.msra.mxu0 0.0
  %3979 = vmatprep.subr.mxu0 0.0
  %3980 = vmatpush1.msra.mxu0 0.0
  %3981 = vmatprep.subr.mxu0 0.0
  %3982 = vmatpush1.msra.mxu0 0.0
  %3983 = vmatprep.subr.mxu0 0.0
  %3984 = vmatpush1.msra.mxu0 0.0
  %3985 = vmatprep.subr.mxu0 0.0
  %3986 = vmatpush1.msra.mxu0 0.0
  %3987 = vmatprep.mubr.f32.mxu0 0.0
  %3988 = vmatmul.mubr.f32.gmra.mrb[0].mxu0 %v3918
  %v3989 = vpop.f32.mrb[0].mxu0
  %v3990 = vadd.f32 0.0, %v3989
  %v3991 = vpop.f32.mrb[0].mxu0
  %v3992 = vadd.f32 0.0, %v3991
  %3993 = vmatprep.mubr.f32.mxu0 0.0
  %3994 = vmatmul.mubr.f32.gmra.mrb[0].mxu0 %v3921
  %v3995 = vpop.f32.mrb[0].mxu0
  %v3996 = vadd.f32 0.0, %v3995
  %v3997 = vpop.f32.mrb[0].mxu0
  %v3998 = vadd.f32 0.0, %v3997
  %3999 = vdwg.mxu0
  %v4000 = vadd.f32 %v3782, %v3990
  %v4001 = vadd.f32 %v3783, %v3992
  %v4002 = vadd.f32 %v3784, %v3996
  %v4003 = vadd.f32 %v3785, %v3998
  %v4004 = vadd.f32 %v3911, %v3912
  %v4005 = vadd.f32 %v4004, %v3913
  %v4006 = vadd.f32 %v4005, %v3914
  %4007 = vadd.xlane.f32.xlu0 %v4006
  %v4008 = vpop.xlane.xlu0 %4007
  %v4009 = vrot.slane %v4008, 4
  %v4010 = vadd.f32 %v4008, %v4009
  %v4011 = vrot.slane %v4010, 2
  %v4012 = vadd.f32 %v4010, %v4011
  %v4013 = vrot.slane %v4012, 1
  %v4014 = vadd.f32 %v4012, %v4013
  %s4015 = vtos %v4014
  %s4016 = smul.f32 %s4015, 0.00024414063
  %v4017 = vstv %s4016
  %v4018 = vsub.f32 %v3911, %v4017
  %v4019 = vsub.f32 %v3912, %v4017
  %v4020 = vsub.f32 %v3913, %v4017
  %v4021 = vsub.f32 %v3914, %v4017
  %v4022 = vmul.f32 %v4018, %v4018
  %v4023 = vmul.f32 %v4019, %v4019
  %v4024 = vmul.f32 %v4020, %v4020
  %v4025 = vmul.f32 %v4021, %v4021
  %v4026 = vadd.f32 %v4022, %v4023
  %v4027 = vadd.f32 %v4026, %v4024
  %v4028 = vadd.f32 %v4027, %v4025
  %4029 = vadd.xlane.f32.xlu0 %v4028
  %v4030 = vpop.xlane.xlu0 %4029
  %v4031 = vrot.slane %v4030, 4
  %v4032 = vadd.f32 %v4030, %v4031
  %v4033 = vrot.slane %v4032, 2
  %v4034 = vadd.f32 %v4032, %v4033
  %v4035 = vrot.slane %v4034, 1
  %v4036 = vadd.f32 %v4034, %v4035
  %s4037 = vtos %v4036
  %s4038 = smul.f32 %s4037, 0.00024414063
  %s4039 = sadd.f32 %s4038, 1e-05
  %v4040 = vstv %s4039
  %v4041 = vrsqrt.pop %v4040
  %s4042 = vtos %v4041
  %v4043 = vstv %s4042
  %v4044 = vmul.f32 %v4018, %v4043
  %v4045 = vmul.f32 %v4019, %v4043
  %v4046 = vmul.f32 %v4020, %v4043
  %v4047 = vmul.f32 %v4021, %v4043
  %v4048 = vadd.f32 %v4000, %v4001
  %v4049 = vadd.f32 %v4048, %v4002
  %v4050 = vadd.f32 %v4049, %v4003
  %4051 = vadd.xlane.f32.xlu0 %v4050
  %v4052 = vpop.xlane.xlu0 %4051
  %v4053 = vrot.slane %v4052, 4
  %v4054 = vadd.f32 %v4052, %v4053
  %v4055 = vrot.slane %v4054, 2
  %v4056 = vadd.f32 %v4054, %v4055
  %v4057 = vrot.slane %v4056, 1
  %v4058 = vadd.f32 %v4056, %v4057
  %s4059 = vtos %v4058
  %s4060 = smul.f32 %s4059, 0.00024414063
  %v4061 = vstv %s4060
  %v4062 = vsub.f32 %v4000, %v4061
  %v4063 = vsub.f32 %v4001, %v4061
  %v4064 = vsub.f32 %v4002, %v4061
  %v4065 = vsub.f32 %v4003, %v4061
  %v4066 = vmul.f32 %v4062, %v4062
  %v4067 = vmul.f32 %v4063, %v4063
  %v4068 = vmul.f32 %v4064, %v4064
  %v4069 = vmul.f32 %v4065, %v4065
  %v4070 = vadd.f32 %v4066, %v4067
  %v4071 = vadd.f32 %v4070, %v4068
  %v4072 = vadd.f32 %v4071, %v4069
  %4073 = vadd.xlane.f32.xlu0 %v4072
  %v4074 = vpop.xlane.xlu0 %4073
  %v4075 = vrot.slane %v4074, 4
  %v4076 = vadd.f32 %v4074, %v4075
  %v4077 = vrot.slane %v4076, 2
  %v4078 = vadd.f32 %v4076, %v4077
  %v4079 = vrot.slane %v4078, 1
  %v4080 = vadd.f32 %v4078, %v4079
  %s4081 = vtos %v4080
  %s4082 = smul.f32 %s4081, 0.00024414063
  %s4083 = sadd.f32 %s4082, 1e-05
  %v4084 = vstv %s4083
  %v4085 = vrsqrt.pop %v4084
  %s4086 = vtos %v4085
  %v4087 = vstv %s4086
  %v4088 = vmul.f32 %v4062, %v4087
  %v4089 = vmul.f32 %v4063, %v4087
  %v4090 = vmul.f32 %v4064, %v4087
  %v4091 = vmul.f32 %v4065, %v4087
  %v4092 = vadd.f32 %v4044, %v4088
  %v4093 = vadd.f32 %v4045, %v4089
  %v4094 = vtanh.pop %v4092
  %v4095 = vtanh.pop %v4093
  %v4096 = vadd.f32 %v4046, %v4090
  %v4097 = vadd.f32 %v4047, %v4091
  %v4098 = vxor.u32 %v4096, 2147483648
  %v4099 = vxor.u32 %v4097, 2147483648
  %v4100 = vmul.f32 %v4098, 1.442695
  %v4101 = vpow.pop %v4100
  %v4102 = vmul.f32 %v4099, 1.442695
  %v4103 = vpow.pop %v4102
  %v4104 = vadd.f32 %v4101, 1.0
  %v4105 = vadd.f32 %v4103, 1.0
  %v4106 = vrcp.pop %v4104
  %v4107 = vmul.f32 1.0, %v4106
  %v4108 = vrcp.pop %v4105
  %v4109 = vmul.f32 1.0, %v4108
  %v4110 = vsub.f32 %v4094, %v2088
  %v4111 = vsub.f32 %v4095, %v2089
  %v4112 = vmul.f32 %v4107, %v4110
  %v4113 = vmul.f32 %v4109, %v4111
  %v4114 = vadd.f32 %v2088, %v4112
  %v4115 = vadd.f32 %v2089, %v4113
  %s4116 = scalar_lea.vmem %s5, 16
  %4117 = vst [vmem:[%s4116] sm:$0xff] %v4114
  %4118 = vst [vmem:[%s4116 + $0x8] sm:$0xff] %v4115
  // Predicated region
  $region22: #{ghu_forward.1} parent=0 // pred_check
    _
  $region23: #{ghu_forward.1} parent=0 // pred_check_branch
    %4120 = sbr.rel (0) target = $region25
  $region24: #{ghu_forward.1} parent=0 // pred_region
    _
  $region25: #{ghu_forward.1} parent=0 // pred_fallthru
    _
  // Predicated region
  $region26: #{ghu_forward.1} parent=0 // pred_check
    _
  $region27: #{ghu_forward.1} parent=0 // pred_check_branch
    %4122 = sbr.rel (0) target = $region29
  $region28: #{ghu_forward.1} parent=0 // pred_region
    _
  $region29: #{ghu_forward.1} parent=0 // pred_fallthru
    _

</llo_original>
